<compile_context>
chip_gen: v7x
topology: tpu7x:2x2x1
jax: 0.10.0
libtpu: 0.0.40
codegen_flags: <defaults>
</compile_context>

<pallas_src>
from functools import partial

import numpy as np
import jax
import jax.numpy as jnp
from jax import lax
from jax.experimental import pallas as pl
from jax.experimental.pallas import tpu as pltpu

GROUPS = 4
EPS = 1e-5


def _silu(v):
    # exp goes to the EUP; exact divide kept to hold the 1e-4-level tolerance.
    return v * (1.0 / (1.0 + jnp.exp(-v)))


# ----------------------------------------------------------------------------
# Shared compute core: conv1x1 -> BN1+SiLU -> both depthwise 3x3 branches.
# All big values are (rows, W*C): lane-dense.
# ----------------------------------------------------------------------------
def _paths(xb, wbig, s1, h1, t1, t2, *, H, W, C):
    WC = W * C

    # 1x1 conv as one MXU matmul against a block-diagonal weight so the result
    # lands directly in the lane-dense (H, W*C) layout (no in-kernel relayout).
    # Default Mosaic f32 matmul precision was verified against the 2e-4
    # tolerance; see wrapper TODO for the W-tiled variant at large W.
    y = jnp.dot(xb, wbig, preferred_element_type=jnp.float32)
    z = _silu(y * s1 + h1)                                     # (H, WC)

    # Row-pad once by 2 (shared by both dilations).
    zero_r = jnp.zeros((2, WC), jnp.float32)
    zr = jnp.concatenate([zero_r, z, zero_r], axis=0)          # (H+4, WC)

    # 5 pixel(column)-shifted copies, shared by both branches and all ky:
    # after this, every tap is only a row (sublane) offset + FMA.
    def colshift(dx):
        if dx == 0:
            return zr
        pad = jnp.zeros((H + 4, abs(dx) * C), jnp.float32)
        if dx > 0:   # output pixel w reads input pixel w+dx
            return jnp.concatenate([zr[:, dx * C:], pad], axis=1)
        return jnp.concatenate([pad, zr[:, :WC + dx * C]], axis=1)

    copies = {dx: colshift(dx) for dx in (-2, -1, 0, 1, 2)}

    def branch(taps, d):
        acc = None
        for ky in range(3):
            dy = (ky - 1) * d
            for kx in range(3):
                dx = (kx - 1) * d
                term = copies[dx][2 + dy:2 + dy + H, :] * taps[ky * 3 + kx]
                acc = term if acc is None else acc + term
        return acc

    return branch(t1, 1), branch(t2, 2)


# ----------------------------------------------------------------------------
# Pass A: per-block centered partial statistics for BN2/BN3 (tiny output).
# ----------------------------------------------------------------------------
def _stats_kernel(x_ref, wbig_ref, s1_ref, h1_ref, t1_ref, t2_ref, st_ref,
                  *, H, W, C):
    p1, p2 = _paths(x_ref[0], wbig_ref[...], s1_ref[...], h1_ref[...],
                    t1_ref[...], t2_ref[...], H=H, W=W, C=C)
    inv_h = 1.0 / H
    s1v = jnp.sum(p1, axis=0, keepdims=True)                   # (1, WC)
    s2v = jnp.sum(p2, axis=0, keepdims=True)
    d1 = p1 - s1v * inv_h                                      # centered
    d2 = p2 - s2v * inv_h
    st_ref[0] = jnp.concatenate(
        [s1v, jnp.sum(d1 * d1, axis=0, keepdims=True),
         s2v, jnp.sum(d2 * d2, axis=0, keepdims=True)], axis=0)


# ----------------------------------------------------------------------------
# Pass B: recompute from x, apply BN2/BN3 + SiLU + add, write final output.
# ----------------------------------------------------------------------------
def _final_kernel(x_ref, wbig_ref, s1_ref, h1_ref, t1_ref, t2_ref,
                  s2_ref, h2_ref, s3_ref, h3_ref, o_ref, *, H, W, C):
    p1, p2 = _paths(x_ref[0], wbig_ref[...], s1_ref[...], h1_ref[...],
                    t1_ref[...], t2_ref[...], H=H, W=W, C=C)
    a = _silu(p1 * s2_ref[...] + h2_ref[...])
    b = _silu(p2 * s3_ref[...] + h3_ref[...])
    o_ref[0] = a + b


def pyramid_feature_block(x_nchw, params):
    """x_nchw: (B, Cin, H, W) -> (B, Cout, H, W); training-mode BN semantics."""
    (w1_t, g1, bb1, dw1_t, g2, bb2, dw2_t, g3, bb3) = params
    B, Cin, H, W = x_nchw.shape
    C = w1_t.shape[0]                 # Cout
    WC = W * C
    N = B * H * W
    f32 = jnp.float32
    hi = lax.Precision.HIGHEST

    # Channel shuffle (a pure permutation after channelwise ops) folded into
    # every per-output-channel parameter: kernel output channel j computes
    # original channel perm[j], so the result is already shuffled.
    cpg = C // GROUPS
    n = np.arange(C)
    perm = (n % GROUPS) * cpg + n // GROUPS

    w1 = jnp.transpose(w1_t[:, :, 0, 0], (1, 0))[:, perm].astype(f32)            # (Cin, C)
    dw1 = jnp.transpose(dw1_t[:, 0].reshape(C, 9), (1, 0))[:, perm].astype(f32)  # (9, C)
    dw2 = jnp.transpose(dw2_t[:, 0].reshape(C, 9), (1, 0))[:, perm].astype(f32)
    g1p, b1p = g1[perm].astype(f32), bb1[perm].astype(f32)
    g2p, b2p = g2[perm].astype(f32), bb2[perm].astype(f32)
    g3p, b3p = g3[perm].astype(f32), bb3[perm].astype(f32)

    # NCHW -> NHWC once at the boundary (see TODO); trailing collapse is free.
    x_nhwc = jnp.transpose(x_nchw, (0, 2, 3, 1)).astype(f32)                     # (B,H,W,Cin)
    x_lane = x_nhwc.reshape(B, H, W * Cin)

    # BN1 train-mode stats derived exactly from x's channel moments (the 1x1
    # conv is linear), using the *centered* covariance via one small MXU
    # matmul: numerically robust and only one cheap pass over (small) x.
    x2d = x_nhwc.reshape(N, Cin)
    mean_x = jnp.mean(x2d, axis=0)                                               # (Cin,)
    xc = x2d - mean_x
    cov = jnp.dot(xc.T, xc, precision=hi) / N                                    # (Cin,Cin)
    mean1 = jnp.dot(mean_x, w1, precision=hi)                                    # (C,)
    var1 = jnp.maximum(jnp.sum(w1 * jnp.dot(cov, w1, precision=hi), axis=0), 0.0)
    scale1 = g1p * lax.rsqrt(var1 + EPS)
    shift1 = b1p - mean1 * scale1

    def lane(v):                                     # (C,) -> (1, W*C)
        return jnp.tile(v, W)[None, :]

    t1 = jnp.tile(dw1, (1, W))                       # (9, W*C)
    t2 = jnp.tile(dw2, (1, W))
    # Block-diagonal 1x1-conv weight: matmul emits (H, W*C) directly.
    # 64 KiB at W=16; TODO(synk): W-tile for large W (O(W^2) growth).
    w_big = jnp.kron(jnp.eye(W, dtype=f32), w1)      # (W*Cin, W*C)

    common_in_specs = [
        pl.BlockSpec((1, H, W * Cin), lambda b: (b, 0, 0)),
        pl.BlockSpec((W * Cin, WC), lambda b: (0, 0)),
        pl.BlockSpec((1, WC), lambda b: (0, 0)),
        pl.BlockSpec((1, WC), lambda b: (0, 0)),
        pl.BlockSpec((9, WC), lambda b: (0, 0)),
        pl.BlockSpec((9, WC), lambda b: (0, 0)),
    ]
    cparams = pltpu.CompilerParams(dimension_semantics=("parallel",))

    # ---------------- pass A: tiny per-block BN2/BN3 partial stats ----------
    st = pl.pallas_call(
        partial(_stats_kernel, H=H, W=W, C=C),
        out_shape=jax.ShapeDtypeStruct((B, 4, WC), f32),
        grid=(B,),
        in_specs=common_in_specs,
        out_specs=pl.BlockSpec((1, 4, WC), lambda b: (b, 0, 0)),
        compiler_params=cparams,
    )(x_lane, w_big, lane(scale1), lane(shift1), t1, t2)

    # Exact between-group (ANOVA) fold of per-(batch, pixel-column) groups
    # (each group has H samples) into global per-channel BN2/BN3 stats.
    st4 = st.reshape(B, 4, W, C)

    def fold(sums, m2s):                              # (B, W, C) each
        mean = jnp.sum(sums, axis=(0, 1)) / N                               # (C,)
        mu_g = sums / H
        m2 = jnp.sum(m2s, axis=(0, 1)) + H * jnp.sum((mu_g - mean) ** 2, axis=(0, 1))
        return mean, jnp.maximum(m2 / N, 0.0)

    mean2, var2 = fold(st4[:, 0], st4[:, 1])
    mean3, var3 = fold(st4[:, 2], st4[:, 3])
    scale2 = g2p * lax.rsqrt(var2 + EPS)
    shift2 = b2p - mean2 * scale2
    scale3 = g3p * lax.rsqrt(var3 + EPS)
    shift3 = b3p - mean3 * scale3

    # ---------------- pass B: recompute + BN2/BN3 + SiLU + add + store ------
    out = pl.pallas_call(
        partial(_final_kernel, H=H, W=W, C=C),
        out_shape=jax.ShapeDtypeStruct((B, H, WC), f32),
        grid=(B,),
        in_specs=common_in_specs + [pl.BlockSpec((1, WC), lambda b: (0, 0))] * 4,
        out_specs=pl.BlockSpec((1, H, WC), lambda b: (b, 0, 0)),
        compiler_params=cparams,
    )(x_lane, w_big, lane(scale1), lane(shift1), t1, t2,
      lane(scale2), lane(shift2), lane(scale3), lane(shift3))

    # Already in shuffled channel order; back to NCHW at the module boundary.
    return jnp.transpose(out.reshape(B, H, W, C), (0, 3, 1, 2))


# ----------------------------------------------------------------------------
# Pure-JAX reference mirroring the PyTorch forward (train-mode BN).
# ----------------------------------------------------------------------------
def _bn_train_ref(y, gamma, beta):
    B, H, W, C = y.shape
    yf = y.reshape(B * H * W, C)
    mean = jnp.mean(yf, axis=0, keepdims=True)
    var = jnp.mean((yf - mean) ** 2, axis=0, keepdims=True)   # biased var
    return (y - mean) * lax.rsqrt(var + EPS) * gamma + beta


def reference_forward(x_nchw, params):
    (w1_t, g1, bb1, dw1_t, g2, bb2, dw2_t, g3, bb3) = params
    Cout = w1_t.shape[0]
    x = jnp.transpose(x_nchw, (0, 2, 3, 1)).astype(jnp.float32)
    dn = ('NHWC', 'HWIO', 'NHWC')
    y = lax.conv_general_dilated(x, jnp.transpose(w1_t, (2, 3, 1, 0)),
                                 (1, 1), 'VALID', dimension_numbers=dn)
    y = jax.nn.silu(_bn_train_ref(y, g1, bb1))
    p1 = lax.conv_general_dilated(y, jnp.transpose(dw1_t, (2, 3, 1, 0)),
                                  (1, 1), [(1, 1), (1, 1)],
                                  dimension_numbers=dn, feature_group_count=Cout)
    p1 = jax.nn.silu(_bn_train_ref(p1, g2, bb2))
    p2 = lax.conv_general_dilated(y, jnp.transpose(dw2_t, (2, 3, 1, 0)),
                                  (1, 1), [(2, 2), (2, 2)], rhs_dilation=(2, 2),
                                  dimension_numbers=dn, feature_group_count=Cout)
    p2 = jax.nn.silu(_bn_train_ref(p2, g3, bb3))
    out = p1 + p2
    B, H, W, C = out.shape
    out = jnp.swapaxes(out.reshape(B, H, W, GROUPS, C // GROUPS), 3, 4).reshape(B, H, W, C)
    return jnp.transpose(out, (0, 3, 1, 2))


if __name__ == "__main__":
    B, Cin, Cout, H, W = 2, 4, 16, 16, 16
    key = jax.random.PRNGKey(0)
    kx, kw1, kd1, kd2 = jax.random.split(key, 4)

    x = jax.random.normal(kx, (B, Cin, H, W), jnp.float32)
    # PyTorch-layout weights (OIHW), deterministic.
    w1_t = 0.5 * jax.random.normal(kw1, (Cout, Cin, 1, 1), jnp.float32)
    dw1_t = 0.3 * jax.random.normal(kd1, (Cout, 1, 3, 3), jnp.float32)
    dw2_t = 0.3 * jax.random.normal(kd2, (Cout, 1, 3, 3), jnp.float32)
    # BatchNorm affine params (deterministic, non-trivial).
    ar = jnp.arange(Cout, dtype=jnp.float32)
    g1, bb1 = 1.0 + 0.05 * ar, 0.02 * ar - 0.1
    g2, bb2 = 1.0 - 0.03 * ar, 0.01 * ar
    g3, bb3 = 0.9 + 0.02 * ar, 0.05 - 0.02 * ar

    params = (w1_t, g1, bb1, dw1_t, g2, bb2, dw2_t, g3, bb3)

    fwd = jax.jit(pyramid_feature_block)
    out = jax.block_until_ready(fwd(x, params))
    ref = jax.block_until_ready(reference_forward(x, params))

    assert out.shape == (B, Cout, H, W)
    np.testing.assert_allclose(np.asarray(out), np.asarray(ref), atol=2e-4, rtol=2e-4)
    print("KERNEL_OK")
</pallas_src>

<mosaic_0001>
module attributes {stable_mosaic.version = 11 : i64} {
  func.func @_stats_kernel(%arg0: i32, %arg1: memref<1x16x64xf32, #tpu.memory_space<vmem>>, %arg2: memref<64x256xf32, #tpu.memory_space<vmem>>, %arg3: memref<1x256xf32, #tpu.memory_space<vmem>>, %arg4: memref<1x256xf32, #tpu.memory_space<vmem>>, %arg5: memref<9x256xf32, #tpu.memory_space<vmem>>, %arg6: memref<9x256xf32, #tpu.memory_space<vmem>>, %arg7: memref<1x4x256xf32, #tpu.memory_space<vmem>>) attributes {dimension_semantics = [#tpu.dimension_semantics<parallel>], iteration_bounds = array<i64: 2>, scalar_prefetch = 0 : i64, scratch_operands = 0 : i64, tpu.core_type = #tpu.core_type<tc>, window_params = [{transform_indices = @transform_0, window_bounds = array<i64: 1, 16, 64>}, {pipeline_mode = #tpu.pipeline_mode<synchronous>, transform_indices = @transform_1, window_bounds = array<i64: 64, 256>}, {pipeline_mode = #tpu.pipeline_mode<synchronous>, transform_indices = @transform_2, window_bounds = array<i64: 1, 256>}, {pipeline_mode = #tpu.pipeline_mode<synchronous>, transform_indices = @transform_3, window_bounds = array<i64: 1, 256>}, {pipeline_mode = #tpu.pipeline_mode<synchronous>, transform_indices = @transform_4, window_bounds = array<i64: 9, 256>}, {pipeline_mode = #tpu.pipeline_mode<synchronous>, transform_indices = @transform_5, window_bounds = array<i64: 9, 256>}, {transform_indices = @transform_6, window_bounds = array<i64: 1, 4, 256>}]} {
    %c0 = arith.constant 0 : index
    %c0_0 = arith.constant 0 : index
    %c0_1 = arith.constant 0 : index
    %0 = vector.load %arg1[%c0, %c0_0, %c0_1] : memref<1x16x64xf32, #tpu.memory_space<vmem>>, vector<1x16x64xf32>
    %1 = vector.shape_cast %0 : vector<1x16x64xf32> to vector<16x64xf32>
    %c0_2 = arith.constant 0 : index
    %c0_3 = arith.constant 0 : index
    %2 = vector.load %arg2[%c0_2, %c0_3] : memref<64x256xf32, #tpu.memory_space<vmem>>, vector<64x256xf32>
    %c0_4 = arith.constant 0 : index
    %c0_5 = arith.constant 0 : index
    %3 = vector.load %arg3[%c0_4, %c0_5] : memref<1x256xf32, #tpu.memory_space<vmem>>, vector<1x256xf32>
    %c0_6 = arith.constant 0 : index
    %c0_7 = arith.constant 0 : index
    %4 = vector.load %arg4[%c0_6, %c0_7] : memref<1x256xf32, #tpu.memory_space<vmem>>, vector<1x256xf32>
    %c0_8 = arith.constant 0 : index
    %c0_9 = arith.constant 0 : index
    %5 = vector.load %arg5[%c0_8, %c0_9] : memref<9x256xf32, #tpu.memory_space<vmem>>, vector<9x256xf32>
    %c0_10 = arith.constant 0 : index
    %c0_11 = arith.constant 0 : index
    %6 = vector.load %arg6[%c0_10, %c0_11] : memref<9x256xf32, #tpu.memory_space<vmem>>, vector<9x256xf32>
    %cst = arith.constant dense<0.000000e+00> : vector<16x256xf32>
    %7 = tpu.matmul %1, %2, %cst {dimension_numbers = #tpu.dot_dimension_numbers<[1], [0], [0], [1], [0, 0, 1, 1], [], []>} : vector<16x64xf32>, vector<64x256xf32>, vector<16x256xf32> -> vector<16x256xf32>
    %8 = vector.broadcast %3 : vector<1x256xf32> to vector<16x256xf32>
    %9 = arith.mulf %7, %8 : vector<16x256xf32>
    %10 = vector.broadcast %4 : vector<1x256xf32> to vector<16x256xf32>
    %11 = arith.addf %9, %10 : vector<16x256xf32>
    %cst_12 = arith.constant 0.000000e+00 : f32
    %12 = vector.broadcast %cst_12 : f32 to vector<16x256xf32>
    %13 = arith.subf %12, %11 : vector<16x256xf32>
    %14 = math.exp %13 : vector<16x256xf32>
    %cst_13 = arith.constant 1.000000e+00 : f32
    %15 = vector.broadcast %cst_13 : f32 to vector<16x256xf32>
    %16 = arith.addf %15, %14 : vector<16x256xf32>
    %cst_14 = arith.constant 1.000000e+00 : f32
    %17 = vector.broadcast %cst_14 : f32 to vector<16x256xf32>
    %18 = arith.divf %17, %16 : vector<16x256xf32>
    %19 = arith.mulf %11, %18 : vector<16x256xf32>
    %cst_15 = arith.constant 0.000000e+00 : f32
    %20 = vector.broadcast %cst_15 : f32 to vector<2x256xf32>
    %21 = tpu.concatenate %20, %19, %20 in 0 : vector<2x256xf32>, vector<16x256xf32>, vector<2x256xf32> -> vector<20x256xf32>
    %cst_16 = arith.constant 0.000000e+00 : f32
    %22 = vector.broadcast %cst_16 : f32 to vector<20x32xf32>
    %23 = vector.extract_strided_slice %21 {offsets = [0, 0], sizes = [20, 224], strides = [1, 1]} : vector<20x256xf32> to vector<20x224xf32>
    %24 = tpu.concatenate %22, %23 in 1 : vector<20x32xf32>, vector<20x224xf32> -> vector<20x256xf32>
    %cst_17 = arith.constant 0.000000e+00 : f32
    %25 = vector.broadcast %cst_17 : f32 to vector<20x16xf32>
    %26 = vector.extract_strided_slice %21 {offsets = [0, 0], sizes = [20, 240], strides = [1, 1]} : vector<20x256xf32> to vector<20x240xf32>
    %27 = tpu.concatenate %25, %26 in 1 : vector<20x16xf32>, vector<20x240xf32> -> vector<20x256xf32>
    %cst_18 = arith.constant 0.000000e+00 : f32
    %28 = vector.broadcast %cst_18 : f32 to vector<20x16xf32>
    %29 = vector.extract_strided_slice %21 {offsets = [0, 16], sizes = [20, 240], strides = [1, 1]} : vector<20x256xf32> to vector<20x240xf32>
    %30 = tpu.concatenate %29, %28 in 1 : vector<20x240xf32>, vector<20x16xf32> -> vector<20x256xf32>
    %cst_19 = arith.constant 0.000000e+00 : f32
    %31 = vector.broadcast %cst_19 : f32 to vector<20x32xf32>
    %32 = vector.extract_strided_slice %21 {offsets = [0, 32], sizes = [20, 224], strides = [1, 1]} : vector<20x256xf32> to vector<20x224xf32>
    %33 = tpu.concatenate %32, %31 in 1 : vector<20x224xf32>, vector<20x32xf32> -> vector<20x256xf32>
    %34 = vector.extract_strided_slice %27 {offsets = [1, 0], sizes = [16, 256], strides = [1, 1]} : vector<20x256xf32> to vector<16x256xf32>
    %35 = vector.extract_strided_slice %5 {offsets = [0, 0], sizes = [1, 256], strides = [1, 1]} : vector<9x256xf32> to vector<1x256xf32>
    %36 = vector.shape_cast %35 : vector<1x256xf32> to vector<256xf32>
    %37 = vector.shape_cast %36 : vector<256xf32> to vector<1x256xf32>
    %38 = vector.broadcast %37 : vector<1x256xf32> to vector<16x256xf32>
    %39 = arith.mulf %34, %38 : vector<16x256xf32>
    %40 = vector.extract_strided_slice %21 {offsets = [1, 0], sizes = [16, 256], strides = [1, 1]} : vector<20x256xf32> to vector<16x256xf32>
    %41 = vector.extract_strided_slice %5 {offsets = [1, 0], sizes = [1, 256], strides = [1, 1]} : vector<9x256xf32> to vector<1x256xf32>
    %42 = vector.shape_cast %41 : vector<1x256xf32> to vector<256xf32>
    %43 = vector.shape_cast %42 : vector<256xf32> to vector<1x256xf32>
    %44 = vector.broadcast %43 : vector<1x256xf32> to vector<16x256xf32>
    %45 = arith.mulf %40, %44 : vector<16x256xf32>
    %46 = arith.addf %39, %45 : vector<16x256xf32>
    %47 = vector.extract_strided_slice %30 {offsets = [1, 0], sizes = [16, 256], strides = [1, 1]} : vector<20x256xf32> to vector<16x256xf32>
    %48 = vector.extract_strided_slice %5 {offsets = [2, 0], sizes = [1, 256], strides = [1, 1]} : vector<9x256xf32> to vector<1x256xf32>
    %49 = vector.shape_cast %48 : vector<1x256xf32> to vector<256xf32>
    %50 = vector.shape_cast %49 : vector<256xf32> to vector<1x256xf32>
    %51 = vector.broadcast %50 : vector<1x256xf32> to vector<16x256xf32>
    %52 = arith.mulf %47, %51 : vector<16x256xf32>
    %53 = arith.addf %46, %52 : vector<16x256xf32>
    %54 = vector.extract_strided_slice %27 {offsets = [2, 0], sizes = [16, 256], strides = [1, 1]} : vector<20x256xf32> to vector<16x256xf32>
    %55 = vector.extract_strided_slice %5 {offsets = [3, 0], sizes = [1, 256], strides = [1, 1]} : vector<9x256xf32> to vector<1x256xf32>
    %56 = vector.shape_cast %55 : vector<1x256xf32> to vector<256xf32>
    %57 = vector.shape_cast %56 : vector<256xf32> to vector<1x256xf32>
    %58 = vector.broadcast %57 : vector<1x256xf32> to vector<16x256xf32>
    %59 = arith.mulf %54, %58 : vector<16x256xf32>
    %60 = arith.addf %53, %59 : vector<16x256xf32>
    %61 = vector.extract_strided_slice %21 {offsets = [2, 0], sizes = [16, 256], strides = [1, 1]} : vector<20x256xf32> to vector<16x256xf32>
    %62 = vector.extract_strided_slice %5 {offsets = [4, 0], sizes = [1, 256], strides = [1, 1]} : vector<9x256xf32> to vector<1x256xf32>
    %63 = vector.shape_cast %62 : vector<1x256xf32> to vector<256xf32>
    %64 = vector.shape_cast %63 : vector<256xf32> to vector<1x256xf32>
    %65 = vector.broadcast %64 : vector<1x256xf32> to vector<16x256xf32>
    %66 = arith.mulf %61, %65 : vector<16x256xf32>
    %67 = arith.addf %60, %66 : vector<16x256xf32>
    %68 = vector.extract_strided_slice %30 {offsets = [2, 0], sizes = [16, 256], strides = [1, 1]} : vector<20x256xf32> to vector<16x256xf32>
    %69 = vector.extract_strided_slice %5 {offsets = [5, 0], sizes = [1, 256], strides = [1, 1]} : vector<9x256xf32> to vector<1x256xf32>
    %70 = vector.shape_cast %69 : vector<1x256xf32> to vector<256xf32>
    %71 = vector.shape_cast %70 : vector<256xf32> to vector<1x256xf32>
    %72 = vector.broadcast %71 : vector<1x256xf32> to vector<16x256xf32>
    %73 = arith.mulf %68, %72 : vector<16x256xf32>
    %74 = arith.addf %67, %73 : vector<16x256xf32>
    %75 = vector.extract_strided_slice %27 {offsets = [3, 0], sizes = [16, 256], strides = [1, 1]} : vector<20x256xf32> to vector<16x256xf32>
    %76 = vector.extract_strided_slice %5 {offsets = [6, 0], sizes = [1, 256], strides = [1, 1]} : vector<9x256xf32> to vector<1x256xf32>
    %77 = vector.shape_cast %76 : vector<1x256xf32> to vector<256xf32>
    %78 = vector.shape_cast %77 : vector<256xf32> to vector<1x256xf32>
    %79 = vector.broadcast %78 : vector<1x256xf32> to vector<16x256xf32>
    %80 = arith.mulf %75, %79 : vector<16x256xf32>
    %81 = arith.addf %74, %80 : vector<16x256xf32>
    %82 = vector.extract_strided_slice %21 {offsets = [3, 0], sizes = [16, 256], strides = [1, 1]} : vector<20x256xf32> to vector<16x256xf32>
    %83 = vector.extract_strided_slice %5 {offsets = [7, 0], sizes = [1, 256], strides = [1, 1]} : vector<9x256xf32> to vector<1x256xf32>
    %84 = vector.shape_cast %83 : vector<1x256xf32> to vector<256xf32>
    %85 = vector.shape_cast %84 : vector<256xf32> to vector<1x256xf32>
    %86 = vector.broadcast %85 : vector<1x256xf32> to vector<16x256xf32>
    %87 = arith.mulf %82, %86 : vector<16x256xf32>
    %88 = arith.addf %81, %87 : vector<16x256xf32>
    %89 = vector.extract_strided_slice %30 {offsets = [3, 0], sizes = [16, 256], strides = [1, 1]} : vector<20x256xf32> to vector<16x256xf32>
    %90 = vector.extract_strided_slice %5 {offsets = [8, 0], sizes = [1, 256], strides = [1, 1]} : vector<9x256xf32> to vector<1x256xf32>
    %91 = vector.shape_cast %90 : vector<1x256xf32> to vector<256xf32>
    %92 = vector.shape_cast %91 : vector<256xf32> to vector<1x256xf32>
    %93 = vector.broadcast %92 : vector<1x256xf32> to vector<16x256xf32>
    %94 = arith.mulf %89, %93 : vector<16x256xf32>
    %95 = arith.addf %88, %94 : vector<16x256xf32>
    %96 = vector.extract_strided_slice %24 {offsets = [0, 0], sizes = [16, 256], strides = [1, 1]} : vector<20x256xf32> to vector<16x256xf32>
    %97 = vector.extract_strided_slice %6 {offsets = [0, 0], sizes = [1, 256], strides = [1, 1]} : vector<9x256xf32> to vector<1x256xf32>
    %98 = vector.shape_cast %97 : vector<1x256xf32> to vector<256xf32>
    %99 = vector.shape_cast %98 : vector<256xf32> to vector<1x256xf32>
    %100 = vector.broadcast %99 : vector<1x256xf32> to vector<16x256xf32>
    %101 = arith.mulf %96, %100 : vector<16x256xf32>
    %102 = vector.extract_strided_slice %21 {offsets = [0, 0], sizes = [16, 256], strides = [1, 1]} : vector<20x256xf32> to vector<16x256xf32>
    %103 = vector.extract_strided_slice %6 {offsets = [1, 0], sizes = [1, 256], strides = [1, 1]} : vector<9x256xf32> to vector<1x256xf32>
    %104 = vector.shape_cast %103 : vector<1x256xf32> to vector<256xf32>
    %105 = vector.shape_cast %104 : vector<256xf32> to vector<1x256xf32>
    %106 = vector.broadcast %105 : vector<1x256xf32> to vector<16x256xf32>
    %107 = arith.mulf %102, %106 : vector<16x256xf32>
    %108 = arith.addf %101, %107 : vector<16x256xf32>
    %109 = vector.extract_strided_slice %33 {offsets = [0, 0], sizes = [16, 256], strides = [1, 1]} : vector<20x256xf32> to vector<16x256xf32>
    %110 = vector.extract_strided_slice %6 {offsets = [2, 0], sizes = [1, 256], strides = [1, 1]} : vector<9x256xf32> to vector<1x256xf32>
    %111 = vector.shape_cast %110 : vector<1x256xf32> to vector<256xf32>
    %112 = vector.shape_cast %111 : vector<256xf32> to vector<1x256xf32>
    %113 = vector.broadcast %112 : vector<1x256xf32> to vector<16x256xf32>
    %114 = arith.mulf %109, %113 : vector<16x256xf32>
    %115 = arith.addf %108, %114 : vector<16x256xf32>
    %116 = vector.extract_strided_slice %24 {offsets = [2, 0], sizes = [16, 256], strides = [1, 1]} : vector<20x256xf32> to vector<16x256xf32>
    %117 = vector.extract_strided_slice %6 {offsets = [3, 0], sizes = [1, 256], strides = [1, 1]} : vector<9x256xf32> to vector<1x256xf32>
    %118 = vector.shape_cast %117 : vector<1x256xf32> to vector<256xf32>
    %119 = vector.shape_cast %118 : vector<256xf32> to vector<1x256xf32>
    %120 = vector.broadcast %119 : vector<1x256xf32> to vector<16x256xf32>
    %121 = arith.mulf %116, %120 : vector<16x256xf32>
    %122 = arith.addf %115, %121 : vector<16x256xf32>
    %123 = vector.extract_strided_slice %21 {offsets = [2, 0], sizes = [16, 256], strides = [1, 1]} : vector<20x256xf32> to vector<16x256xf32>
    %124 = vector.extract_strided_slice %6 {offsets = [4, 0], sizes = [1, 256], strides = [1, 1]} : vector<9x256xf32> to vector<1x256xf32>
    %125 = vector.shape_cast %124 : vector<1x256xf32> to vector<256xf32>
    %126 = vector.shape_cast %125 : vector<256xf32> to vector<1x256xf32>
    %127 = vector.broadcast %126 : vector<1x256xf32> to vector<16x256xf32>
    %128 = arith.mulf %123, %127 : vector<16x256xf32>
    %129 = arith.addf %122, %128 : vector<16x256xf32>
    %130 = vector.extract_strided_slice %33 {offsets = [2, 0], sizes = [16, 256], strides = [1, 1]} : vector<20x256xf32> to vector<16x256xf32>
    %131 = vector.extract_strided_slice %6 {offsets = [5, 0], sizes = [1, 256], strides = [1, 1]} : vector<9x256xf32> to vector<1x256xf32>
    %132 = vector.shape_cast %131 : vector<1x256xf32> to vector<256xf32>
    %133 = vector.shape_cast %132 : vector<256xf32> to vector<1x256xf32>
    %134 = vector.broadcast %133 : vector<1x256xf32> to vector<16x256xf32>
    %135 = arith.mulf %130, %134 : vector<16x256xf32>
    %136 = arith.addf %129, %135 : vector<16x256xf32>
    %137 = vector.extract_strided_slice %24 {offsets = [4, 0], sizes = [16, 256], strides = [1, 1]} : vector<20x256xf32> to vector<16x256xf32>
    %138 = vector.extract_strided_slice %6 {offsets = [6, 0], sizes = [1, 256], strides = [1, 1]} : vector<9x256xf32> to vector<1x256xf32>
    %139 = vector.shape_cast %138 : vector<1x256xf32> to vector<256xf32>
    %140 = vector.shape_cast %139 : vector<256xf32> to vector<1x256xf32>
    %141 = vector.broadcast %140 : vector<1x256xf32> to vector<16x256xf32>
    %142 = arith.mulf %137, %141 : vector<16x256xf32>
    %143 = arith.addf %136, %142 : vector<16x256xf32>
    %144 = vector.extract_strided_slice %21 {offsets = [4, 0], sizes = [16, 256], strides = [1, 1]} : vector<20x256xf32> to vector<16x256xf32>
    %145 = vector.extract_strided_slice %6 {offsets = [7, 0], sizes = [1, 256], strides = [1, 1]} : vector<9x256xf32> to vector<1x256xf32>
    %146 = vector.shape_cast %145 : vector<1x256xf32> to vector<256xf32>
    %147 = vector.shape_cast %146 : vector<256xf32> to vector<1x256xf32>
    %148 = vector.broadcast %147 : vector<1x256xf32> to vector<16x256xf32>
    %149 = arith.mulf %144, %148 : vector<16x256xf32>
    %150 = arith.addf %143, %149 : vector<16x256xf32>
    %151 = vector.extract_strided_slice %33 {offsets = [4, 0], sizes = [16, 256], strides = [1, 1]} : vector<20x256xf32> to vector<16x256xf32>
    %152 = vector.extract_strided_slice %6 {offsets = [8, 0], sizes = [1, 256], strides = [1, 1]} : vector<9x256xf32> to vector<1x256xf32>
    %153 = vector.shape_cast %152 : vector<1x256xf32> to vector<256xf32>
    %154 = vector.shape_cast %153 : vector<256xf32> to vector<1x256xf32>
    %155 = vector.broadcast %154 : vector<1x256xf32> to vector<16x256xf32>
    %156 = arith.mulf %151, %155 : vector<16x256xf32>
    %157 = arith.addf %150, %156 : vector<16x256xf32>
    %cst_20 = arith.constant dense<0.000000e+00> : vector<256xf32>
    %158 = vector.multi_reduction <add>, %95, %cst_20 [0] : vector<16x256xf32> to vector<256xf32>
    %159 = vector.shape_cast %158 : vector<256xf32> to vector<1x256xf32>
    %cst_21 = arith.constant dense<0.000000e+00> : vector<256xf32>
    %160 = vector.multi_reduction <add>, %157, %cst_21 [0] : vector<16x256xf32> to vector<256xf32>
    %161 = vector.shape_cast %160 : vector<256xf32> to vector<1x256xf32>
    %cst_22 = arith.constant 6.250000e-02 : f32
    %162 = vector.broadcast %cst_22 : f32 to vector<1x256xf32>
    %163 = arith.mulf %159, %162 : vector<1x256xf32>
    %164 = vector.broadcast %163 : vector<1x256xf32> to vector<16x256xf32>
    %165 = arith.subf %95, %164 : vector<16x256xf32>
    %cst_23 = arith.constant 6.250000e-02 : f32
    %166 = vector.broadcast %cst_23 : f32 to vector<1x256xf32>
    %167 = arith.mulf %161, %166 : vector<1x256xf32>
    %168 = vector.broadcast %167 : vector<1x256xf32> to vector<16x256xf32>
    %169 = arith.subf %157, %168 : vector<16x256xf32>
    %170 = arith.mulf %165, %165 : vector<16x256xf32>
    %cst_24 = arith.constant dense<0.000000e+00> : vector<256xf32>
    %171 = vector.multi_reduction <add>, %170, %cst_24 [0] : vector<16x256xf32> to vector<256xf32>
    %172 = vector.shape_cast %171 : vector<256xf32> to vector<1x256xf32>
    %173 = arith.mulf %169, %169 : vector<16x256xf32>
    %cst_25 = arith.constant dense<0.000000e+00> : vector<256xf32>
    %174 = vector.multi_reduction <add>, %173, %cst_25 [0] : vector<16x256xf32> to vector<256xf32>
    %175 = vector.shape_cast %174 : vector<256xf32> to vector<1x256xf32>
    %176 = tpu.concatenate %159, %172, %161, %175 in 0 : vector<1x256xf32>, vector<1x256xf32>, vector<1x256xf32>, vector<1x256xf32> -> vector<4x256xf32>
    %c0_26 = arith.constant 0 : index
    %c0_27 = arith.constant 0 : index
    %c0_28 = arith.constant 0 : index
    %177 = vector.load %arg7[%c0_26, %c0_27, %c0_28] : memref<1x4x256xf32, #tpu.memory_space<vmem>>, vector<1x4x256xf32>
    %178 = vector.shape_cast %177 : vector<1x4x256xf32> to vector<4x256xf32>
    %179 = vector.shape_cast %176 : vector<4x256xf32> to vector<1x4x256xf32>
    tpu.vector_store %arg7[%c0_26, %c0_27, %c0_28], %179 {strides = array<i32>} : memref<1x4x256xf32, #tpu.memory_space<vmem>>, vector<1x4x256xf32>,
    return
  }
  func.func @transform_0(%arg0: i32) -> (i32, i32, i32) {
    %c0_i32 = arith.constant 0 : i32
    %c0_i32_0 = arith.constant 0 : i32
    %c0_i32_1 = arith.constant 0 : i32
    return %arg0, %c0_i32, %c0_i32_0 : i32, i32, i32
  }
  func.func @transform_1(%arg0: i32) -> (i32, i32) {
    %c0_i32 = arith.constant 0 : i32
    %c0_i32_0 = arith.constant 0 : i32
    %c0_i32_1 = arith.constant 0 : i32
    return %c0_i32, %c0_i32_0 : i32, i32
  }
  func.func @transform_2(%arg0: i32) -> (i32, i32) {
    %c0_i32 = arith.constant 0 : i32
    %c0_i32_0 = arith.constant 0 : i32
    %c0_i32_1 = arith.constant 0 : i32
    return %c0_i32, %c0_i32_0 : i32, i32
  }
  func.func @transform_3(%arg0: i32) -> (i32, i32) {
    %c0_i32 = arith.constant 0 : i32
    %c0_i32_0 = arith.constant 0 : i32
    %c0_i32_1 = arith.constant 0 : i32
    return %c0_i32, %c0_i32_0 : i32, i32
  }
  func.func @transform_4(%arg0: i32) -> (i32, i32) {
    %c0_i32 = arith.constant 0 : i32
    %c0_i32_0 = arith.constant 0 : i32
    %c0_i32_1 = arith.constant 0 : i32
    return %c0_i32, %c0_i32_0 : i32, i32
  }
  func.func @transform_5(%arg0: i32) -> (i32, i32) {
    %c0_i32 = arith.constant 0 : i32
    %c0_i32_0 = arith.constant 0 : i32
    %c0_i32_1 = arith.constant 0 : i32
    return %c0_i32, %c0_i32_0 : i32, i32
  }
  func.func @transform_6(%arg0: i32) -> (i32, i32, i32) {
    %c0_i32 = arith.constant 0 : i32
    %c0_i32_0 = arith.constant 0 : i32
    %c0_i32_1 = arith.constant 0 : i32
    return %arg0, %c0_i32, %c0_i32_0 : i32, i32, i32
  }
}

module attributes {stable_mosaic.version = 11 : i64} {
  func.func @_final_kernel(%arg0: i32, %arg1: memref<1x16x64xf32, #tpu.memory_space<vmem>>, %arg2: memref<64x256xf32, #tpu.memory_space<vmem>>, %arg3: memref<1x256xf32, #tpu.memory_space<vmem>>, %arg4: memref<1x256xf32, #tpu.memory_space<vmem>>, %arg5: memref<9x256xf32, #tpu.memory_space<vmem>>, %arg6: memref<9x256xf32, #tpu.memory_space<vmem>>, %arg7: memref<1x256xf32, #tpu.memory_space<vmem>>, %arg8: memref<1x256xf32, #tpu.memory_space<vmem>>, %arg9: memref<1x256xf32, #tpu.memory_space<vmem>>, %arg10: memref<1x256xf32, #tpu.memory_space<vmem>>, %arg11: memref<1x16x256xf32, #tpu.memory_space<vmem>>) attributes {dimension_semantics = [#tpu.dimension_semantics<parallel>], iteration_bounds = array<i64: 2>, scalar_prefetch = 0 : i64, scratch_operands = 0 : i64, tpu.core_type = #tpu.core_type<tc>, window_params = [{transform_indices = @transform_0, window_bounds = array<i64: 1, 16, 64>}, {pipeline_mode = #tpu.pipeline_mode<synchronous>, transform_indices = @transform_1, window_bounds = array<i64: 64, 256>}, {pipeline_mode = #tpu.pipeline_mode<synchronous>, transform_indices = @transform_2, window_bounds = array<i64: 1, 256>}, {pipeline_mode = #tpu.pipeline_mode<synchronous>, transform_indices = @transform_3, window_bounds = array<i64: 1, 256>}, {pipeline_mode = #tpu.pipeline_mode<synchronous>, transform_indices = @transform_4, window_bounds = array<i64: 9, 256>}, {pipeline_mode = #tpu.pipeline_mode<synchronous>, transform_indices = @transform_5, window_bounds = array<i64: 9, 256>}, {pipeline_mode = #tpu.pipeline_mode<synchronous>, transform_indices = @transform_6, window_bounds = array<i64: 1, 256>}, {pipeline_mode = #tpu.pipeline_mode<synchronous>, transform_indices = @transform_7, window_bounds = array<i64: 1, 256>}, {pipeline_mode = #tpu.pipeline_mode<synchronous>, transform_indices = @transform_8, window_bounds = array<i64: 1, 256>}, {pipeline_mode = #tpu.pipeline_mode<synchronous>, transform_indices = @transform_9, window_bounds = array<i64: 1, 256>}, {transform_indices = @transform_10, window_bounds = array<i64: 1, 16, 256>}]} {
    %c0 = arith.constant 0 : index
    %c0_0 = arith.constant 0 : index
    %c0_1 = arith.constant 0 : index
    %0 = vector.load %arg1[%c0, %c0_0, %c0_1] : memref<1x16x64xf32, #tpu.memory_space<vmem>>, vector<1x16x64xf32>
    %1 = vector.shape_cast %0 : vector<1x16x64xf32> to vector<16x64xf32>
    %c0_2 = arith.constant 0 : index
    %c0_3 = arith.constant 0 : index
    %2 = vector.load %arg2[%c0_2, %c0_3] : memref<64x256xf32, #tpu.memory_space<vmem>>, vector<64x256xf32>
    %c0_4 = arith.constant 0 : index
    %c0_5 = arith.constant 0 : index
    %3 = vector.load %arg3[%c0_4, %c0_5] : memref<1x256xf32, #tpu.memory_space<vmem>>, vector<1x256xf32>
    %c0_6 = arith.constant 0 : index
    %c0_7 = arith.constant 0 : index
    %4 = vector.load %arg4[%c0_6, %c0_7] : memref<1x256xf32, #tpu.memory_space<vmem>>, vector<1x256xf32>
    %c0_8 = arith.constant 0 : index
    %c0_9 = arith.constant 0 : index
    %5 = vector.load %arg5[%c0_8, %c0_9] : memref<9x256xf32, #tpu.memory_space<vmem>>, vector<9x256xf32>
    %c0_10 = arith.constant 0 : index
    %c0_11 = arith.constant 0 : index
    %6 = vector.load %arg6[%c0_10, %c0_11] : memref<9x256xf32, #tpu.memory_space<vmem>>, vector<9x256xf32>
    %cst = arith.constant dense<0.000000e+00> : vector<16x256xf32>
    %7 = tpu.matmul %1, %2, %cst {dimension_numbers = #tpu.dot_dimension_numbers<[1], [0], [0], [1], [0, 0, 1, 1], [], []>} : vector<16x64xf32>, vector<64x256xf32>, vector<16x256xf32> -> vector<16x256xf32>
    %8 = vector.broadcast %3 : vector<1x256xf32> to vector<16x256xf32>
    %9 = arith.mulf %7, %8 : vector<16x256xf32>
    %10 = vector.broadcast %4 : vector<1x256xf32> to vector<16x256xf32>
    %11 = arith.addf %9, %10 : vector<16x256xf32>
    %cst_12 = arith.constant 0.000000e+00 : f32
    %12 = vector.broadcast %cst_12 : f32 to vector<16x256xf32>
    %13 = arith.subf %12, %11 : vector<16x256xf32>
    %14 = math.exp %13 : vector<16x256xf32>
    %cst_13 = arith.constant 1.000000e+00 : f32
    %15 = vector.broadcast %cst_13 : f32 to vector<16x256xf32>
    %16 = arith.addf %15, %14 : vector<16x256xf32>
    %cst_14 = arith.constant 1.000000e+00 : f32
    %17 = vector.broadcast %cst_14 : f32 to vector<16x256xf32>
    %18 = arith.divf %17, %16 : vector<16x256xf32>
    %19 = arith.mulf %11, %18 : vector<16x256xf32>
    %cst_15 = arith.constant 0.000000e+00 : f32
    %20 = vector.broadcast %cst_15 : f32 to vector<2x256xf32>
    %21 = tpu.concatenate %20, %19, %20 in 0 : vector<2x256xf32>, vector<16x256xf32>, vector<2x256xf32> -> vector<20x256xf32>
    %cst_16 = arith.constant 0.000000e+00 : f32
    %22 = vector.broadcast %cst_16 : f32 to vector<20x32xf32>
    %23 = vector.extract_strided_slice %21 {offsets = [0, 0], sizes = [20, 224], strides = [1, 1]} : vector<20x256xf32> to vector<20x224xf32>
    %24 = tpu.concatenate %22, %23 in 1 : vector<20x32xf32>, vector<20x224xf32> -> vector<20x256xf32>
    %cst_17 = arith.constant 0.000000e+00 : f32
    %25 = vector.broadcast %cst_17 : f32 to vector<20x16xf32>
    %26 = vector.extract_strided_slice %21 {offsets = [0, 0], sizes = [20, 240], strides = [1, 1]} : vector<20x256xf32> to vector<20x240xf32>
    %27 = tpu.concatenate %25, %26 in 1 : vector<20x16xf32>, vector<20x240xf32> -> vector<20x256xf32>
    %cst_18 = arith.constant 0.000000e+00 : f32
    %28 = vector.broadcast %cst_18 : f32 to vector<20x16xf32>
    %29 = vector.extract_strided_slice %21 {offsets = [0, 16], sizes = [20, 240], strides = [1, 1]} : vector<20x256xf32> to vector<20x240xf32>
    %30 = tpu.concatenate %29, %28 in 1 : vector<20x240xf32>, vector<20x16xf32> -> vector<20x256xf32>
    %cst_19 = arith.constant 0.000000e+00 : f32
    %31 = vector.broadcast %cst_19 : f32 to vector<20x32xf32>
    %32 = vector.extract_strided_slice %21 {offsets = [0, 32], sizes = [20, 224], strides = [1, 1]} : vector<20x256xf32> to vector<20x224xf32>
    %33 = tpu.concatenate %32, %31 in 1 : vector<20x224xf32>, vector<20x32xf32> -> vector<20x256xf32>
    %34 = vector.extract_strided_slice %27 {offsets = [1, 0], sizes = [16, 256], strides = [1, 1]} : vector<20x256xf32> to vector<16x256xf32>
    %35 = vector.extract_strided_slice %5 {offsets = [0, 0], sizes = [1, 256], strides = [1, 1]} : vector<9x256xf32> to vector<1x256xf32>
    %36 = vector.shape_cast %35 : vector<1x256xf32> to vector<256xf32>
    %37 = vector.shape_cast %36 : vector<256xf32> to vector<1x256xf32>
    %38 = vector.broadcast %37 : vector<1x256xf32> to vector<16x256xf32>
    %39 = arith.mulf %34, %38 : vector<16x256xf32>
    %40 = vector.extract_strided_slice %21 {offsets = [1, 0], sizes = [16, 256], strides = [1, 1]} : vector<20x256xf32> to vector<16x256xf32>
    %41 = vector.extract_strided_slice %5 {offsets = [1, 0], sizes = [1, 256], strides = [1, 1]} : vector<9x256xf32> to vector<1x256xf32>
    %42 = vector.shape_cast %41 : vector<1x256xf32> to vector<256xf32>
    %43 = vector.shape_cast %42 : vector<256xf32> to vector<1x256xf32>
    %44 = vector.broadcast %43 : vector<1x256xf32> to vector<16x256xf32>
    %45 = arith.mulf %40, %44 : vector<16x256xf32>
    %46 = arith.addf %39, %45 : vector<16x256xf32>
    %47 = vector.extract_strided_slice %30 {offsets = [1, 0], sizes = [16, 256], strides = [1, 1]} : vector<20x256xf32> to vector<16x256xf32>
    %48 = vector.extract_strided_slice %5 {offsets = [2, 0], sizes = [1, 256], strides = [1, 1]} : vector<9x256xf32> to vector<1x256xf32>
    %49 = vector.shape_cast %48 : vector<1x256xf32> to vector<256xf32>
    %50 = vector.shape_cast %49 : vector<256xf32> to vector<1x256xf32>
    %51 = vector.broadcast %50 : vector<1x256xf32> to vector<16x256xf32>
    %52 = arith.mulf %47, %51 : vector<16x256xf32>
    %53 = arith.addf %46, %52 : vector<16x256xf32>
    %54 = vector.extract_strided_slice %27 {offsets = [2, 0], sizes = [16, 256], strides = [1, 1]} : vector<20x256xf32> to vector<16x256xf32>
    %55 = vector.extract_strided_slice %5 {offsets = [3, 0], sizes = [1, 256], strides = [1, 1]} : vector<9x256xf32> to vector<1x256xf32>
    %56 = vector.shape_cast %55 : vector<1x256xf32> to vector<256xf32>
    %57 = vector.shape_cast %56 : vector<256xf32> to vector<1x256xf32>
    %58 = vector.broadcast %57 : vector<1x256xf32> to vector<16x256xf32>
    %59 = arith.mulf %54, %58 : vector<16x256xf32>
    %60 = arith.addf %53, %59 : vector<16x256xf32>
    %61 = vector.extract_strided_slice %21 {offsets = [2, 0], sizes = [16, 256], strides = [1, 1]} : vector<20x256xf32> to vector<16x256xf32>
    %62 = vector.extract_strided_slice %5 {offsets = [4, 0], sizes = [1, 256], strides = [1, 1]} : vector<9x256xf32> to vector<1x256xf32>
    %63 = vector.shape_cast %62 : vector<1x256xf32> to vector<256xf32>
    %64 = vector.shape_cast %63 : vector<256xf32> to vector<1x256xf32>
    %65 = vector.broadcast %64 : vector<1x256xf32> to vector<16x256xf32>
    %66 = arith.mulf %61, %65 : vector<16x256xf32>
    %67 = arith.addf %60, %66 : vector<16x256xf32>
    %68 = vector.extract_strided_slice %30 {offsets = [2, 0], sizes = [16, 256], strides = [1, 1]} : vector<20x256xf32> to vector<16x256xf32>
    %69 = vector.extract_strided_slice %5 {offsets = [5, 0], sizes = [1, 256], strides = [1, 1]} : vector<9x256xf32> to vector<1x256xf32>
    %70 = vector.shape_cast %69 : vector<1x256xf32> to vector<256xf32>
    %71 = vector.shape_cast %70 : vector<256xf32> to vector<1x256xf32>
    %72 = vector.broadcast %71 : vector<1x256xf32> to vector<16x256xf32>
    %73 = arith.mulf %68, %72 : vector<16x256xf32>
    %74 = arith.addf %67, %73 : vector<16x256xf32>
    %75 = vector.extract_strided_slice %27 {offsets = [3, 0], sizes = [16, 256], strides = [1, 1]} : vector<20x256xf32> to vector<16x256xf32>
    %76 = vector.extract_strided_slice %5 {offsets = [6, 0], sizes = [1, 256], strides = [1, 1]} : vector<9x256xf32> to vector<1x256xf32>
    %77 = vector.shape_cast %76 : vector<1x256xf32> to vector<256xf32>
    %78 = vector.shape_cast %77 : vector<256xf32> to vector<1x256xf32>
    %79 = vector.broadcast %78 : vector<1x256xf32> to vector<16x256xf32>
    %80 = arith.mulf %75, %79 : vector<16x256xf32>
    %81 = arith.addf %74, %80 : vector<16x256xf32>
    %82 = vector.extract_strided_slice %21 {offsets = [3, 0], sizes = [16, 256], strides = [1, 1]} : vector<20x256xf32> to vector<16x256xf32>
    %83 = vector.extract_strided_slice %5 {offsets = [7, 0], sizes = [1, 256], strides = [1, 1]} : vector<9x256xf32> to vector<1x256xf32>
    %84 = vector.shape_cast %83 : vector<1x256xf32> to vector<256xf32>
    %85 = vector.shape_cast %84 : vector<256xf32> to vector<1x256xf32>
    %86 = vector.broadcast %85 : vector<1x256xf32> to vector<16x256xf32>
    %87 = arith.mulf %82, %86 : vector<16x256xf32>
    %88 = arith.addf %81, %87 : vector<16x256xf32>
    %89 = vector.extract_strided_slice %30 {offsets = [3, 0], sizes = [16, 256], strides = [1, 1]} : vector<20x256xf32> to vector<16x256xf32>
    %90 = vector.extract_strided_slice %5 {offsets = [8, 0], sizes = [1, 256], strides = [1, 1]} : vector<9x256xf32> to vector<1x256xf32>
    %91 = vector.shape_cast %90 : vector<1x256xf32> to vector<256xf32>
    %92 = vector.shape_cast %91 : vector<256xf32> to vector<1x256xf32>
    %93 = vector.broadcast %92 : vector<1x256xf32> to vector<16x256xf32>
    %94 = arith.mulf %89, %93 : vector<16x256xf32>
    %95 = arith.addf %88, %94 : vector<16x256xf32>
    %96 = vector.extract_strided_slice %24 {offsets = [0, 0], sizes = [16, 256], strides = [1, 1]} : vector<20x256xf32> to vector<16x256xf32>
    %97 = vector.extract_strided_slice %6 {offsets = [0, 0], sizes = [1, 256], strides = [1, 1]} : vector<9x256xf32> to vector<1x256xf32>
    %98 = vector.shape_cast %97 : vector<1x256xf32> to vector<256xf32>
    %99 = vector.shape_cast %98 : vector<256xf32> to vector<1x256xf32>
    %100 = vector.broadcast %99 : vector<1x256xf32> to vector<16x256xf32>
    %101 = arith.mulf %96, %100 : vector<16x256xf32>
    %102 = vector.extract_strided_slice %21 {offsets = [0, 0], sizes = [16, 256], strides = [1, 1]} : vector<20x256xf32> to vector<16x256xf32>
    %103 = vector.extract_strided_slice %6 {offsets = [1, 0], sizes = [1, 256], strides = [1, 1]} : vector<9x256xf32> to vector<1x256xf32>
    %104 = vector.shape_cast %103 : vector<1x256xf32> to vector<256xf32>
    %105 = vector.shape_cast %104 : vector<256xf32> to vector<1x256xf32>
    %106 = vector.broadcast %105 : vector<1x256xf32> to vector<16x256xf32>
    %107 = arith.mulf %102, %106 : vector<16x256xf32>
    %108 = arith.addf %101, %107 : vector<16x256xf32>
    %109 = vector.extract_strided_slice %33 {offsets = [0, 0], sizes = [16, 256], strides = [1, 1]} : vector<20x256xf32> to vector<16x256xf32>
    %110 = vector.extract_strided_slice %6 {offsets = [2, 0], sizes = [1, 256], strides = [1, 1]} : vector<9x256xf32> to vector<1x256xf32>
    %111 = vector.shape_cast %110 : vector<1x256xf32> to vector<256xf32>
    %112 = vector.shape_cast %111 : vector<256xf32> to vector<1x256xf32>
    %113 = vector.broadcast %112 : vector<1x256xf32> to vector<16x256xf32>
    %114 = arith.mulf %109, %113 : vector<16x256xf32>
    %115 = arith.addf %108, %114 : vector<16x256xf32>
    %116 = vector.extract_strided_slice %24 {offsets = [2, 0], sizes = [16, 256], strides = [1, 1]} : vector<20x256xf32> to vector<16x256xf32>
    %117 = vector.extract_strided_slice %6 {offsets = [3, 0], sizes = [1, 256], strides = [1, 1]} : vector<9x256xf32> to vector<1x256xf32>
    %118 = vector.shape_cast %117 : vector<1x256xf32> to vector<256xf32>
    %119 = vector.shape_cast %118 : vector<256xf32> to vector<1x256xf32>
    %120 = vector.broadcast %119 : vector<1x256xf32> to vector<16x256xf32>
    %121 = arith.mulf %116, %120 : vector<16x256xf32>
    %122 = arith.addf %115, %121 : vector<16x256xf32>
    %123 = vector.extract_strided_slice %21 {offsets = [2, 0], sizes = [16, 256], strides = [1, 1]} : vector<20x256xf32> to vector<16x256xf32>
    %124 = vector.extract_strided_slice %6 {offsets = [4, 0], sizes = [1, 256], strides = [1, 1]} : vector<9x256xf32> to vector<1x256xf32>
    %125 = vector.shape_cast %124 : vector<1x256xf32> to vector<256xf32>
    %126 = vector.shape_cast %125 : vector<256xf32> to vector<1x256xf32>
    %127 = vector.broadcast %126 : vector<1x256xf32> to vector<16x256xf32>
    %128 = arith.mulf %123, %127 : vector<16x256xf32>
    %129 = arith.addf %122, %128 : vector<16x256xf32>
    %130 = vector.extract_strided_slice %33 {offsets = [2, 0], sizes = [16, 256], strides = [1, 1]} : vector<20x256xf32> to vector<16x256xf32>
    %131 = vector.extract_strided_slice %6 {offsets = [5, 0], sizes = [1, 256], strides = [1, 1]} : vector<9x256xf32> to vector<1x256xf32>
    %132 = vector.shape_cast %131 : vector<1x256xf32> to vector<256xf32>
    %133 = vector.shape_cast %132 : vector<256xf32> to vector<1x256xf32>
    %134 = vector.broadcast %133 : vector<1x256xf32> to vector<16x256xf32>
    %135 = arith.mulf %130, %134 : vector<16x256xf32>
    %136 = arith.addf %129, %135 : vector<16x256xf32>
    %137 = vector.extract_strided_slice %24 {offsets = [4, 0], sizes = [16, 256], strides = [1, 1]} : vector<20x256xf32> to vector<16x256xf32>
    %138 = vector.extract_strided_slice %6 {offsets = [6, 0], sizes = [1, 256], strides = [1, 1]} : vector<9x256xf32> to vector<1x256xf32>
    %139 = vector.shape_cast %138 : vector<1x256xf32> to vector<256xf32>
    %140 = vector.shape_cast %139 : vector<256xf32> to vector<1x256xf32>
    %141 = vector.broadcast %140 : vector<1x256xf32> to vector<16x256xf32>
    %142 = arith.mulf %137, %141 : vector<16x256xf32>
    %143 = arith.addf %136, %142 : vector<16x256xf32>
    %144 = vector.extract_strided_slice %21 {offsets = [4, 0], sizes = [16, 256], strides = [1, 1]} : vector<20x256xf32> to vector<16x256xf32>
    %145 = vector.extract_strided_slice %6 {offsets = [7, 0], sizes = [1, 256], strides = [1, 1]} : vector<9x256xf32> to vector<1x256xf32>
    %146 = vector.shape_cast %145 : vector<1x256xf32> to vector<256xf32>
    %147 = vector.shape_cast %146 : vector<256xf32> to vector<1x256xf32>
    %148 = vector.broadcast %147 : vector<1x256xf32> to vector<16x256xf32>
    %149 = arith.mulf %144, %148 : vector<16x256xf32>
    %150 = arith.addf %143, %149 : vector<16x256xf32>
    %151 = vector.extract_strided_slice %33 {offsets = [4, 0], sizes = [16, 256], strides = [1, 1]} : vector<20x256xf32> to vector<16x256xf32>
    %152 = vector.extract_strided_slice %6 {offsets = [8, 0], sizes = [1, 256], strides = [1, 1]} : vector<9x256xf32> to vector<1x256xf32>
    %153 = vector.shape_cast %152 : vector<1x256xf32> to vector<256xf32>
    %154 = vector.shape_cast %153 : vector<256xf32> to vector<1x256xf32>
    %155 = vector.broadcast %154 : vector<1x256xf32> to vector<16x256xf32>
    %156 = arith.mulf %151, %155 : vector<16x256xf32>
    %157 = arith.addf %150, %156 : vector<16x256xf32>
    %c0_20 = arith.constant 0 : index
    %c0_21 = arith.constant 0 : index
    %158 = vector.load %arg7[%c0_20, %c0_21] : memref<1x256xf32, #tpu.memory_space<vmem>>, vector<1x256xf32>
    %159 = vector.broadcast %158 : vector<1x256xf32> to vector<16x256xf32>
    %160 = arith.mulf %95, %159 : vector<16x256xf32>
    %c0_22 = arith.constant 0 : index
    %c0_23 = arith.constant 0 : index
    %161 = vector.load %arg8[%c0_22, %c0_23] : memref<1x256xf32, #tpu.memory_space<vmem>>, vector<1x256xf32>
    %162 = vector.broadcast %161 : vector<1x256xf32> to vector<16x256xf32>
    %163 = arith.addf %160, %162 : vector<16x256xf32>
    %cst_24 = arith.constant 0.000000e+00 : f32
    %164 = vector.broadcast %cst_24 : f32 to vector<16x256xf32>
    %165 = arith.subf %164, %163 : vector<16x256xf32>
    %166 = math.exp %165 : vector<16x256xf32>
    %cst_25 = arith.constant 1.000000e+00 : f32
    %167 = vector.broadcast %cst_25 : f32 to vector<16x256xf32>
    %168 = arith.addf %167, %166 : vector<16x256xf32>
    %cst_26 = arith.constant 1.000000e+00 : f32
    %169 = vector.broadcast %cst_26 : f32 to vector<16x256xf32>
    %170 = arith.divf %169, %168 : vector<16x256xf32>
    %171 = arith.mulf %163, %170 : vector<16x256xf32>
    %c0_27 = arith.constant 0 : index
    %c0_28 = arith.constant 0 : index
    %172 = vector.load %arg9[%c0_27, %c0_28] : memref<1x256xf32, #tpu.memory_space<vmem>>, vector<1x256xf32>
    %173 = vector.broadcast %172 : vector<1x256xf32> to vector<16x256xf32>
    %174 = arith.mulf %157, %173 : vector<16x256xf32>
    %c0_29 = arith.constant 0 : index
    %c0_30 = arith.constant 0 : index
    %175 = vector.load %arg10[%c0_29, %c0_30] : memref<1x256xf32, #tpu.memory_space<vmem>>, vector<1x256xf32>
    %176 = vector.broadcast %175 : vector<1x256xf32> to vector<16x256xf32>
    %177 = arith.addf %174, %176 : vector<16x256xf32>
    %cst_31 = arith.constant 0.000000e+00 : f32
    %178 = vector.broadcast %cst_31 : f32 to vector<16x256xf32>
    %179 = arith.subf %178, %177 : vector<16x256xf32>
    %180 = math.exp %179 : vector<16x256xf32>
    %cst_32 = arith.constant 1.000000e+00 : f32
    %181 = vector.broadcast %cst_32 : f32 to vector<16x256xf32>
    %182 = arith.addf %181, %180 : vector<16x256xf32>
    %cst_33 = arith.constant 1.000000e+00 : f32
    %183 = vector.broadcast %cst_33 : f32 to vector<16x256xf32>
    %184 = arith.divf %183, %182 : vector<16x256xf32>
    %185 = arith.mulf %177, %184 : vector<16x256xf32>
    %186 = arith.addf %171, %185 : vector<16x256xf32>
    %c0_34 = arith.constant 0 : index
    %c0_35 = arith.constant 0 : index
    %c0_36 = arith.constant 0 : index
    %187 = vector.load %arg11[%c0_34, %c0_35, %c0_36] : memref<1x16x256xf32, #tpu.memory_space<vmem>>, vector<1x16x256xf32>
    %188 = vector.shape_cast %187 : vector<1x16x256xf32> to vector<16x256xf32>
    %189 = vector.shape_cast %186 : vector<16x256xf32> to vector<1x16x256xf32>
    tpu.vector_store %arg11[%c0_34, %c0_35, %c0_36], %189 {strides = array<i32>} : memref<1x16x256xf32, #tpu.memory_space<vmem>>, vector<1x16x256xf32>,
    return
  }
  func.func @transform_0(%arg0: i32) -> (i32, i32, i32) {
    %c0_i32 = arith.constant 0 : i32
    %c0_i32_0 = arith.constant 0 : i32
    %c0_i32_1 = arith.constant 0 : i32
    return %arg0, %c0_i32, %c0_i32_0 : i32, i32, i32
  }
  func.func @transform_1(%arg0: i32) -> (i32, i32) {
    %c0_i32 = arith.constant 0 : i32
    %c0_i32_0 = arith.constant 0 : i32
    %c0_i32_1 = arith.constant 0 : i32
    return %c0_i32, %c0_i32_0 : i32, i32
  }
  func.func @transform_2(%arg0: i32) -> (i32, i32) {
    %c0_i32 = arith.constant 0 : i32
    %c0_i32_0 = arith.constant 0 : i32
    %c0_i32_1 = arith.constant 0 : i32
    return %c0_i32, %c0_i32_0 : i32, i32
  }
  func.func @transform_3(%arg0: i32) -> (i32, i32) {
    %c0_i32 = arith.constant 0 : i32
    %c0_i32_0 = arith.constant 0 : i32
    %c0_i32_1 = arith.constant 0 : i32
    return %c0_i32, %c0_i32_0 : i32, i32
  }
  func.func @transform_4(%arg0: i32) -> (i32, i32) {
    %c0_i32 = arith.constant 0 : i32
    %c0_i32_0 = arith.constant 0 : i32
    %c0_i32_1 = arith.constant 0 : i32
    return %c0_i32, %c0_i32_0 : i32, i32
  }
  func.func @transform_5(%arg0: i32) -> (i32, i32) {
    %c0_i32 = arith.constant 0 : i32
    %c0_i32_0 = arith.constant 0 : i32
    %c0_i32_1 = arith.constant 0 : i32
    return %c0_i32, %c0_i32_0 : i32, i32
  }
  func.func @transform_6(%arg0: i32) -> (i32, i32) {
    %c0_i32 = arith.constant 0 : i32
    %c0_i32_0 = arith.constant 0 : i32
    %c0_i32_1 = arith.constant 0 : i32
    return %c0_i32, %c0_i32_0 : i32, i32
  }
  func.func @transform_7(%arg0: i32) -> (i32, i32) {
    %c0_i32 = arith.constant 0 : i32
    %c0_i32_0 = arith.constant 0 : i32
    %c0_i32_1 = arith.constant 0 : i32
    return %c0_i32, %c0_i32_0 : i32, i32
  }
  func.func @transform_8(%arg0: i32) -> (i32, i32) {
    %c0_i32 = arith.constant 0 : i32
    %c0_i32_0 = arith.constant 0 : i32
    %c0_i32_1 = arith.constant 0 : i32
    return %c0_i32, %c0_i32_0 : i32, i32
  }
  func.func @transform_9(%arg0: i32) -> (i32, i32) {
    %c0_i32 = arith.constant 0 : i32
    %c0_i32_0 = arith.constant 0 : i32
    %c0_i32_1 = arith.constant 0 : i32
    return %c0_i32, %c0_i32_0 : i32, i32
  }
  func.func @transform_10(%arg0: i32) -> (i32, i32, i32) {
    %c0_i32 = arith.constant 0 : i32
    %c0_i32_0 = arith.constant 0 : i32
    %c0_i32_1 = arith.constant 0 : i32
    return %arg0, %c0_i32, %c0_i32_0 : i32, i32, i32
  }
}

</mosaic_0001>

<llo_original>
// kernel: tile.73
$region0: #{tile.73}
  #allocation0 [shape = 's32[1]{0}', space=sflag, size = 0x4, scoped, tag = 'scoped memory for tile.73']
  %s0 = inlined_call_operand.vmem [shape: f32[16], index: 0, kind: input, shape index: {}]
  %s1 = inlined_call_operand.vmem [shape: f32[16,16], index: 1, kind: output, shape index: {}]
  // Predicated region
  $region2: #{tile.73} parent=0 // pred_check
    _
  $region3: #{tile.73} parent=0 // pred_check_branch
    %3 = sbr.rel (0) target = $region5
  $region4: #{tile.73} parent=0 // pred_region
    _
  $region5: #{tile.73} parent=0 // pred_fallthru
    _
  %v4 = vld [vmem:[%s0] ss:$0 sm:$0xff]
  %5 = vst [vmem:[%s1] sm:$0xff] %v4
  %s6 = scalar_lea.vmem %s1, 8
  %7 = vst [vmem:[%s6] sm:$0xff] %v4

// kernel: tile.74
$region0: #{tile.74}
  %s0 = inlined_call_operand.vmem [shape: f32[16,16], index: 0, kind: input, shape index: {}]
  %s1 = inlined_call_operand.vmem [shape: f32[1,256], index: 1, kind: output, shape index: {}]
  $region1: #{tile.74} parent=0
    #allocation0 [shape = 'u8[8192]{0}', space=vmem, size = 0x2000, scoped, tag = 'scoped mem for output reshape']
    %s2 = smov 3
    %v3 = vld [vmem:[%s0] ss:$8 sm:%s2]
    %vm4 = vcmask 130048
    %5 = vst.msk [vmem:[#allocation0] ss:$8 sm:$0x3] %vm4, %v3
    %s6 = scalar_lea.vmem %s0, 7
    %s7 = smov 3
    %v8 = vld [vmem:[%s6] ss:$8 sm:%s7]
    %9 = vrot.lane.b32.xlu0 %v8, 112
    %v10 = vpop.permute.xlu0 %9
    %vm11 = vcmask 1048448
    %12 = vst.msk [vmem:[#allocation0] ss:$8 sm:$0x3] %vm11, %v10
    %s13 = scalar_lea.vmem %s0, 6
    %s14 = smov 3
    %v15 = vld [vmem:[%s13] ss:$8 sm:%s14]
    %16 = vrot.lane.b32.xlu0 %v15, 96
    %v17 = vpop.permute.xlu0 %16
    %vm18 = vcmask 917248
    %19 = vst.msk [vmem:[#allocation0] ss:$8 sm:$0x3] %vm18, %v17
    %s20 = scalar_lea.vmem %s0, 5
    %s21 = smov 3
    %v22 = vld [vmem:[%s20] ss:$8 sm:%s21]
    %23 = vrot.lane.b32.xlu0 %v22, 80
    %v24 = vpop.permute.xlu0 %23
    %vm25 = vcmask 786048
    %26 = vst.msk [vmem:[#allocation0] ss:$8 sm:$0x3] %vm25, %v24
    %s27 = scalar_lea.vmem %s0, 4
    %s28 = smov 3
    %v29 = vld [vmem:[%s27] ss:$8 sm:%s28]
    %30 = vrot.lane.b32.xlu0 %v29, 64
    %v31 = vpop.permute.xlu0 %30
    %vm32 = vcmask 654848
    %33 = vst.msk [vmem:[#allocation0] ss:$8 sm:$0x3] %vm32, %v31
    %s34 = scalar_lea.vmem %s0, 3
    %s35 = smov 3
    %v36 = vld [vmem:[%s34] ss:$8 sm:%s35]
    %37 = vrot.lane.b32.xlu0 %v36, 48
    %v38 = vpop.permute.xlu0 %37
    %vm39 = vcmask 523648
    %40 = vst.msk [vmem:[#allocation0] ss:$8 sm:$0x3] %vm39, %v38
    %s41 = scalar_lea.vmem %s0, 2
    %s42 = smov 3
    %v43 = vld [vmem:[%s41] ss:$8 sm:%s42]
    %44 = vrot.lane.b32.xlu0 %v43, 32
    %v45 = vpop.permute.xlu0 %44
    %vm46 = vcmask 392448
    %47 = vst.msk [vmem:[#allocation0] ss:$8 sm:$0x3] %vm46, %v45
    %s48 = scalar_lea.vmem %s0, 1
    %s49 = smov 3
    %v50 = vld [vmem:[%s48] ss:$8 sm:%s49]
    %51 = vrot.lane.b32.xlu0 %v50, 16
    %v52 = vpop.permute.xlu0 %51
    %vm53 = vcmask 261248
    %54 = vst.msk [vmem:[#allocation0] ss:$8 sm:$0x3] %vm53, %v52
    %s56 = sshllo.u32 0, 1
    %v58 = vld [vmem:[#allocation0] sm:%s56]
    %s59 = sshllo.u32 0, 1
    %60 = vst [vmem:[%s1] sm:%s59] %v58
    %s61 = scalar_lea.vmem [#allocation0], 8
    %v62 = vld [vmem:[%s61] sm:%s56]
    %s63 = sshllo.u32 0, 1
    %s64 = scalar_lea.vmem %s1, 1
    %65 = vst [vmem:[%s64] sm:%s63] %v62

// kernel: squeeze.8
$region0: #{squeeze.8}
  %s0 = inlined_call_operand.vmem [shape: f32[16,3,3], index: 0, kind: input, shape index: {}]
  %s1 = inlined_call_operand.vmem [shape: f32[16,9], index: 1, kind: output, shape index: {}]
  $region1: #{squeeze.8} parent=0
    #allocation0 [shape = 'u8[12288]{0}', space=vmem, size = 0x3000, scoped, tag = 'scoped mem for input reshape']
    %s3 = sshllo.u32 0, 4
    %s4 = smul.addr 4, 2
    %s5 = scalar_lea.vmem %s0, %s4
    %v6 = vld [vmem:[%s5] sm:%s3]
    %s7 = scalar_lea.vmem [#allocation0], 16
    %8 = vst [vmem:[%s7] sm:%s3] %v6
    %s9 = scalar_lea.vmem %s0, 4
    %v10 = vld [vmem:[%s9] sm:%s3]
    %s11 = scalar_lea.vmem [#allocation0], 8
    %12 = vst [vmem:[%s11] sm:%s3] %v10
    %v13 = vld [vmem:[%s0] sm:%s3]
    %14 = vst [vmem:[#allocation0] sm:%s3] %v13
    %v15 = vld [vmem:[#allocation0] sm:$0x7]
    %vm16 = vcmask 130048
    %17 = vst.msk [vmem:[%s1] sm:$0x7] %vm16, %v15
    %s18 = scalar_lea.vmem [#allocation0], 8
    %v19 = vld [vmem:[%s18] sm:$0x7]
    %vm20 = vcmask 130048
    %s21 = scalar_lea.vmem %s1, 3
    %22 = vst.msk [vmem:[%s21] sm:$0x7] %vm20, %v19
    %s23 = scalar_lea.vmem [#allocation0], 16
    %v24 = vld [vmem:[%s23] sm:$0x7]
    %vm25 = vcmask 130048
    %s26 = scalar_lea.vmem %s1, 6
    %27 = vst.msk [vmem:[%s26] sm:$0x7] %vm25, %v24

// kernel: tile.54
$region0: #{tile.54}
  %s0 = inlined_call_operand.vmem [shape: f32[9,16,16], index: 0, kind: input, shape index: {}]
  %s1 = inlined_call_operand.vmem [shape: f32[9,256], index: 1, kind: output, shape index: {}]
  %v2 = vld [vmem:[%s0] ss:$8 sm:$0xf]
  %v3 = vld [vmem:[%s0] ss:$8 sm:$0xf0]
  %vm4 = vcmask 1047556
  %v5 = vsel %vm4, %v3, %v2
  %vm6 = vcmask 130048
  %7 = vst.msk [vmem:[%s1] ss:$8 sm:$0x3] %vm6, %v5
  %s8 = scalar_lea.vmem %s1, 4294967281
  %9 = vst.msk [vmem:[%s8] ss:$8 sm:$0xc] %vm6, %v5
  %s10 = scalar_lea.vmem %s1, 4294967266
  %11 = vst.msk [vmem:[%s10] ss:$8 sm:$0x30] %vm6, %v5
  %s12 = scalar_lea.vmem %s1, 4294967251
  %13 = vst.msk [vmem:[%s12] ss:$8 sm:$0xc0] %vm6, %v5
  %s14 = scalar_lea.vmem %s0, 64
  %v15 = vld [vmem:[%s14] ss:$8 sm:$0xf]
  %s16 = scalar_lea.vmem %s0, 64
  %v17 = vld [vmem:[%s16] ss:$8 sm:$0xf0]
  %vm18 = vcmask 1047556
  %v19 = vsel %vm18, %v17, %v15
  %vm20 = vcmask 130048
  %s21 = scalar_lea.vmem %s1, 4
  %22 = vst.msk [vmem:[%s21] ss:$8 sm:$0x3] %vm20, %v19
  %s23 = scalar_lea.vmem %s1, 4294967285
  %24 = vst.msk [vmem:[%s23] ss:$8 sm:$0xc] %vm20, %v19
  %s25 = scalar_lea.vmem %s1, 4294967270
  %26 = vst.msk [vmem:[%s25] ss:$8 sm:$0x30] %vm20, %v19
  %s27 = scalar_lea.vmem %s1, 4294967255
  %28 = vst.msk [vmem:[%s27] ss:$8 sm:$0xc0] %vm20, %v19
  %s29 = scalar_lea.vmem %s0, 128
  %s30 = smov 3
  %v31 = vld [vmem:[%s29] ss:$8 sm:%s30]
  %vm32 = vcmask 130048
  %s33 = scalar_lea.vmem %s1, 16
  %34 = vst.msk [vmem:[%s33] ss:$8 sm:$0x3] %vm32, %v31
  %s35 = scalar_lea.vmem %s0, 7
  %s36 = smov 3
  %v37 = vld [vmem:[%s35] ss:$16 sm:%s36]
  %s38 = scalar_lea.vmem %s0, 7
  %s39 = smov 12
  %v40 = vld [vmem:[%s38] ss:$16 sm:%s39]
  %vm41 = vcmask 1043458
  %v42 = vsel %vm41, %v40, %v37
  %s43 = scalar_lea.vmem %s0, 7
  %s44 = smov 48
  %v45 = vld [vmem:[%s43] ss:$16 sm:%s44]
  %vm46 = vcmask 1045508
  %v47 = vsel %vm46, %v45, %v42
  %s48 = scalar_lea.vmem %s0, 7
  %s49 = smov 192
  %v50 = vld [vmem:[%s48] ss:$16 sm:%s49]
  %vm51 = vcmask 1047558
  %v52 = vsel %vm51, %v50, %v47
  %53 = vrot.lane.b32.xlu0 %v52, 112
  %v54 = vpop.permute.xlu0 %53
  %vm55 = vcmask 1048448
  %56 = vst.msk [vmem:[%s1] sm:$0xff] %vm55, %v54
  %s57 = scalar_lea.vmem %s0, 15
  %s58 = smov 3
  %v59 = vld [vmem:[%s57] ss:$16 sm:%s58]
  %s60 = scalar_lea.vmem %s0, 15
  %s61 = smov 12
  %v62 = vld [vmem:[%s60] ss:$16 sm:%s61]
  %vm63 = vcmask 1043458
  %v64 = vsel %vm63, %v62, %v59
  %s65 = scalar_lea.vmem %s0, 15
  %s66 = smov 48
  %v67 = vld [vmem:[%s65] ss:$16 sm:%s66]
  %vm68 = vcmask 1045508
  %v69 = vsel %vm68, %v67, %v64
  %s70 = scalar_lea.vmem %s0, 15
  %s71 = smov 192
  %v72 = vld [vmem:[%s70] ss:$16 sm:%s71]
  %vm73 = vcmask 1047558
  %v74 = vsel %vm73, %v72, %v69
  %75 = vrot.lane.b32.xlu0 %v74, 112
  %v76 = vpop.permute.xlu0 %75
  %vm77 = vcmask 1048448
  %s78 = scalar_lea.vmem %s1, 8
  %79 = vst.msk [vmem:[%s78] sm:$0xff] %vm77, %v76
  %s80 = scalar_lea.vmem %s0, 135
  %s81 = smov 3
  %v82 = vld [vmem:[%s80] ss:$8 sm:%s81]
  %83 = vrot.lane.b32.xlu0 %v82, 112
  %v84 = vpop.permute.xlu0 %83
  %vm85 = vcmask 1048448
  %s86 = scalar_lea.vmem %s1, 16
  %87 = vst.msk [vmem:[%s86] ss:$8 sm:$0x3] %vm85, %v84
  %s88 = scalar_lea.vmem %s0, 6
  %s89 = smov 3
  %v90 = vld [vmem:[%s88] ss:$16 sm:%s89]
  %s91 = scalar_lea.vmem %s0, 6
  %s92 = smov 12
  %v93 = vld [vmem:[%s91] ss:$16 sm:%s92]
  %vm94 = vcmask 1043458
  %v95 = vsel %vm94, %v93, %v90
  %s96 = scalar_lea.vmem %s0, 6
  %s97 = smov 48
  %v98 = vld [vmem:[%s96] ss:$16 sm:%s97]
  %vm99 = vcmask 1045508
  %v100 = vsel %vm99, %v98, %v95
  %s101 = scalar_lea.vmem %s0, 6
  %s102 = smov 192
  %v103 = vld [vmem:[%s101] ss:$16 sm:%s102]
  %vm104 = vcmask 1047558
  %v105 = vsel %vm104, %v103, %v100
  %106 = vrot.lane.b32.xlu0 %v105, 96
  %v107 = vpop.permute.xlu0 %106
  %vm108 = vcmask 917248
  %109 = vst.msk [vmem:[%s1] sm:$0xff] %vm108, %v107
  %s110 = scalar_lea.vmem %s0, 14
  %s111 = smov 3
  %v112 = vld [vmem:[%s110] ss:$16 sm:%s111]
  %s113 = scalar_lea.vmem %s0, 14
  %s114 = smov 12
  %v115 = vld [vmem:[%s113] ss:$16 sm:%s114]
  %vm116 = vcmask 1043458
  %v117 = vsel %vm116, %v115, %v112
  %s118 = scalar_lea.vmem %s0, 14
  %s119 = smov 48
  %v120 = vld [vmem:[%s118] ss:$16 sm:%s119]
  %vm121 = vcmask 1045508
  %v122 = vsel %vm121, %v120, %v117
  %s123 = scalar_lea.vmem %s0, 14
  %s124 = smov 192
  %v125 = vld [vmem:[%s123] ss:$16 sm:%s124]
  %vm126 = vcmask 1047558
  %v127 = vsel %vm126, %v125, %v122
  %128 = vrot.lane.b32.xlu0 %v127, 96
  %v129 = vpop.permute.xlu0 %128
  %vm130 = vcmask 917248
  %s131 = scalar_lea.vmem %s1, 8
  %132 = vst.msk [vmem:[%s131] sm:$0xff] %vm130, %v129
  %s133 = scalar_lea.vmem %s0, 134
  %s134 = smov 3
  %v135 = vld [vmem:[%s133] ss:$8 sm:%s134]
  %136 = vrot.lane.b32.xlu0 %v135, 96
  %v137 = vpop.permute.xlu0 %136
  %vm138 = vcmask 917248
  %s139 = scalar_lea.vmem %s1, 16
  %140 = vst.msk [vmem:[%s139] ss:$8 sm:$0x3] %vm138, %v137
  %s141 = scalar_lea.vmem %s0, 5
  %s142 = smov 3
  %v143 = vld [vmem:[%s141] ss:$16 sm:%s142]
  %s144 = scalar_lea.vmem %s0, 5
  %s145 = smov 12
  %v146 = vld [vmem:[%s144] ss:$16 sm:%s145]
  %vm147 = vcmask 1043458
  %v148 = vsel %vm147, %v146, %v143
  %s149 = scalar_lea.vmem %s0, 5
  %s150 = smov 48
  %v151 = vld [vmem:[%s149] ss:$16 sm:%s150]
  %vm152 = vcmask 1045508
  %v153 = vsel %vm152, %v151, %v148
  %s154 = scalar_lea.vmem %s0, 5
  %s155 = smov 192
  %v156 = vld [vmem:[%s154] ss:$16 sm:%s155]
  %vm157 = vcmask 1047558
  %v158 = vsel %vm157, %v156, %v153
  %159 = vrot.lane.b32.xlu0 %v158, 80
  %v160 = vpop.permute.xlu0 %159
  %vm161 = vcmask 786048
  %162 = vst.msk [vmem:[%s1] sm:$0xff] %vm161, %v160
  %s163 = scalar_lea.vmem %s0, 13
  %s164 = smov 3
  %v165 = vld [vmem:[%s163] ss:$16 sm:%s164]
  %s166 = scalar_lea.vmem %s0, 13
  %s167 = smov 12
  %v168 = vld [vmem:[%s166] ss:$16 sm:%s167]
  %vm169 = vcmask 1043458
  %v170 = vsel %vm169, %v168, %v165
  %s171 = scalar_lea.vmem %s0, 13
  %s172 = smov 48
  %v173 = vld [vmem:[%s171] ss:$16 sm:%s172]
  %vm174 = vcmask 1045508
  %v175 = vsel %vm174, %v173, %v170
  %s176 = scalar_lea.vmem %s0, 13
  %s177 = smov 192
  %v178 = vld [vmem:[%s176] ss:$16 sm:%s177]
  %vm179 = vcmask 1047558
  %v180 = vsel %vm179, %v178, %v175
  %181 = vrot.lane.b32.xlu0 %v180, 80
  %v182 = vpop.permute.xlu0 %181
  %vm183 = vcmask 786048
  %s184 = scalar_lea.vmem %s1, 8
  %185 = vst.msk [vmem:[%s184] sm:$0xff] %vm183, %v182
  %s186 = scalar_lea.vmem %s0, 133
  %s187 = smov 3
  %v188 = vld [vmem:[%s186] ss:$8 sm:%s187]
  %189 = vrot.lane.b32.xlu0 %v188, 80
  %v190 = vpop.permute.xlu0 %189
  %vm191 = vcmask 786048
  %s192 = scalar_lea.vmem %s1, 16
  %193 = vst.msk [vmem:[%s192] ss:$8 sm:$0x3] %vm191, %v190
  %s194 = scalar_lea.vmem %s0, 4
  %s195 = smov 3
  %v196 = vld [vmem:[%s194] ss:$16 sm:%s195]
  %s197 = scalar_lea.vmem %s0, 4
  %s198 = smov 12
  %v199 = vld [vmem:[%s197] ss:$16 sm:%s198]
  %vm200 = vcmask 1043458
  %v201 = vsel %vm200, %v199, %v196
  %s202 = scalar_lea.vmem %s0, 4
  %s203 = smov 48
  %v204 = vld [vmem:[%s202] ss:$16 sm:%s203]
  %vm205 = vcmask 1045508
  %v206 = vsel %vm205, %v204, %v201
  %s207 = scalar_lea.vmem %s0, 4
  %s208 = smov 192
  %v209 = vld [vmem:[%s207] ss:$16 sm:%s208]
  %vm210 = vcmask 1047558
  %v211 = vsel %vm210, %v209, %v206
  %212 = vrot.lane.b32.xlu0 %v211, 64
  %v213 = vpop.permute.xlu0 %212
  %vm214 = vcmask 654848
  %215 = vst.msk [vmem:[%s1] sm:$0xff] %vm214, %v213
  %s216 = scalar_lea.vmem %s0, 12
  %s217 = smov 3
  %v218 = vld [vmem:[%s216] ss:$16 sm:%s217]
  %s219 = scalar_lea.vmem %s0, 12
  %s220 = smov 12
  %v221 = vld [vmem:[%s219] ss:$16 sm:%s220]
  %vm222 = vcmask 1043458
  %v223 = vsel %vm222, %v221, %v218
  %s224 = scalar_lea.vmem %s0, 12
  %s225 = smov 48
  %v226 = vld [vmem:[%s224] ss:$16 sm:%s225]
  %vm227 = vcmask 1045508
  %v228 = vsel %vm227, %v226, %v223
  %s229 = scalar_lea.vmem %s0, 12
  %s230 = smov 192
  %v231 = vld [vmem:[%s229] ss:$16 sm:%s230]
  %vm232 = vcmask 1047558
  %v233 = vsel %vm232, %v231, %v228
  %234 = vrot.lane.b32.xlu0 %v233, 64
  %v235 = vpop.permute.xlu0 %234
  %vm236 = vcmask 654848
  %s237 = scalar_lea.vmem %s1, 8
  %238 = vst.msk [vmem:[%s237] sm:$0xff] %vm236, %v235
  %s239 = scalar_lea.vmem %s0, 132
  %s240 = smov 3
  %v241 = vld [vmem:[%s239] ss:$8 sm:%s240]
  %242 = vrot.lane.b32.xlu0 %v241, 64
  %v243 = vpop.permute.xlu0 %242
  %vm244 = vcmask 654848
  %s245 = scalar_lea.vmem %s1, 16
  %246 = vst.msk [vmem:[%s245] ss:$8 sm:$0x3] %vm244, %v243
  %s247 = scalar_lea.vmem %s0, 3
  %s248 = smov 3
  %v249 = vld [vmem:[%s247] ss:$16 sm:%s248]
  %s250 = scalar_lea.vmem %s0, 3
  %s251 = smov 12
  %v252 = vld [vmem:[%s250] ss:$16 sm:%s251]
  %vm253 = vcmask 1043458
  %v254 = vsel %vm253, %v252, %v249
  %s255 = scalar_lea.vmem %s0, 3
  %s256 = smov 48
  %v257 = vld [vmem:[%s255] ss:$16 sm:%s256]
  %vm258 = vcmask 1045508
  %v259 = vsel %vm258, %v257, %v254
  %s260 = scalar_lea.vmem %s0, 3
  %s261 = smov 192
  %v262 = vld [vmem:[%s260] ss:$16 sm:%s261]
  %vm263 = vcmask 1047558
  %v264 = vsel %vm263, %v262, %v259
  %265 = vrot.lane.b32.xlu0 %v264, 48
  %v266 = vpop.permute.xlu0 %265
  %vm267 = vcmask 523648
  %268 = vst.msk [vmem:[%s1] sm:$0xff] %vm267, %v266
  %s269 = scalar_lea.vmem %s0, 11
  %s270 = smov 3
  %v271 = vld [vmem:[%s269] ss:$16 sm:%s270]
  %s272 = scalar_lea.vmem %s0, 11
  %s273 = smov 12
  %v274 = vld [vmem:[%s272] ss:$16 sm:%s273]
  %vm275 = vcmask 1043458
  %v276 = vsel %vm275, %v274, %v271
  %s277 = scalar_lea.vmem %s0, 11
  %s278 = smov 48
  %v279 = vld [vmem:[%s277] ss:$16 sm:%s278]
  %vm280 = vcmask 1045508
  %v281 = vsel %vm280, %v279, %v276
  %s282 = scalar_lea.vmem %s0, 11
  %s283 = smov 192
  %v284 = vld [vmem:[%s282] ss:$16 sm:%s283]
  %vm285 = vcmask 1047558
  %v286 = vsel %vm285, %v284, %v281
  %287 = vrot.lane.b32.xlu0 %v286, 48
  %v288 = vpop.permute.xlu0 %287
  %vm289 = vcmask 523648
  %s290 = scalar_lea.vmem %s1, 8
  %291 = vst.msk [vmem:[%s290] sm:$0xff] %vm289, %v288
  %s292 = scalar_lea.vmem %s0, 131
  %s293 = smov 3
  %v294 = vld [vmem:[%s292] ss:$8 sm:%s293]
  %295 = vrot.lane.b32.xlu0 %v294, 48
  %v296 = vpop.permute.xlu0 %295
  %vm297 = vcmask 523648
  %s298 = scalar_lea.vmem %s1, 16
  %299 = vst.msk [vmem:[%s298] ss:$8 sm:$0x3] %vm297, %v296
  %s300 = scalar_lea.vmem %s0, 2
  %s301 = smov 3
  %v302 = vld [vmem:[%s300] ss:$16 sm:%s301]
  %s303 = scalar_lea.vmem %s0, 2
  %s304 = smov 12
  %v305 = vld [vmem:[%s303] ss:$16 sm:%s304]
  %vm306 = vcmask 1043458
  %v307 = vsel %vm306, %v305, %v302
  %s308 = scalar_lea.vmem %s0, 2
  %s309 = smov 48
  %v310 = vld [vmem:[%s308] ss:$16 sm:%s309]
  %vm311 = vcmask 1045508
  %v312 = vsel %vm311, %v310, %v307
  %s313 = scalar_lea.vmem %s0, 2
  %s314 = smov 192
  %v315 = vld [vmem:[%s313] ss:$16 sm:%s314]
  %vm316 = vcmask 1047558
  %v317 = vsel %vm316, %v315, %v312
  %318 = vrot.lane.b32.xlu0 %v317, 32
  %v319 = vpop.permute.xlu0 %318
  %vm320 = vcmask 392448
  %321 = vst.msk [vmem:[%s1] sm:$0xff] %vm320, %v319
  %s322 = scalar_lea.vmem %s0, 10
  %s323 = smov 3
  %v324 = vld [vmem:[%s322] ss:$16 sm:%s323]
  %s325 = scalar_lea.vmem %s0, 10
  %s326 = smov 12
  %v327 = vld [vmem:[%s325] ss:$16 sm:%s326]
  %vm328 = vcmask 1043458
  %v329 = vsel %vm328, %v327, %v324
  %s330 = scalar_lea.vmem %s0, 10
  %s331 = smov 48
  %v332 = vld [vmem:[%s330] ss:$16 sm:%s331]
  %vm333 = vcmask 1045508
  %v334 = vsel %vm333, %v332, %v329
  %s335 = scalar_lea.vmem %s0, 10
  %s336 = smov 192
  %v337 = vld [vmem:[%s335] ss:$16 sm:%s336]
  %vm338 = vcmask 1047558
  %v339 = vsel %vm338, %v337, %v334
  %340 = vrot.lane.b32.xlu0 %v339, 32
  %v341 = vpop.permute.xlu0 %340
  %vm342 = vcmask 392448
  %s343 = scalar_lea.vmem %s1, 8
  %344 = vst.msk [vmem:[%s343] sm:$0xff] %vm342, %v341
  %s345 = scalar_lea.vmem %s0, 130
  %s346 = smov 3
  %v347 = vld [vmem:[%s345] ss:$8 sm:%s346]
  %348 = vrot.lane.b32.xlu0 %v347, 32
  %v349 = vpop.permute.xlu0 %348
  %vm350 = vcmask 392448
  %s351 = scalar_lea.vmem %s1, 16
  %352 = vst.msk [vmem:[%s351] ss:$8 sm:$0x3] %vm350, %v349
  %s353 = scalar_lea.vmem %s0, 1
  %s354 = smov 3
  %v355 = vld [vmem:[%s353] ss:$16 sm:%s354]
  %s356 = scalar_lea.vmem %s0, 1
  %s357 = smov 12
  %v358 = vld [vmem:[%s356] ss:$16 sm:%s357]
  %vm359 = vcmask 1043458
  %v360 = vsel %vm359, %v358, %v355
  %s361 = scalar_lea.vmem %s0, 1
  %s362 = smov 48
  %v363 = vld [vmem:[%s361] ss:$16 sm:%s362]
  %vm364 = vcmask 1045508
  %v365 = vsel %vm364, %v363, %v360
  %s366 = scalar_lea.vmem %s0, 1
  %s367 = smov 192
  %v368 = vld [vmem:[%s366] ss:$16 sm:%s367]
  %vm369 = vcmask 1047558
  %v370 = vsel %vm369, %v368, %v365
  %371 = vrot.lane.b32.xlu0 %v370, 16
  %v372 = vpop.permute.xlu0 %371
  %vm373 = vcmask 261248
  %374 = vst.msk [vmem:[%s1] sm:$0xff] %vm373, %v372
  %s375 = scalar_lea.vmem %s0, 9
  %s376 = smov 3
  %v377 = vld [vmem:[%s375] ss:$16 sm:%s376]
  %s378 = scalar_lea.vmem %s0, 9
  %s379 = smov 12
  %v380 = vld [vmem:[%s378] ss:$16 sm:%s379]
  %vm381 = vcmask 1043458
  %v382 = vsel %vm381, %v380, %v377
  %s383 = scalar_lea.vmem %s0, 9
  %s384 = smov 48
  %v385 = vld [vmem:[%s383] ss:$16 sm:%s384]
  %vm386 = vcmask 1045508
  %v387 = vsel %vm386, %v385, %v382
  %s388 = scalar_lea.vmem %s0, 9
  %s389 = smov 192
  %v390 = vld [vmem:[%s388] ss:$16 sm:%s389]
  %vm391 = vcmask 1047558
  %v392 = vsel %vm391, %v390, %v387
  %393 = vrot.lane.b32.xlu0 %v392, 16
  %v394 = vpop.permute.xlu0 %393
  %vm395 = vcmask 261248
  %s396 = scalar_lea.vmem %s1, 8
  %397 = vst.msk [vmem:[%s396] sm:$0xff] %vm395, %v394
  %s398 = scalar_lea.vmem %s0, 129
  %s399 = smov 3
  %v400 = vld [vmem:[%s398] ss:$8 sm:%s399]
  %401 = vrot.lane.b32.xlu0 %v400, 16
  %v402 = vpop.permute.xlu0 %401
  %vm403 = vcmask 261248
  %s404 = scalar_lea.vmem %s1, 16
  %405 = vst.msk [vmem:[%s404] ss:$8 sm:$0x3] %vm403, %v402

// kernel: pyramid_feature_block.2
$region0: #{pyramid_feature_block.2}
  #allocation0 [shape = 'u32[]', space=smem, size = 0x4, offset = 0x4, fixed_abs, tag = 'smem constant byte address 0x4 - core index']
  #allocation1 [shape = 'u32[144,128]{1,0:T(1,128)}', space=vmem, size = 0x12000, scoped, tag = 'internal scratch']
  %s0 = inlined_call_operand.vmem [shape: f32[2,16,64], index: 0, kind: input, shape index: {}]
  %s1 = inlined_call_operand.vmem [shape: f32[64,256], index: 1, kind: input, shape index: {}]
  %s2 = inlined_call_operand.vmem [shape: f32[1,256], index: 2, kind: input, shape index: {}]
  %s3 = inlined_call_operand.vmem [shape: f32[1,256], index: 3, kind: input, shape index: {}]
  %s4 = inlined_call_operand.vmem [shape: f32[9,256], index: 4, kind: input, shape index: {}]
  %s5 = inlined_call_operand.vmem [shape: f32[9,256], index: 5, kind: input, shape index: {}]
  %s6 = inlined_call_operand.vmem [shape: f32[2,4,256], index: 6, kind: output, shape index: {}]
  %s7 = sld [smem:[#allocation0]]
  $region57: #{pyramid_feature_block.2} parent=0
    _
  %s9 = ssub.s32 1, %s7
  %s10 = scalar_select 0, %s9, %s7
  loop: start=0, step=1, limit=4
  $region2: #{pyramid_feature_block.2} parent=0 // loop_pre_header
    _
  $region3: #{pyramid_feature_block.2} parent=0 // loop_header
    %s12 = sphi 0, %s16
    %p13 = scmp.ge.s32.totalorder %s12, 4
    %s22 = sphi 0, %s24
    %s25 = sphi 0, %s22
    %s26 = sphi 0, %s25
    %s42 = sphi 0, %s26
    %s46 = sphi 0, %s46
    %s48 = sphi 0, %s46
    %s49 = sphi 0, %s48
    %s63 = sphi 0, %s49
    %s67 = sphi 0, %s67
    %s69 = sphi 0, %s67
    %s70 = sphi 0, %s69
    %s84 = sphi 0, %s70
    %s88 = sphi 0, %s88
    %s90 = sphi 0, %s88
    %s91 = sphi 0, %s90
    %s105 = sphi 0, %s91
    %s109 = sphi 0, %s109
    %s111 = sphi 0, %s109
    %s112 = sphi 0, %s111
    %s126 = sphi 0, %s112
    %s130 = sphi 0, %s130
    %s132 = sphi 0, %s130
    %s133 = sphi 0, %s132
    %s147 = sphi 0, %s133
    %s153 = sphi 0, %s155
    %s156 = sphi 0, %s153
    %s157 = sphi 0, %s156
    %s173 = sphi 0, %s157
  $region4: #{pyramid_feature_block.2} parent=0 // loop_header_branch
    %15 = sbr.rel (%p13) target = $region8
  $region5: #{pyramid_feature_block.2} parent=0 // loop_body
    %s17 = ssub.s32 %s12, 1
    %s18 = ssub.s32 %s12, 2
    %s19 = sadd.s32 %s12, 1
    %s20 = ssub.s32 %s12, %s19
    %p21 = scmp.eq.s32.totalorder %s20, 0
    %s23 = sadd.s32 %s22, 1
    %s24 = scalar_select %p21, %s22, %s23
    %p27 = pneg %p21
    %p28 = scmp.eq.s32.totalorder %s12, 1
    %p29 = por %p27, %p28
    %p30 = scmp.ne.s32.totalorder %s22, %s25
    %p31 = scmp.eq.s32.totalorder %s12, 0
    %p32 = por %p30, %p31
    %p33 = scmp.ne.s32.totalorder %s22, %s25
    %p34 = scmp.eq.s32.totalorder %s17, 1
    %p35 = por %p33, %p34
    %p36 = scmp.ne.s32.totalorder %s25, %s26
    %p37 = scmp.eq.s32.totalorder %s17, 0
    %p38 = por %p36, %p37
    %p39 = scmp.ne.s32.totalorder %s25, %s26
    %p40 = scmp.eq.s32.totalorder %s18, 1
    %p41 = por %p39, %p40
    %p43 = scmp.ne.s32.totalorder %s26, %s42
    %p44 = scmp.eq.s32.totalorder %s18, 0
    %p45 = por %p43, %p44
    %s47 = sadd.s32 %s46, 1
    %p50 = scmp.eq.s32.totalorder %s12, 1
    %p51 = scmp.ne.s32.totalorder %s46, %s48
    %p52 = scmp.eq.s32.totalorder %s12, 0
    %p53 = por %p51, %p52
    %p54 = scmp.ne.s32.totalorder %s46, %s48
    %p55 = scmp.eq.s32.totalorder %s17, 1
    %p56 = por %p54, %p55
    %p57 = scmp.ne.s32.totalorder %s48, %s49
    %p58 = scmp.eq.s32.totalorder %s17, 0
    %p59 = por %p57, %p58
    %p60 = scmp.ne.s32.totalorder %s48, %s49
    %p61 = scmp.eq.s32.totalorder %s18, 1
    %p62 = por %p60, %p61
    %p64 = scmp.ne.s32.totalorder %s49, %s63
    %p65 = scmp.eq.s32.totalorder %s18, 0
    %p66 = por %p64, %p65
    %s68 = sadd.s32 %s67, 1
    %p71 = scmp.eq.s32.totalorder %s12, 1
    %p72 = scmp.ne.s32.totalorder %s67, %s69
    %p73 = scmp.eq.s32.totalorder %s12, 0
    %p74 = por %p72, %p73
    %p75 = scmp.ne.s32.totalorder %s67, %s69
    %p76 = scmp.eq.s32.totalorder %s17, 1
    %p77 = por %p75, %p76
    %p78 = scmp.ne.s32.totalorder %s69, %s70
    %p79 = scmp.eq.s32.totalorder %s17, 0
    %p80 = por %p78, %p79
    %p81 = scmp.ne.s32.totalorder %s69, %s70
    %p82 = scmp.eq.s32.totalorder %s18, 1
    %p83 = por %p81, %p82
    %p85 = scmp.ne.s32.totalorder %s70, %s84
    %p86 = scmp.eq.s32.totalorder %s18, 0
    %p87 = por %p85, %p86
    %s89 = sadd.s32 %s88, 1
    %p92 = scmp.eq.s32.totalorder %s12, 1
    %p93 = scmp.ne.s32.totalorder %s88, %s90
    %p94 = scmp.eq.s32.totalorder %s12, 0
    %p95 = por %p93, %p94
    %p96 = scmp.ne.s32.totalorder %s88, %s90
    %p97 = scmp.eq.s32.totalorder %s17, 1
    %p98 = por %p96, %p97
    %p99 = scmp.ne.s32.totalorder %s90, %s91
    %p100 = scmp.eq.s32.totalorder %s17, 0
    %p101 = por %p99, %p100
    %p102 = scmp.ne.s32.totalorder %s90, %s91
    %p103 = scmp.eq.s32.totalorder %s18, 1
    %p104 = por %p102, %p103
    %p106 = scmp.ne.s32.totalorder %s91, %s105
    %p107 = scmp.eq.s32.totalorder %s18, 0
    %p108 = por %p106, %p107
    %s110 = sadd.s32 %s109, 1
    %p113 = scmp.eq.s32.totalorder %s12, 1
    %p114 = scmp.ne.s32.totalorder %s109, %s111
    %p115 = scmp.eq.s32.totalorder %s12, 0
    %p116 = por %p114, %p115
    %p117 = scmp.ne.s32.totalorder %s109, %s111
    %p118 = scmp.eq.s32.totalorder %s17, 1
    %p119 = por %p117, %p118
    %p120 = scmp.ne.s32.totalorder %s111, %s112
    %p121 = scmp.eq.s32.totalorder %s17, 0
    %p122 = por %p120, %p121
    %p123 = scmp.ne.s32.totalorder %s111, %s112
    %p124 = scmp.eq.s32.totalorder %s18, 1
    %p125 = por %p123, %p124
    %p127 = scmp.ne.s32.totalorder %s112, %s126
    %p128 = scmp.eq.s32.totalorder %s18, 0
    %p129 = por %p127, %p128
    %s131 = sadd.s32 %s130, 1
    %p134 = scmp.eq.s32.totalorder %s12, 1
    %p135 = scmp.ne.s32.totalorder %s130, %s132
    %p136 = scmp.eq.s32.totalorder %s12, 0
    %p137 = por %p135, %p136
    %p138 = scmp.ne.s32.totalorder %s130, %s132
    %p139 = scmp.eq.s32.totalorder %s17, 1
    %p140 = por %p138, %p139
    %p141 = scmp.ne.s32.totalorder %s132, %s133
    %p142 = scmp.eq.s32.totalorder %s17, 0
    %p143 = por %p141, %p142
    %p144 = scmp.ne.s32.totalorder %s132, %s133
    %p145 = scmp.eq.s32.totalorder %s18, 1
    %p146 = por %p144, %p145
    %p148 = scmp.ne.s32.totalorder %s133, %s147
    %p149 = scmp.eq.s32.totalorder %s18, 0
    %p150 = por %p148, %p149
    %s151 = ssub.s32 %s12, %s19
    %p152 = scmp.eq.s32.totalorder %s151, 0
    %s154 = sadd.s32 %s153, 1
    %s155 = scalar_select %p152, %s153, %s154
    %p158 = pneg %p152
    %p159 = scmp.eq.s32.totalorder %s12, 1
    %p160 = por %p158, %p159
    %p161 = scmp.ne.s32.totalorder %s153, %s156
    %p162 = scmp.eq.s32.totalorder %s12, 0
    %p163 = por %p161, %p162
    %p164 = scmp.ne.s32.totalorder %s153, %s156
    %p165 = scmp.eq.s32.totalorder %s17, 1
    %p166 = por %p164, %p165
    %p167 = scmp.ne.s32.totalorder %s156, %s157
    %p168 = scmp.eq.s32.totalorder %s17, 0
    %p169 = por %p167, %p168
    %p170 = scmp.ne.s32.totalorder %s156, %s157
    %p171 = scmp.eq.s32.totalorder %s18, 1
    %p172 = por %p170, %p171
    %p174 = scmp.ne.s32.totalorder %s157, %s173
    %p175 = scmp.eq.s32.totalorder %s18, 0
    %p176 = por %p174, %p175
    %p177 = scmp.le.s32.totalorder 1, %s12
    %p178 = scmp.lt.s32.totalorder %s12, 3
    %p179 = pnand %p177, %p178
    %p180 = pneg %p179
    // Predicated region
    $region9: #{pyramid_feature_block.2} parent=5 // pred_check
      _
    $region10: #{pyramid_feature_block.2} parent=5 // pred_check_branch
      %182 = sbr.rel (%p179) target = $region12
    $region11: #{pyramid_feature_block.2} parent=5 // pred_region
      %s183 = ssub.s32 %s12, 1
      // Predicated region
      $region13: #{pyramid_feature_block.2} parent=11 // pred_check
        %p184 = pneg %p59
      $region14: #{pyramid_feature_block.2} parent=11 // pred_check_branch
        %186 = sbr.rel (%p184) target = $region16
      $region15: #{pyramid_feature_block.2} parent=11 // pred_region
        _
      $region16: #{pyramid_feature_block.2} parent=11 // pred_fallthru
        _
      // Predicated region
      $region17: #{pyramid_feature_block.2} parent=11 // pred_check
        %p187 = pneg %p80
      $region18: #{pyramid_feature_block.2} parent=11 // pred_check_branch
        %189 = sbr.rel (%p187) target = $region20
      $region19: #{pyramid_feature_block.2} parent=11 // pred_region
        _
      $region20: #{pyramid_feature_block.2} parent=11 // pred_fallthru
        _
      // Predicated region
      $region21: #{pyramid_feature_block.2} parent=11 // pred_check
        %p190 = pneg %p101
      $region22: #{pyramid_feature_block.2} parent=11 // pred_check_branch
        %192 = sbr.rel (%p190) target = $region24
      $region23: #{pyramid_feature_block.2} parent=11 // pred_region
        _
      $region24: #{pyramid_feature_block.2} parent=11 // pred_fallthru
        _
      // Predicated region
      $region25: #{pyramid_feature_block.2} parent=11 // pred_check
        %p193 = pneg %p122
      $region26: #{pyramid_feature_block.2} parent=11 // pred_check_branch
        %195 = sbr.rel (%p193) target = $region28
      $region27: #{pyramid_feature_block.2} parent=11 // pred_region
        _
      $region28: #{pyramid_feature_block.2} parent=11 // pred_fallthru
        _
      // Predicated region
      $region29: #{pyramid_feature_block.2} parent=11 // pred_check
        %p196 = pneg %p143
      $region30: #{pyramid_feature_block.2} parent=11 // pred_check_branch
        %198 = sbr.rel (%p196) target = $region32
      $region31: #{pyramid_feature_block.2} parent=11 // pred_region
        _
      $region32: #{pyramid_feature_block.2} parent=11 // pred_fallthru
        _
    $region12: #{pyramid_feature_block.2} parent=5 // pred_fallthru
      _
    %p199 = scmp.lt.s32.totalorder %s12, 2
    // Predicated region
    $region33: #{pyramid_feature_block.2} parent=5 // pred_check
      %p200 = pneg %p199
    $region34: #{pyramid_feature_block.2} parent=5 // pred_check_branch
      %202 = sbr.rel (%p200) target = $region36
    $region35: #{pyramid_feature_block.2} parent=5 // pred_region
      // Predicated region
      $region37: #{pyramid_feature_block.2} parent=35 // pred_check
        %p203 = pneg %p32
      $region38: #{pyramid_feature_block.2} parent=35 // pred_check_branch
        %205 = sbr.rel (%p203) target = $region40
      $region39: #{pyramid_feature_block.2} parent=35 // pred_region
        %p206 = scmp.lt.s32.totalorder %s12, 1
        %s207 = scalar_select %p206, %s12, 1
        %s208 = smul.addr %s207, 2
        %s209 = smul.addr %s208, 8
        %s210 = scalar_lea.vmem %s0, %s209
      $region40: #{pyramid_feature_block.2} parent=35 // pred_fallthru
        _
    $region36: #{pyramid_feature_block.2} parent=5 // pred_fallthru
      _
    %p211 = scmp.le.s32.totalorder 1, %s12
    %p212 = scmp.lt.s32.totalorder %s12, 3
    %p213 = pnand %p211, %p212
    %p214 = pneg %p213
    // Predicated region
    $region41: #{pyramid_feature_block.2} parent=5 // pred_check
      _
    $region42: #{pyramid_feature_block.2} parent=5 // pred_check_branch
      %216 = sbr.rel (%p213) target = $region44
    $region43: #{pyramid_feature_block.2} parent=5 // pred_region
      %s217 = ssub.s32 %s12, 1
      %p218 = scmp.lt.s32.totalorder %s17, 1
      %s219 = scalar_select %p218, %s17, 1
      %s220 = smul.addr %s219, 2
      %s221 = smul.addr %s220, 8
      %s222 = scalar_lea.vmem %s0, %s221
      %p223 = pneg %p38
      %p224 = pneg %p35
      %p225 = pneg %p59
      %p226 = pneg %p56
      %p227 = pneg %p80
      %p228 = pneg %p77
      %p229 = pneg %p101
      %p230 = pneg %p98
      %p231 = pneg %p122
      %p232 = pneg %p119
      %p233 = pneg %p143
      %p234 = pneg %p140
      %p235 = pneg %p169
      %p236 = pneg %p166
      %p237 = scmp.lt.s32.totalorder %s17, 1
      %s238 = scalar_select %p237, %s17, 1
      %s239 = smul.addr %s238, 2
      %s240 = smul.addr %s239, 4
      %s241 = scalar_lea.vmem %s6, %s240
      %p242 = scmp.lt.s32.totalorder %s17, 1
      %s243 = scalar_select %p242, %s17, 1
      %s244 = smul.addr %s243, 2
      %s245 = smul.addr %s244, 8
      %s246 = scalar_lea.vmem %s0, %s245
      %p247 = scmp.lt.s32.totalorder %s17, 1
      %s248 = scalar_select %p247, %s17, 1
      %s249 = smul.addr %s248, 2
      %s250 = smul.addr %s249, 4
      %s251 = scalar_lea.vmem %s6, %s250
      %v252 = vld [vmem:[%s246] sm:$0xff]
      %v253 = vld [vmem:[%s246 + $0x8] sm:$0xff]
      %v254 = vld [vmem:[%s1] sm:$0xff]
      %v255 = vld [vmem:[%s1 + $0x8] sm:$0xff]
      %v256 = vld [vmem:[%s1 + $0x10] sm:$0xff]
      %v257 = vld [vmem:[%s1 + $0x18] sm:$0xff]
      %v258 = vld [vmem:[%s1 + $0x20] sm:$0xff]
      %v259 = vld [vmem:[%s1 + $0x28] sm:$0xff]
      %v260 = vld [vmem:[%s1 + $0x30] sm:$0xff]
      %v261 = vld [vmem:[%s1 + $0x38] sm:$0xff]
      %v262 = vld [vmem:[%s1 + $0x40] sm:$0xff]
      %v263 = vld [vmem:[%s1 + $0x48] sm:$0xff]
      %v264 = vld [vmem:[%s1 + $0x50] sm:$0xff]
      %v265 = vld [vmem:[%s1 + $0x58] sm:$0xff]
      %v266 = vld [vmem:[%s1 + $0x60] sm:$0xff]
      %v267 = vld [vmem:[%s1 + $0x68] sm:$0xff]
      %v268 = vld [vmem:[%s1 + $0x70] sm:$0xff]
      %v269 = vld [vmem:[%s1 + $0x78] sm:$0xff]
      %v270 = vld [vmem:[%s2] sm:$0x3]
      %v271 = vld [vmem:[%s3] sm:$0x3]
      %v272 = vld [vmem:[%s4] sm:$0xff]
      %v273 = vld [vmem:[%s4 + $0x8] sm:$0xff]
      %v274 = vld [vmem:[%s4 + $0x10] sm:$0x1]
      %v275 = vld [vmem:[%s4 + $0x18] sm:$0x1]
      %v276 = vld [vmem:[%s5] sm:$0xff]
      %v277 = vld [vmem:[%s5 + $0x8] sm:$0xff]
      %v278 = vld [vmem:[%s5 + $0x10] sm:$0x1]
      %v279 = vld [vmem:[%s5 + $0x18] sm:$0x1]
      %vm280 = vcmask 523264
      %v282 = vsel %vm280, %v252, 0
      %v285 = vsel %vm280, %v253, 0
      %287 = vmatprep.subr.mxu0 %v255
      %288 = vmatpush1.msra.mxu0 %v254
      %289 = vmatprep.subr.mxu0 %v257
      %290 = vmatpush1.msra.mxu0 %v256
      %291 = vmatprep.subr.mxu0 %v259
      %292 = vmatpush1.msra.mxu0 %v258
      %293 = vmatprep.subr.mxu0 %v261
      %294 = vmatpush1.msra.mxu0 %v260
      %295 = vmatprep.subr.mxu0 %v263
      %296 = vmatpush1.msra.mxu0 %v262
      %297 = vmatprep.subr.mxu0 %v265
      %298 = vmatpush1.msra.mxu0 %v264
      %299 = vmatprep.subr.mxu0 %v267
      %300 = vmatpush1.msra.mxu0 %v266
      %301 = vmatprep.subr.mxu0 %v269
      %302 = vmatpush1.msra.mxu0 %v268
      %303 = vmatprep.subr.mxu0 0.0
      %304 = vmatpush1.msra.mxu0 0.0
      %305 = vmatprep.subr.mxu0 0.0
      %306 = vmatpush1.msra.mxu0 0.0
      %307 = vmatprep.subr.mxu0 0.0
      %308 = vmatpush1.msra.mxu0 0.0
      %309 = vmatprep.subr.mxu0 0.0
      %310 = vmatpush1.msra.mxu0 0.0
      %311 = vmatprep.subr.mxu0 0.0
      %312 = vmatpush1.msra.mxu0 0.0
      %313 = vmatprep.subr.mxu0 0.0
      %314 = vmatpush1.msra.mxu0 0.0
      %315 = vmatprep.subr.mxu0 0.0
      %316 = vmatpush1.msra.mxu0 0.0
      %317 = vmatprep.subr.mxu0 0.0
      %318 = vmatpush1.msra.mxu0 0.0
      %319 = vmatprep.subr.mxu0 0.0
      %320 = vmatpush1.msra.mxu0 0.0
      %321 = vmatprep.subr.mxu0 0.0
      %322 = vmatpush1.msra.mxu0 0.0
      %323 = vmatprep.subr.mxu0 0.0
      %324 = vmatpush1.msra.mxu0 0.0
      %325 = vmatprep.subr.mxu0 0.0
      %326 = vmatpush1.msra.mxu0 0.0
      %327 = vmatprep.subr.mxu0 0.0
      %328 = vmatpush1.msra.mxu0 0.0
      %329 = vmatprep.subr.mxu0 0.0
      %330 = vmatpush1.msra.mxu0 0.0
      %331 = vmatprep.subr.mxu0 0.0
      %332 = vmatpush1.msra.mxu0 0.0
      %333 = vmatprep.subr.mxu0 0.0
      %334 = vmatpush1.msra.mxu0 0.0
      %335 = vmatprep.subr.mxu0 0.0
      %336 = vmatpush1.msra.mxu0 0.0
      %337 = vmatprep.subr.mxu0 0.0
      %338 = vmatpush1.msra.mxu0 0.0
      %339 = vmatprep.subr.mxu0 0.0
      %340 = vmatpush1.msra.mxu0 0.0
      %341 = vmatprep.subr.mxu0 0.0
      %342 = vmatpush1.msra.mxu0 0.0
      %343 = vmatprep.subr.mxu0 0.0
      %344 = vmatpush1.msra.mxu0 0.0
      %345 = vmatprep.subr.mxu0 0.0
      %346 = vmatpush1.msra.mxu0 0.0
      %347 = vmatprep.subr.mxu0 0.0
      %348 = vmatpush1.msra.mxu0 0.0
      %349 = vmatprep.subr.mxu0 0.0
      %350 = vmatpush1.msra.mxu0 0.0
      %351 = vmatprep.mubr.f32.mxu0 0.0
      %352 = vmatmul.mubr.f32.gmra.mrb[0].mxu0 %v282
      %v353 = vpop.f32.mrb[0].mxu0
      %v354 = vadd.f32 0.0, %v353
      %v355 = vpop.f32.mrb[0].mxu0
      %v356 = vadd.f32 0.0, %v355
      %357 = vmatprep.mubr.f32.mxu0 0.0
      %358 = vmatmul.mubr.f32.gmra.mrb[0].mxu0 %v285
      %v359 = vpop.f32.mrb[0].mxu0
      %v360 = vadd.f32 0.0, %v359
      %v361 = vpop.f32.mrb[0].mxu0
      %v362 = vadd.f32 0.0, %v361
      %363 = vdwg.mxu0
      %v365 = vlaneseq
      %v366 = vshrl.u32 %v365, 7
      %v367 = vsub.s32 0, %v366
      %v368 = vrot.slane %v270, %v367
      %v369 = vlaneseq
      %v370 = vshrl.u32 %v369, 7
      %v371 = vsub.s32 1, %v370
      %v372 = vrot.slane %v270, %v371
      %v375 = vmul.f32 %v354, %v368
      %v376 = vmul.f32 %v356, %v372
      %v377 = vmul.f32 %v360, %v368
      %v378 = vmul.f32 %v362, %v372
      %v380 = vlaneseq
      %v381 = vshrl.u32 %v380, 7
      %v382 = vsub.s32 0, %v381
      %v383 = vrot.slane %v271, %v382
      %v384 = vlaneseq
      %v385 = vshrl.u32 %v384, 7
      %v386 = vsub.s32 1, %v385
      %v387 = vrot.slane %v271, %v386
      %v390 = vadd.f32 %v375, %v383
      %v391 = vadd.f32 %v376, %v387
      %v392 = vadd.f32 %v377, %v383
      %v393 = vadd.f32 %v378, %v387
      %v394 = vsub.f32 0.0, %v390
      %v395 = vsub.f32 0.0, %v391
      %v396 = vsub.f32 0.0, %v392
      %v397 = vsub.f32 0.0, %v393
      %v398 = vmul.f32 %v394, 1.442695
      %v399 = vpow.pop %v398
      %v400 = vmul.f32 %v395, 1.442695
      %v401 = vpow.pop %v400
      %v402 = vmul.f32 %v396, 1.442695
      %v403 = vpow.pop %v402
      %v404 = vmul.f32 %v397, 1.442695
      %v405 = vpow.pop %v404
      %v406 = vadd.f32 %v399, 1.0
      %v407 = vadd.f32 %v401, 1.0
      %v408 = vadd.f32 %v403, 1.0
      %v409 = vadd.f32 %v405, 1.0
      %v410 = vrcp.pop %v406
      %v411 = vmul.f32 1.0, %v410
      %v412 = vrcp.pop %v407
      %v413 = vmul.f32 1.0, %v412
      %v414 = vrcp.pop %v408
      %v415 = vmul.f32 1.0, %v414
      %v416 = vrcp.pop %v409
      %v417 = vmul.f32 1.0, %v416
      %v418 = vmul.f32 %v390, %v411
      %v419 = vmul.f32 %v391, %v413
      %v420 = vmul.f32 %v392, %v415
      %v421 = vmul.f32 %v393, %v417
      %vm426 = vcmask 1041408
      %v427 = vrot.slane %v418, 6
      %v428 = vrot.slane %v419, 6
      %v429 = vrot.slane %v420, 6
      %v430 = vsel %vm426, %v427, %v429
      %v431 = vrot.slane %v421, 6
      %v432 = vsel %vm426, %v428, %v431
      %v439 = vsel %vm426, 0.0, %v427
      %v440 = vsel %vm426, 0.0, %v428
      %v441 = vsel %vm426, %v429, 0.0
      %v442 = vsel %vm426, %v431, 0.0
      %447 = vrot.lane.b32.xlu0 %v439, 32
      %v448 = vpop.permute.xlu0 %447
      %449 = vrot.lane.b32.xlu0 %v440, 32
      %v450 = vpop.permute.xlu0 %449
      %451 = vrot.lane.b32.xlu0 %v430, 32
      %v452 = vpop.permute.xlu0 %451
      %453 = vrot.lane.b32.xlu0 %v432, 32
      %v454 = vpop.permute.xlu0 %453
      %455 = vrot.lane.b32.xlu0 %v441, 32
      %v456 = vpop.permute.xlu0 %455
      %457 = vrot.lane.b32.xlu0 %v442, 32
      %v458 = vpop.permute.xlu0 %457
      %vm459 = vcmask 261120
      %v460 = vsel %vm459, %v448, %v450
      %v461 = vsel %vm459, %v452, %v454
      %v462 = vsel %vm459, %v456, %v458
      %v469 = vsel %vm459, 0.0, %v448
      %v470 = vsel %vm459, 0.0, %v452
      %v471 = vsel %vm459, 0.0, %v456
      %472 = vrot.lane.b32.xlu0 %v439, 16
      %v473 = vpop.permute.xlu0 %472
      %474 = vrot.lane.b32.xlu0 %v440, 16
      %v475 = vpop.permute.xlu0 %474
      %476 = vrot.lane.b32.xlu0 %v430, 16
      %v477 = vpop.permute.xlu0 %476
      %478 = vrot.lane.b32.xlu0 %v432, 16
      %v479 = vpop.permute.xlu0 %478
      %480 = vrot.lane.b32.xlu0 %v441, 16
      %v481 = vpop.permute.xlu0 %480
      %482 = vrot.lane.b32.xlu0 %v442, 16
      %v483 = vpop.permute.xlu0 %482
      %vm484 = vcmask 130048
      %v485 = vsel %vm484, %v473, %v475
      %v486 = vsel %vm484, %v477, %v479
      %v487 = vsel %vm484, %v481, %v483
      %v494 = vsel %vm484, 0.0, %v473
      %v495 = vsel %vm484, 0.0, %v477
      %v496 = vsel %vm484, 0.0, %v481
      %497 = vrot.lane.b32.xlu0 %v439, 112
      %v498 = vpop.permute.xlu0 %497
      %499 = vrot.lane.b32.xlu0 %v440, 112
      %v500 = vpop.permute.xlu0 %499
      %501 = vrot.lane.b32.xlu0 %v430, 112
      %v502 = vpop.permute.xlu0 %501
      %503 = vrot.lane.b32.xlu0 %v432, 112
      %v504 = vpop.permute.xlu0 %503
      %505 = vrot.lane.b32.xlu0 %v441, 112
      %v506 = vpop.permute.xlu0 %505
      %507 = vrot.lane.b32.xlu0 %v442, 112
      %v508 = vpop.permute.xlu0 %507
      %vm509 = vcmask 916480
      %v510 = vsel %vm509, %v498, %v500
      %v511 = vsel %vm509, %v502, %v504
      %v512 = vsel %vm509, %v506, %v508
      %v519 = vsel %vm509, %v500, 0.0
      %v520 = vsel %vm509, %v504, 0.0
      %v521 = vsel %vm509, %v508, 0.0
      %522 = vrot.lane.b32.xlu0 %v439, 96
      %v523 = vpop.permute.xlu0 %522
      %524 = vrot.lane.b32.xlu0 %v440, 96
      %v525 = vpop.permute.xlu0 %524
      %526 = vrot.lane.b32.xlu0 %v430, 96
      %v527 = vpop.permute.xlu0 %526
      %528 = vrot.lane.b32.xlu0 %v432, 96
      %v529 = vpop.permute.xlu0 %528
      %530 = vrot.lane.b32.xlu0 %v441, 96
      %v531 = vpop.permute.xlu0 %530
      %532 = vrot.lane.b32.xlu0 %v442, 96
      %v533 = vpop.permute.xlu0 %532
      %vm534 = vcmask 785408
      %v535 = vsel %vm534, %v523, %v525
      %v536 = vsel %vm534, %v527, %v529
      %v537 = vsel %vm534, %v531, %v533
      %v544 = vsel %vm534, %v525, 0.0
      %v545 = vsel %vm534, %v529, 0.0
      %v546 = vsel %vm534, %v533, 0.0
      %v547 = vlaneseq
      %v548 = vshrl.u32 %v547, 7
      %v549 = vsub.s32 0, %v548
      %v550 = vrot.slane %v272, %v549
      %v551 = vlaneseq
      %v552 = vshrl.u32 %v551, 7
      %v553 = vsub.s32 0, %v552
      %v554 = vrot.slane %v273, %v553
      %v555 = vmul.f32 %v494, %v550
      %v556 = vmul.f32 %v485, %v554
      %v557 = vmul.f32 %v495, %v550
      %v558 = vmul.f32 %v486, %v554
      %v559 = vmul.f32 %v496, %v550
      %v560 = vmul.f32 %v487, %v554
      %v561 = vlaneseq
      %v562 = vshrl.u32 %v561, 7
      %v563 = vsub.s32 1, %v562
      %v564 = vrot.slane %v272, %v563
      %v565 = vlaneseq
      %v566 = vshrl.u32 %v565, 7
      %v567 = vsub.s32 1, %v566
      %v568 = vrot.slane %v273, %v567
      %v569 = vmul.f32 %v439, %v564
      %v570 = vmul.f32 %v440, %v568
      %v571 = vmul.f32 %v430, %v564
      %v572 = vmul.f32 %v432, %v568
      %v573 = vmul.f32 %v441, %v564
      %v574 = vmul.f32 %v442, %v568
      %v575 = vadd.f32 %v555, %v569
      %v576 = vadd.f32 %v556, %v570
      %v577 = vadd.f32 %v557, %v571
      %v578 = vadd.f32 %v558, %v572
      %v579 = vadd.f32 %v559, %v573
      %v580 = vadd.f32 %v560, %v574
      %v581 = vlaneseq
      %v582 = vshrl.u32 %v581, 7
      %v583 = vsub.s32 2, %v582
      %v584 = vrot.slane %v272, %v583
      %v585 = vlaneseq
      %v586 = vshrl.u32 %v585, 7
      %v587 = vsub.s32 2, %v586
      %v588 = vrot.slane %v273, %v587
      %v589 = vmul.f32 %v510, %v584
      %v590 = vmul.f32 %v519, %v588
      %v591 = vmul.f32 %v511, %v584
      %v592 = vmul.f32 %v520, %v588
      %v593 = vmul.f32 %v512, %v584
      %v594 = vmul.f32 %v521, %v588
      %v595 = vadd.f32 %v575, %v589
      %v596 = vadd.f32 %v576, %v590
      %v597 = vadd.f32 %v577, %v591
      %v598 = vadd.f32 %v578, %v592
      %v599 = vadd.f32 %v579, %v593
      %v600 = vadd.f32 %v580, %v594
      %v601 = vlaneseq
      %v602 = vshrl.u32 %v601, 7
      %v603 = vsub.s32 3, %v602
      %v604 = vrot.slane %v272, %v603
      %v605 = vlaneseq
      %v606 = vshrl.u32 %v605, 7
      %v607 = vsub.s32 3, %v606
      %v608 = vrot.slane %v273, %v607
      %v609 = vmul.f32 %v494, %v604
      %v610 = vmul.f32 %v485, %v608
      %v611 = vmul.f32 %v495, %v604
      %v612 = vmul.f32 %v486, %v608
      %v613 = vmul.f32 %v496, %v604
      %v614 = vmul.f32 %v487, %v608
      %vm621 = vcmask 1046528
      %v622 = vrot.slane %v609, 1
      %v623 = vrot.slane %v611, 1
      %v624 = vsel %vm621, %v622, %v623
      %v625 = vrot.slane %v610, 1
      %v626 = vrot.slane %v612, 1
      %v627 = vsel %vm621, %v625, %v626
      %v628 = vrot.slane %v613, 1
      %v629 = vsel %vm621, %v623, %v628
      %v630 = vrot.slane %v614, 1
      %v631 = vsel %vm621, %v626, %v630
      %v638 = vadd.f32 %v595, %v624
      %v639 = vadd.f32 %v596, %v627
      %v640 = vadd.f32 %v597, %v629
      %v641 = vadd.f32 %v598, %v631
      %v642 = vadd.f32 %v599, %v628
      %v643 = vadd.f32 %v600, %v630
      %v644 = vlaneseq
      %v645 = vshrl.u32 %v644, 7
      %v646 = vsub.s32 4, %v645
      %v647 = vrot.slane %v272, %v646
      %v648 = vlaneseq
      %v649 = vshrl.u32 %v648, 7
      %v650 = vsub.s32 4, %v649
      %v651 = vrot.slane %v273, %v650
      %v652 = vmul.f32 %v439, %v647
      %v653 = vmul.f32 %v440, %v651
      %v654 = vmul.f32 %v430, %v647
      %v655 = vmul.f32 %v432, %v651
      %v656 = vmul.f32 %v441, %v647
      %v657 = vmul.f32 %v442, %v651
      %v664 = vrot.slane %v652, 1
      %v665 = vrot.slane %v654, 1
      %v666 = vsel %vm621, %v664, %v665
      %v667 = vrot.slane %v653, 1
      %v668 = vrot.slane %v655, 1
      %v669 = vsel %vm621, %v667, %v668
      %v670 = vrot.slane %v656, 1
      %v671 = vsel %vm621, %v665, %v670
      %v672 = vrot.slane %v657, 1
      %v673 = vsel %vm621, %v668, %v672
      %v680 = vadd.f32 %v638, %v666
      %v681 = vadd.f32 %v639, %v669
      %v682 = vadd.f32 %v640, %v671
      %v683 = vadd.f32 %v641, %v673
      %v684 = vadd.f32 %v642, %v670
      %v685 = vadd.f32 %v643, %v672
      %v686 = vlaneseq
      %v687 = vshrl.u32 %v686, 7
      %v688 = vsub.s32 5, %v687
      %v689 = vrot.slane %v272, %v688
      %v690 = vlaneseq
      %v691 = vshrl.u32 %v690, 7
      %v692 = vsub.s32 5, %v691
      %v693 = vrot.slane %v273, %v692
      %v694 = vmul.f32 %v510, %v689
      %v695 = vmul.f32 %v519, %v693
      %v696 = vmul.f32 %v511, %v689
      %v697 = vmul.f32 %v520, %v693
      %v698 = vmul.f32 %v512, %v689
      %v699 = vmul.f32 %v521, %v693
      %v706 = vrot.slane %v694, 1
      %v707 = vrot.slane %v696, 1
      %v708 = vsel %vm621, %v706, %v707
      %v709 = vrot.slane %v695, 1
      %v710 = vrot.slane %v697, 1
      %v711 = vsel %vm621, %v709, %v710
      %v712 = vrot.slane %v698, 1
      %v713 = vsel %vm621, %v707, %v712
      %v714 = vrot.slane %v699, 1
      %v715 = vsel %vm621, %v710, %v714
      %v722 = vadd.f32 %v680, %v708
      %v723 = vadd.f32 %v681, %v711
      %v724 = vadd.f32 %v682, %v713
      %v725 = vadd.f32 %v683, %v715
      %v726 = vadd.f32 %v684, %v712
      %v727 = vadd.f32 %v685, %v714
      %v728 = vlaneseq
      %v729 = vshrl.u32 %v728, 7
      %v730 = vsub.s32 6, %v729
      %v731 = vrot.slane %v272, %v730
      %v732 = vlaneseq
      %v733 = vshrl.u32 %v732, 7
      %v734 = vsub.s32 6, %v733
      %v735 = vrot.slane %v273, %v734
      %v736 = vmul.f32 %v494, %v731
      %v737 = vmul.f32 %v485, %v735
      %v738 = vmul.f32 %v495, %v731
      %v739 = vmul.f32 %v486, %v735
      %v740 = vmul.f32 %v496, %v731
      %v741 = vmul.f32 %v487, %v735
      %vm748 = vcmask 1045504
      %v749 = vrot.slane %v736, 2
      %v750 = vrot.slane %v738, 2
      %v751 = vsel %vm748, %v749, %v750
      %v752 = vrot.slane %v737, 2
      %v753 = vrot.slane %v739, 2
      %v754 = vsel %vm748, %v752, %v753
      %v755 = vrot.slane %v740, 2
      %v756 = vsel %vm748, %v750, %v755
      %v757 = vrot.slane %v741, 2
      %v758 = vsel %vm748, %v753, %v757
      %v765 = vadd.f32 %v722, %v751
      %v766 = vadd.f32 %v723, %v754
      %v767 = vadd.f32 %v724, %v756
      %v768 = vadd.f32 %v725, %v758
      %v769 = vadd.f32 %v726, %v755
      %v770 = vadd.f32 %v727, %v757
      %v771 = vlaneseq
      %v772 = vshrl.u32 %v771, 7
      %v773 = vsub.s32 7, %v772
      %v774 = vrot.slane %v272, %v773
      %v775 = vlaneseq
      %v776 = vshrl.u32 %v775, 7
      %v777 = vsub.s32 7, %v776
      %v778 = vrot.slane %v273, %v777
      %v779 = vmul.f32 %v439, %v774
      %v780 = vmul.f32 %v440, %v778
      %v781 = vmul.f32 %v430, %v774
      %v782 = vmul.f32 %v432, %v778
      %v783 = vmul.f32 %v441, %v774
      %v784 = vmul.f32 %v442, %v778
      %v791 = vrot.slane %v779, 2
      %v792 = vrot.slane %v781, 2
      %v793 = vsel %vm748, %v791, %v792
      %v794 = vrot.slane %v780, 2
      %v795 = vrot.slane %v782, 2
      %v796 = vsel %vm748, %v794, %v795
      %v797 = vrot.slane %v783, 2
      %v798 = vsel %vm748, %v792, %v797
      %v799 = vrot.slane %v784, 2
      %v800 = vsel %vm748, %v795, %v799
      %v807 = vadd.f32 %v765, %v793
      %v808 = vadd.f32 %v766, %v796
      %v809 = vadd.f32 %v767, %v798
      %v810 = vadd.f32 %v768, %v800
      %v811 = vadd.f32 %v769, %v797
      %v812 = vadd.f32 %v770, %v799
      %v813 = vlaneseq
      %v814 = vshrl.u32 %v813, 7
      %v815 = vsub.s32 0, %v814
      %v816 = vrot.slane %v274, %v815
      %v817 = vlaneseq
      %v818 = vshrl.u32 %v817, 7
      %v819 = vsub.s32 0, %v818
      %v820 = vrot.slane %v275, %v819
      %v821 = vmul.f32 %v510, %v816
      %v822 = vmul.f32 %v519, %v820
      %v823 = vmul.f32 %v511, %v816
      %v824 = vmul.f32 %v520, %v820
      %v825 = vmul.f32 %v512, %v816
      %v826 = vmul.f32 %v521, %v820
      %v833 = vrot.slane %v821, 2
      %v834 = vrot.slane %v823, 2
      %v835 = vsel %vm748, %v833, %v834
      %v836 = vrot.slane %v822, 2
      %v837 = vrot.slane %v824, 2
      %v838 = vsel %vm748, %v836, %v837
      %v839 = vrot.slane %v825, 2
      %v840 = vsel %vm748, %v834, %v839
      %v841 = vrot.slane %v826, 2
      %v842 = vsel %vm748, %v837, %v841
      %v849 = vadd.f32 %v807, %v835
      %v850 = vadd.f32 %v808, %v838
      %v851 = vadd.f32 %v809, %v840
      %v852 = vadd.f32 %v810, %v842
      %v853 = vadd.f32 %v811, %v839
      %v854 = vadd.f32 %v812, %v841
      %v855 = vlaneseq
      %v856 = vshrl.u32 %v855, 7
      %v857 = vsub.s32 0, %v856
      %v858 = vrot.slane %v276, %v857
      %v859 = vlaneseq
      %v860 = vshrl.u32 %v859, 7
      %v861 = vsub.s32 0, %v860
      %v862 = vrot.slane %v277, %v861
      %v863 = vmul.f32 %v469, %v858
      %v864 = vmul.f32 %v460, %v862
      %v865 = vmul.f32 %v470, %v858
      %v866 = vmul.f32 %v461, %v862
      %v867 = vlaneseq
      %v868 = vshrl.u32 %v867, 7
      %v869 = vsub.s32 1, %v868
      %v870 = vrot.slane %v276, %v869
      %v871 = vlaneseq
      %v872 = vshrl.u32 %v871, 7
      %v873 = vsub.s32 1, %v872
      %v874 = vrot.slane %v277, %v873
      %v875 = vmul.f32 %v439, %v870
      %v876 = vmul.f32 %v440, %v874
      %v877 = vmul.f32 %v430, %v870
      %v878 = vmul.f32 %v432, %v874
      %v879 = vadd.f32 %v863, %v875
      %v880 = vadd.f32 %v864, %v876
      %v881 = vadd.f32 %v865, %v877
      %v882 = vadd.f32 %v866, %v878
      %v883 = vlaneseq
      %v884 = vshrl.u32 %v883, 7
      %v885 = vsub.s32 2, %v884
      %v886 = vrot.slane %v276, %v885
      %v887 = vlaneseq
      %v888 = vshrl.u32 %v887, 7
      %v889 = vsub.s32 2, %v888
      %v890 = vrot.slane %v277, %v889
      %v891 = vmul.f32 %v535, %v886
      %v892 = vmul.f32 %v544, %v890
      %v893 = vmul.f32 %v536, %v886
      %v894 = vmul.f32 %v545, %v890
      %v895 = vadd.f32 %v879, %v891
      %v896 = vadd.f32 %v880, %v892
      %v897 = vadd.f32 %v881, %v893
      %v898 = vadd.f32 %v882, %v894
      %v899 = vlaneseq
      %v900 = vshrl.u32 %v899, 7
      %v901 = vsub.s32 3, %v900
      %v902 = vrot.slane %v276, %v901
      %v903 = vlaneseq
      %v904 = vshrl.u32 %v903, 7
      %v905 = vsub.s32 3, %v904
      %v906 = vrot.slane %v277, %v905
      %v907 = vmul.f32 %v469, %v902
      %v908 = vmul.f32 %v460, %v906
      %v909 = vmul.f32 %v470, %v902
      %v910 = vmul.f32 %v461, %v906
      %v911 = vmul.f32 %v471, %v902
      %v912 = vmul.f32 %v462, %v906
      %v919 = vrot.slane %v907, 2
      %v920 = vrot.slane %v909, 2
      %v921 = vsel %vm748, %v919, %v920
      %v922 = vrot.slane %v908, 2
      %v923 = vrot.slane %v910, 2
      %v924 = vsel %vm748, %v922, %v923
      %v925 = vrot.slane %v911, 2
      %v926 = vsel %vm748, %v920, %v925
      %v927 = vrot.slane %v912, 2
      %v928 = vsel %vm748, %v923, %v927
      %v933 = vadd.f32 %v895, %v921
      %v934 = vadd.f32 %v896, %v924
      %v935 = vadd.f32 %v897, %v926
      %v936 = vadd.f32 %v898, %v928
      %v937 = vlaneseq
      %v938 = vshrl.u32 %v937, 7
      %v939 = vsub.s32 4, %v938
      %v940 = vrot.slane %v276, %v939
      %v941 = vlaneseq
      %v942 = vshrl.u32 %v941, 7
      %v943 = vsub.s32 4, %v942
      %v944 = vrot.slane %v277, %v943
      %v945 = vmul.f32 %v439, %v940
      %v946 = vmul.f32 %v440, %v944
      %v947 = vmul.f32 %v430, %v940
      %v948 = vmul.f32 %v432, %v944
      %v949 = vmul.f32 %v441, %v940
      %v950 = vmul.f32 %v442, %v944
      %v957 = vrot.slane %v945, 2
      %v958 = vrot.slane %v947, 2
      %v959 = vsel %vm748, %v957, %v958
      %v960 = vrot.slane %v946, 2
      %v961 = vrot.slane %v948, 2
      %v962 = vsel %vm748, %v960, %v961
      %v963 = vrot.slane %v949, 2
      %v964 = vsel %vm748, %v958, %v963
      %v965 = vrot.slane %v950, 2
      %v966 = vsel %vm748, %v961, %v965
      %v971 = vadd.f32 %v933, %v959
      %v972 = vadd.f32 %v934, %v962
      %v973 = vadd.f32 %v935, %v964
      %v974 = vadd.f32 %v936, %v966
      %v975 = vlaneseq
      %v976 = vshrl.u32 %v975, 7
      %v977 = vsub.s32 5, %v976
      %v978 = vrot.slane %v276, %v977
      %v979 = vlaneseq
      %v980 = vshrl.u32 %v979, 7
      %v981 = vsub.s32 5, %v980
      %v982 = vrot.slane %v277, %v981
      %v983 = vmul.f32 %v535, %v978
      %v984 = vmul.f32 %v544, %v982
      %v985 = vmul.f32 %v536, %v978
      %v986 = vmul.f32 %v545, %v982
      %v987 = vmul.f32 %v537, %v978
      %v988 = vmul.f32 %v546, %v982
      %v995 = vrot.slane %v983, 2
      %v996 = vrot.slane %v985, 2
      %v997 = vsel %vm748, %v995, %v996
      %v998 = vrot.slane %v984, 2
      %v999 = vrot.slane %v986, 2
      %v1000 = vsel %vm748, %v998, %v999
      %v1001 = vrot.slane %v987, 2
      %v1002 = vsel %vm748, %v996, %v1001
      %v1003 = vrot.slane %v988, 2
      %v1004 = vsel %vm748, %v999, %v1003
      %v1009 = vadd.f32 %v971, %v997
      %v1010 = vadd.f32 %v972, %v1000
      %v1011 = vadd.f32 %v973, %v1002
      %v1012 = vadd.f32 %v974, %v1004
      %v1013 = vlaneseq
      %v1014 = vshrl.u32 %v1013, 7
      %v1015 = vsub.s32 6, %v1014
      %v1016 = vrot.slane %v276, %v1015
      %v1017 = vlaneseq
      %v1018 = vshrl.u32 %v1017, 7
      %v1019 = vsub.s32 6, %v1018
      %v1020 = vrot.slane %v277, %v1019
      %v1021 = vmul.f32 %v469, %v1016
      %v1022 = vmul.f32 %v460, %v1020
      %v1023 = vmul.f32 %v470, %v1016
      %v1024 = vmul.f32 %v461, %v1020
      %v1025 = vmul.f32 %v471, %v1016
      %v1026 = vmul.f32 %v462, %v1020
      %vm1033 = vcmask 1043456
      %v1034 = vrot.slane %v1021, 4
      %v1035 = vrot.slane %v1023, 4
      %v1036 = vsel %vm1033, %v1034, %v1035
      %v1037 = vrot.slane %v1022, 4
      %v1038 = vrot.slane %v1024, 4
      %v1039 = vsel %vm1033, %v1037, %v1038
      %v1040 = vrot.slane %v1025, 4
      %v1041 = vsel %vm1033, %v1035, %v1040
      %v1042 = vrot.slane %v1026, 4
      %v1043 = vsel %vm1033, %v1038, %v1042
      %v1048 = vadd.f32 %v1009, %v1036
      %v1049 = vadd.f32 %v1010, %v1039
      %v1050 = vadd.f32 %v1011, %v1041
      %v1051 = vadd.f32 %v1012, %v1043
      %v1052 = vlaneseq
      %v1053 = vshrl.u32 %v1052, 7
      %v1054 = vsub.s32 7, %v1053
      %v1055 = vrot.slane %v276, %v1054
      %v1056 = vlaneseq
      %v1057 = vshrl.u32 %v1056, 7
      %v1058 = vsub.s32 7, %v1057
      %v1059 = vrot.slane %v277, %v1058
      %v1060 = vmul.f32 %v439, %v1055
      %v1061 = vmul.f32 %v440, %v1059
      %v1062 = vmul.f32 %v430, %v1055
      %v1063 = vmul.f32 %v432, %v1059
      %v1064 = vmul.f32 %v441, %v1055
      %v1065 = vmul.f32 %v442, %v1059
      %v1072 = vrot.slane %v1060, 4
      %v1073 = vrot.slane %v1062, 4
      %v1074 = vsel %vm1033, %v1072, %v1073
      %v1075 = vrot.slane %v1061, 4
      %v1076 = vrot.slane %v1063, 4
      %v1077 = vsel %vm1033, %v1075, %v1076
      %v1078 = vrot.slane %v1064, 4
      %v1079 = vsel %vm1033, %v1073, %v1078
      %v1080 = vrot.slane %v1065, 4
      %v1081 = vsel %vm1033, %v1076, %v1080
      %v1086 = vadd.f32 %v1048, %v1074
      %v1087 = vadd.f32 %v1049, %v1077
      %v1088 = vadd.f32 %v1050, %v1079
      %v1089 = vadd.f32 %v1051, %v1081
      %v1090 = vlaneseq
      %v1091 = vshrl.u32 %v1090, 7
      %v1092 = vsub.s32 0, %v1091
      %v1093 = vrot.slane %v278, %v1092
      %v1094 = vlaneseq
      %v1095 = vshrl.u32 %v1094, 7
      %v1096 = vsub.s32 0, %v1095
      %v1097 = vrot.slane %v279, %v1096
      %v1098 = vmul.f32 %v535, %v1093
      %v1099 = vmul.f32 %v544, %v1097
      %v1100 = vmul.f32 %v536, %v1093
      %v1101 = vmul.f32 %v545, %v1097
      %v1102 = vmul.f32 %v537, %v1093
      %v1103 = vmul.f32 %v546, %v1097
      %v1110 = vrot.slane %v1098, 4
      %v1111 = vrot.slane %v1100, 4
      %v1112 = vsel %vm1033, %v1110, %v1111
      %v1113 = vrot.slane %v1099, 4
      %v1114 = vrot.slane %v1101, 4
      %v1115 = vsel %vm1033, %v1113, %v1114
      %v1116 = vrot.slane %v1102, 4
      %v1117 = vsel %vm1033, %v1111, %v1116
      %v1118 = vrot.slane %v1103, 4
      %v1119 = vsel %vm1033, %v1114, %v1118
      %v1124 = vadd.f32 %v1086, %v1112
      %v1125 = vadd.f32 %v1087, %v1115
      %v1126 = vadd.f32 %v1088, %v1117
      %v1127 = vadd.f32 %v1089, %v1119
      %v1134 = vrot.slane %v849, 1
      %v1135 = vrot.slane %v851, 1
      %v1136 = vsel %vm621, %v1134, %v1135
      %v1137 = vrot.slane %v850, 1
      %v1138 = vrot.slane %v852, 1
      %v1139 = vsel %vm621, %v1137, %v1138
      %v1140 = vrot.slane %v853, 1
      %v1141 = vsel %vm621, %v1135, %v1140
      %v1142 = vrot.slane %v854, 1
      %v1143 = vsel %vm621, %v1138, %v1142
      %v1148 = vadd.f32 %v1136, %v1141
      %v1149 = vrot.slane %v1148, 4
      %v1150 = vadd.f32 %v1148, %v1149
      %v1151 = vrot.slane %v1150, 2
      %v1152 = vadd.f32 %v1150, %v1151
      %v1153 = vrot.slane %v1152, 1
      %v1154 = vadd.f32 %v1152, %v1153
      %v1155 = vadd.f32 %v1139, %v1143
      %v1156 = vrot.slane %v1155, 4
      %v1157 = vadd.f32 %v1155, %v1156
      %v1158 = vrot.slane %v1157, 2
      %v1159 = vadd.f32 %v1157, %v1158
      %v1160 = vrot.slane %v1159, 1
      %v1161 = vadd.f32 %v1159, %v1160
      %v1162 = vadd.f32 %v1124, %v1126
      %v1163 = vrot.slane %v1162, 4
      %v1164 = vadd.f32 %v1162, %v1163
      %v1165 = vrot.slane %v1164, 2
      %v1166 = vadd.f32 %v1164, %v1165
      %v1167 = vrot.slane %v1166, 1
      %v1168 = vadd.f32 %v1166, %v1167
      %v1169 = vadd.f32 %v1125, %v1127
      %v1170 = vrot.slane %v1169, 4
      %v1171 = vadd.f32 %v1169, %v1170
      %v1172 = vrot.slane %v1171, 2
      %v1173 = vadd.f32 %v1171, %v1172
      %v1174 = vrot.slane %v1173, 1
      %v1175 = vadd.f32 %v1173, %v1174
      %v1176 = vmul.f32 %v1154, 0.0625
      %v1177 = vmul.f32 %v1161, 0.0625
      %v1178 = vsub.f32 %v849, %v1176
      %v1179 = vsub.f32 %v850, %v1177
      %v1180 = vsub.f32 %v851, %v1176
      %v1181 = vsub.f32 %v852, %v1177
      %v1182 = vsub.f32 %v853, %v1176
      %v1183 = vsub.f32 %v854, %v1177
      %v1184 = vmul.f32 %v1168, 0.0625
      %v1185 = vmul.f32 %v1175, 0.0625
      %v1186 = vsub.f32 %v1124, %v1184
      %v1187 = vsub.f32 %v1125, %v1185
      %v1188 = vsub.f32 %v1126, %v1184
      %v1189 = vsub.f32 %v1127, %v1185
      %v1190 = vmul.f32 %v1178, %v1178
      %v1191 = vmul.f32 %v1179, %v1179
      %v1192 = vmul.f32 %v1180, %v1180
      %v1193 = vmul.f32 %v1181, %v1181
      %v1194 = vmul.f32 %v1182, %v1182
      %v1195 = vmul.f32 %v1183, %v1183
      %v1202 = vrot.slane %v1190, 1
      %v1203 = vrot.slane %v1192, 1
      %v1204 = vsel %vm621, %v1202, %v1203
      %v1205 = vrot.slane %v1191, 1
      %v1206 = vrot.slane %v1193, 1
      %v1207 = vsel %vm621, %v1205, %v1206
      %v1208 = vrot.slane %v1194, 1
      %v1209 = vsel %vm621, %v1203, %v1208
      %v1210 = vrot.slane %v1195, 1
      %v1211 = vsel %vm621, %v1206, %v1210
      %v1216 = vadd.f32 %v1204, %v1209
      %v1217 = vrot.slane %v1216, 4
      %v1218 = vadd.f32 %v1216, %v1217
      %v1219 = vrot.slane %v1218, 2
      %v1220 = vadd.f32 %v1218, %v1219
      %v1221 = vrot.slane %v1220, 1
      %v1222 = vadd.f32 %v1220, %v1221
      %v1223 = vadd.f32 %v1207, %v1211
      %v1224 = vrot.slane %v1223, 4
      %v1225 = vadd.f32 %v1223, %v1224
      %v1226 = vrot.slane %v1225, 2
      %v1227 = vadd.f32 %v1225, %v1226
      %v1228 = vrot.slane %v1227, 1
      %v1229 = vadd.f32 %v1227, %v1228
      %v1230 = vmul.f32 %v1186, %v1186
      %v1231 = vmul.f32 %v1187, %v1187
      %v1232 = vmul.f32 %v1188, %v1188
      %v1233 = vmul.f32 %v1189, %v1189
      %v1234 = vadd.f32 %v1230, %v1232
      %v1235 = vrot.slane %v1234, 4
      %v1236 = vadd.f32 %v1234, %v1235
      %v1237 = vrot.slane %v1236, 2
      %v1238 = vadd.f32 %v1236, %v1237
      %v1239 = vrot.slane %v1238, 1
      %v1240 = vadd.f32 %v1238, %v1239
      %v1241 = vadd.f32 %v1231, %v1233
      %v1242 = vrot.slane %v1241, 4
      %v1243 = vadd.f32 %v1241, %v1242
      %v1244 = vrot.slane %v1243, 2
      %v1245 = vadd.f32 %v1243, %v1244
      %v1246 = vrot.slane %v1245, 1
      %v1247 = vadd.f32 %v1245, %v1246
      %vm1248 = vcmask 1040384
      %v1249 = vsel %vm1248, %v1154, %v1222
      %v1250 = vsel %vm1248, %v1161, %v1229
      %v1251 = vsel %vm426, %v1249, %v1168
      %v1252 = vsel %vm426, %v1250, %v1175
      %vm1253 = vcmask 1042432
      %v1254 = vsel %vm1253, %v1251, %v1240
      %v1255 = vsel %vm1253, %v1252, %v1247
      %v1258 = vcombine.low %v1254, %v1255
      %1260 = vst [vmem:[%s251] sm:$0xff] %v1258
      %p1261 = scmp.lt.s32.totalorder %s17, 1
      %s1262 = scalar_select %p1261, %s17, 1
      %s1263 = smul.addr %s1262, 2
      %s1264 = smul.addr %s1263, 4
      %s1265 = scalar_lea.vmem %s6, %s1264
      // Predicated region
      $region45: #{pyramid_feature_block.2} parent=43 // pred_check
        %p1266 = pneg %p166
      $region46: #{pyramid_feature_block.2} parent=43 // pred_check_branch
        %1268 = sbr.rel (%p1266) target = $region48
      $region47: #{pyramid_feature_block.2} parent=43 // pred_region
        _
      $region48: #{pyramid_feature_block.2} parent=43 // pred_fallthru
        _
    $region44: #{pyramid_feature_block.2} parent=5 // pred_fallthru
      _
    %p1269 = scmp.le.s32.totalorder 2, %s12
    // Predicated region
    $region49: #{pyramid_feature_block.2} parent=5 // pred_check
      %p1270 = pneg %p1269
    $region50: #{pyramid_feature_block.2} parent=5 // pred_check_branch
      %1272 = sbr.rel (%p1270) target = $region52
    $region51: #{pyramid_feature_block.2} parent=5 // pred_region
      %s1273 = ssub.s32 %s12, 2
      // Predicated region
      $region53: #{pyramid_feature_block.2} parent=51 // pred_check
        %p1274 = pneg %p172
      $region54: #{pyramid_feature_block.2} parent=51 // pred_check_branch
        %1276 = sbr.rel (%p1274) target = $region56
      $region55: #{pyramid_feature_block.2} parent=51 // pred_region
        %p1277 = scmp.lt.s32.totalorder %s18, 1
        %s1278 = scalar_select %p1277, %s18, 1
        %s1279 = smul.addr %s1278, 2
        %s1280 = smul.addr %s1279, 4
        %s1281 = scalar_lea.vmem %s6, %s1280
      $region56: #{pyramid_feature_block.2} parent=51 // pred_fallthru
        _
    $region52: #{pyramid_feature_block.2} parent=5 // pred_fallthru
      _
  $region6: #{pyramid_feature_block.2} parent=0 // loop_footer
    %s16 = sadd.s32 1, %s12
  $region7: #{pyramid_feature_block.2} parent=0 // loop_footer_branch
    %11 = sbr.rel target = $region3
  $region8: #{pyramid_feature_block.2} parent=0 // loop_exit
    _

// kernel: pyramid_feature_block.3
$region0: #{pyramid_feature_block.3}
  #allocation0 [shape = 'u32[]', space=smem, size = 0x4, offset = 0x4, fixed_abs, tag = 'smem constant byte address 0x4 - core index']
  #allocation1 [shape = 'u32[144,128]{1,0:T(1,128)}', space=vmem, size = 0x12000, scoped, tag = 'internal scratch']
  %s0 = inlined_call_operand.vmem [shape: f32[2,16,64], index: 0, kind: input, shape index: {}]
  %s1 = inlined_call_operand.vmem [shape: f32[64,256], index: 1, kind: input, shape index: {}]
  %s2 = inlined_call_operand.vmem [shape: f32[1,256], index: 2, kind: input, shape index: {}]
  %s3 = inlined_call_operand.vmem [shape: f32[1,256], index: 3, kind: input, shape index: {}]
  %s4 = inlined_call_operand.vmem [shape: f32[9,256], index: 4, kind: input, shape index: {}]
  %s5 = inlined_call_operand.vmem [shape: f32[9,256], index: 5, kind: input, shape index: {}]
  %s6 = inlined_call_operand.vmem [shape: f32[1,256], index: 6, kind: input, shape index: {}]
  %s7 = inlined_call_operand.vmem [shape: f32[1,256], index: 7, kind: input, shape index: {}]
  %s8 = inlined_call_operand.vmem [shape: f32[1,256], index: 8, kind: input, shape index: {}]
  %s9 = inlined_call_operand.vmem [shape: f32[1,256], index: 9, kind: input, shape index: {}]
  %s10 = inlined_call_operand.vmem [shape: f32[2,16,256], index: 10, kind: output, shape index: {}]
  %s11 = sld [smem:[#allocation0]]
  $region73: #{pyramid_feature_block.3} parent=0
    _
  %s13 = ssub.s32 1, %s11
  %s14 = scalar_select 0, %s13, %s11
  loop: start=0, step=1, limit=4
  $region2: #{pyramid_feature_block.3} parent=0 // loop_pre_header
    _
  $region3: #{pyramid_feature_block.3} parent=0 // loop_header
    %s16 = sphi 0, %s20
    %p17 = scmp.ge.s32.totalorder %s16, 4
    %s26 = sphi 0, %s28
    %s29 = sphi 0, %s26
    %s30 = sphi 0, %s29
    %s46 = sphi 0, %s30
    %s50 = sphi 0, %s50
    %s52 = sphi 0, %s50
    %s53 = sphi 0, %s52
    %s67 = sphi 0, %s53
    %s71 = sphi 0, %s71
    %s73 = sphi 0, %s71
    %s74 = sphi 0, %s73
    %s88 = sphi 0, %s74
    %s92 = sphi 0, %s92
    %s94 = sphi 0, %s92
    %s95 = sphi 0, %s94
    %s109 = sphi 0, %s95
    %s113 = sphi 0, %s113
    %s115 = sphi 0, %s113
    %s116 = sphi 0, %s115
    %s130 = sphi 0, %s116
    %s134 = sphi 0, %s134
    %s136 = sphi 0, %s134
    %s137 = sphi 0, %s136
    %s151 = sphi 0, %s137
    %s155 = sphi 0, %s155
    %s157 = sphi 0, %s155
    %s158 = sphi 0, %s157
    %s172 = sphi 0, %s158
    %s176 = sphi 0, %s176
    %s178 = sphi 0, %s176
    %s179 = sphi 0, %s178
    %s193 = sphi 0, %s179
    %s197 = sphi 0, %s197
    %s199 = sphi 0, %s197
    %s200 = sphi 0, %s199
    %s214 = sphi 0, %s200
    %s218 = sphi 0, %s218
    %s220 = sphi 0, %s218
    %s221 = sphi 0, %s220
    %s235 = sphi 0, %s221
    %s241 = sphi 0, %s243
    %s244 = sphi 0, %s241
    %s245 = sphi 0, %s244
    %s261 = sphi 0, %s245
  $region4: #{pyramid_feature_block.3} parent=0 // loop_header_branch
    %19 = sbr.rel (%p17) target = $region8
  $region5: #{pyramid_feature_block.3} parent=0 // loop_body
    %s21 = ssub.s32 %s16, 1
    %s22 = ssub.s32 %s16, 2
    %s23 = sadd.s32 %s16, 1
    %s24 = ssub.s32 %s16, %s23
    %p25 = scmp.eq.s32.totalorder %s24, 0
    %s27 = sadd.s32 %s26, 1
    %s28 = scalar_select %p25, %s26, %s27
    %p31 = pneg %p25
    %p32 = scmp.eq.s32.totalorder %s16, 1
    %p33 = por %p31, %p32
    %p34 = scmp.ne.s32.totalorder %s26, %s29
    %p35 = scmp.eq.s32.totalorder %s16, 0
    %p36 = por %p34, %p35
    %p37 = scmp.ne.s32.totalorder %s26, %s29
    %p38 = scmp.eq.s32.totalorder %s21, 1
    %p39 = por %p37, %p38
    %p40 = scmp.ne.s32.totalorder %s29, %s30
    %p41 = scmp.eq.s32.totalorder %s21, 0
    %p42 = por %p40, %p41
    %p43 = scmp.ne.s32.totalorder %s29, %s30
    %p44 = scmp.eq.s32.totalorder %s22, 1
    %p45 = por %p43, %p44
    %p47 = scmp.ne.s32.totalorder %s30, %s46
    %p48 = scmp.eq.s32.totalorder %s22, 0
    %p49 = por %p47, %p48
    %s51 = sadd.s32 %s50, 1
    %p54 = scmp.eq.s32.totalorder %s16, 1
    %p55 = scmp.ne.s32.totalorder %s50, %s52
    %p56 = scmp.eq.s32.totalorder %s16, 0
    %p57 = por %p55, %p56
    %p58 = scmp.ne.s32.totalorder %s50, %s52
    %p59 = scmp.eq.s32.totalorder %s21, 1
    %p60 = por %p58, %p59
    %p61 = scmp.ne.s32.totalorder %s52, %s53
    %p62 = scmp.eq.s32.totalorder %s21, 0
    %p63 = por %p61, %p62
    %p64 = scmp.ne.s32.totalorder %s52, %s53
    %p65 = scmp.eq.s32.totalorder %s22, 1
    %p66 = por %p64, %p65
    %p68 = scmp.ne.s32.totalorder %s53, %s67
    %p69 = scmp.eq.s32.totalorder %s22, 0
    %p70 = por %p68, %p69
    %s72 = sadd.s32 %s71, 1
    %p75 = scmp.eq.s32.totalorder %s16, 1
    %p76 = scmp.ne.s32.totalorder %s71, %s73
    %p77 = scmp.eq.s32.totalorder %s16, 0
    %p78 = por %p76, %p77
    %p79 = scmp.ne.s32.totalorder %s71, %s73
    %p80 = scmp.eq.s32.totalorder %s21, 1
    %p81 = por %p79, %p80
    %p82 = scmp.ne.s32.totalorder %s73, %s74
    %p83 = scmp.eq.s32.totalorder %s21, 0
    %p84 = por %p82, %p83
    %p85 = scmp.ne.s32.totalorder %s73, %s74
    %p86 = scmp.eq.s32.totalorder %s22, 1
    %p87 = por %p85, %p86
    %p89 = scmp.ne.s32.totalorder %s74, %s88
    %p90 = scmp.eq.s32.totalorder %s22, 0
    %p91 = por %p89, %p90
    %s93 = sadd.s32 %s92, 1
    %p96 = scmp.eq.s32.totalorder %s16, 1
    %p97 = scmp.ne.s32.totalorder %s92, %s94
    %p98 = scmp.eq.s32.totalorder %s16, 0
    %p99 = por %p97, %p98
    %p100 = scmp.ne.s32.totalorder %s92, %s94
    %p101 = scmp.eq.s32.totalorder %s21, 1
    %p102 = por %p100, %p101
    %p103 = scmp.ne.s32.totalorder %s94, %s95
    %p104 = scmp.eq.s32.totalorder %s21, 0
    %p105 = por %p103, %p104
    %p106 = scmp.ne.s32.totalorder %s94, %s95
    %p107 = scmp.eq.s32.totalorder %s22, 1
    %p108 = por %p106, %p107
    %p110 = scmp.ne.s32.totalorder %s95, %s109
    %p111 = scmp.eq.s32.totalorder %s22, 0
    %p112 = por %p110, %p111
    %s114 = sadd.s32 %s113, 1
    %p117 = scmp.eq.s32.totalorder %s16, 1
    %p118 = scmp.ne.s32.totalorder %s113, %s115
    %p119 = scmp.eq.s32.totalorder %s16, 0
    %p120 = por %p118, %p119
    %p121 = scmp.ne.s32.totalorder %s113, %s115
    %p122 = scmp.eq.s32.totalorder %s21, 1
    %p123 = por %p121, %p122
    %p124 = scmp.ne.s32.totalorder %s115, %s116
    %p125 = scmp.eq.s32.totalorder %s21, 0
    %p126 = por %p124, %p125
    %p127 = scmp.ne.s32.totalorder %s115, %s116
    %p128 = scmp.eq.s32.totalorder %s22, 1
    %p129 = por %p127, %p128
    %p131 = scmp.ne.s32.totalorder %s116, %s130
    %p132 = scmp.eq.s32.totalorder %s22, 0
    %p133 = por %p131, %p132
    %s135 = sadd.s32 %s134, 1
    %p138 = scmp.eq.s32.totalorder %s16, 1
    %p139 = scmp.ne.s32.totalorder %s134, %s136
    %p140 = scmp.eq.s32.totalorder %s16, 0
    %p141 = por %p139, %p140
    %p142 = scmp.ne.s32.totalorder %s134, %s136
    %p143 = scmp.eq.s32.totalorder %s21, 1
    %p144 = por %p142, %p143
    %p145 = scmp.ne.s32.totalorder %s136, %s137
    %p146 = scmp.eq.s32.totalorder %s21, 0
    %p147 = por %p145, %p146
    %p148 = scmp.ne.s32.totalorder %s136, %s137
    %p149 = scmp.eq.s32.totalorder %s22, 1
    %p150 = por %p148, %p149
    %p152 = scmp.ne.s32.totalorder %s137, %s151
    %p153 = scmp.eq.s32.totalorder %s22, 0
    %p154 = por %p152, %p153
    %s156 = sadd.s32 %s155, 1
    %p159 = scmp.eq.s32.totalorder %s16, 1
    %p160 = scmp.ne.s32.totalorder %s155, %s157
    %p161 = scmp.eq.s32.totalorder %s16, 0
    %p162 = por %p160, %p161
    %p163 = scmp.ne.s32.totalorder %s155, %s157
    %p164 = scmp.eq.s32.totalorder %s21, 1
    %p165 = por %p163, %p164
    %p166 = scmp.ne.s32.totalorder %s157, %s158
    %p167 = scmp.eq.s32.totalorder %s21, 0
    %p168 = por %p166, %p167
    %p169 = scmp.ne.s32.totalorder %s157, %s158
    %p170 = scmp.eq.s32.totalorder %s22, 1
    %p171 = por %p169, %p170
    %p173 = scmp.ne.s32.totalorder %s158, %s172
    %p174 = scmp.eq.s32.totalorder %s22, 0
    %p175 = por %p173, %p174
    %s177 = sadd.s32 %s176, 1
    %p180 = scmp.eq.s32.totalorder %s16, 1
    %p181 = scmp.ne.s32.totalorder %s176, %s178
    %p182 = scmp.eq.s32.totalorder %s16, 0
    %p183 = por %p181, %p182
    %p184 = scmp.ne.s32.totalorder %s176, %s178
    %p185 = scmp.eq.s32.totalorder %s21, 1
    %p186 = por %p184, %p185
    %p187 = scmp.ne.s32.totalorder %s178, %s179
    %p188 = scmp.eq.s32.totalorder %s21, 0
    %p189 = por %p187, %p188
    %p190 = scmp.ne.s32.totalorder %s178, %s179
    %p191 = scmp.eq.s32.totalorder %s22, 1
    %p192 = por %p190, %p191
    %p194 = scmp.ne.s32.totalorder %s179, %s193
    %p195 = scmp.eq.s32.totalorder %s22, 0
    %p196 = por %p194, %p195
    %s198 = sadd.s32 %s197, 1
    %p201 = scmp.eq.s32.totalorder %s16, 1
    %p202 = scmp.ne.s32.totalorder %s197, %s199
    %p203 = scmp.eq.s32.totalorder %s16, 0
    %p204 = por %p202, %p203
    %p205 = scmp.ne.s32.totalorder %s197, %s199
    %p206 = scmp.eq.s32.totalorder %s21, 1
    %p207 = por %p205, %p206
    %p208 = scmp.ne.s32.totalorder %s199, %s200
    %p209 = scmp.eq.s32.totalorder %s21, 0
    %p210 = por %p208, %p209
    %p211 = scmp.ne.s32.totalorder %s199, %s200
    %p212 = scmp.eq.s32.totalorder %s22, 1
    %p213 = por %p211, %p212
    %p215 = scmp.ne.s32.totalorder %s200, %s214
    %p216 = scmp.eq.s32.totalorder %s22, 0
    %p217 = por %p215, %p216
    %s219 = sadd.s32 %s218, 1
    %p222 = scmp.eq.s32.totalorder %s16, 1
    %p223 = scmp.ne.s32.totalorder %s218, %s220
    %p224 = scmp.eq.s32.totalorder %s16, 0
    %p225 = por %p223, %p224
    %p226 = scmp.ne.s32.totalorder %s218, %s220
    %p227 = scmp.eq.s32.totalorder %s21, 1
    %p228 = por %p226, %p227
    %p229 = scmp.ne.s32.totalorder %s220, %s221
    %p230 = scmp.eq.s32.totalorder %s21, 0
    %p231 = por %p229, %p230
    %p232 = scmp.ne.s32.totalorder %s220, %s221
    %p233 = scmp.eq.s32.totalorder %s22, 1
    %p234 = por %p232, %p233
    %p236 = scmp.ne.s32.totalorder %s221, %s235
    %p237 = scmp.eq.s32.totalorder %s22, 0
    %p238 = por %p236, %p237
    %s239 = ssub.s32 %s16, %s23
    %p240 = scmp.eq.s32.totalorder %s239, 0
    %s242 = sadd.s32 %s241, 1
    %s243 = scalar_select %p240, %s241, %s242
    %p246 = pneg %p240
    %p247 = scmp.eq.s32.totalorder %s16, 1
    %p248 = por %p246, %p247
    %p249 = scmp.ne.s32.totalorder %s241, %s244
    %p250 = scmp.eq.s32.totalorder %s16, 0
    %p251 = por %p249, %p250
    %p252 = scmp.ne.s32.totalorder %s241, %s244
    %p253 = scmp.eq.s32.totalorder %s21, 1
    %p254 = por %p252, %p253
    %p255 = scmp.ne.s32.totalorder %s244, %s245
    %p256 = scmp.eq.s32.totalorder %s21, 0
    %p257 = por %p255, %p256
    %p258 = scmp.ne.s32.totalorder %s244, %s245
    %p259 = scmp.eq.s32.totalorder %s22, 1
    %p260 = por %p258, %p259
    %p262 = scmp.ne.s32.totalorder %s245, %s261
    %p263 = scmp.eq.s32.totalorder %s22, 0
    %p264 = por %p262, %p263
    %p265 = scmp.le.s32.totalorder 1, %s16
    %p266 = scmp.lt.s32.totalorder %s16, 3
    %p267 = pnand %p265, %p266
    %p268 = pneg %p267
    // Predicated region
    $region9: #{pyramid_feature_block.3} parent=5 // pred_check
      _
    $region10: #{pyramid_feature_block.3} parent=5 // pred_check_branch
      %270 = sbr.rel (%p267) target = $region12
    $region11: #{pyramid_feature_block.3} parent=5 // pred_region
      %s271 = ssub.s32 %s16, 1
      // Predicated region
      $region13: #{pyramid_feature_block.3} parent=11 // pred_check
        %p272 = pneg %p63
      $region14: #{pyramid_feature_block.3} parent=11 // pred_check_branch
        %274 = sbr.rel (%p272) target = $region16
      $region15: #{pyramid_feature_block.3} parent=11 // pred_region
        _
      $region16: #{pyramid_feature_block.3} parent=11 // pred_fallthru
        _
      // Predicated region
      $region17: #{pyramid_feature_block.3} parent=11 // pred_check
        %p275 = pneg %p84
      $region18: #{pyramid_feature_block.3} parent=11 // pred_check_branch
        %277 = sbr.rel (%p275) target = $region20
      $region19: #{pyramid_feature_block.3} parent=11 // pred_region
        _
      $region20: #{pyramid_feature_block.3} parent=11 // pred_fallthru
        _
      // Predicated region
      $region21: #{pyramid_feature_block.3} parent=11 // pred_check
        %p278 = pneg %p105
      $region22: #{pyramid_feature_block.3} parent=11 // pred_check_branch
        %280 = sbr.rel (%p278) target = $region24
      $region23: #{pyramid_feature_block.3} parent=11 // pred_region
        _
      $region24: #{pyramid_feature_block.3} parent=11 // pred_fallthru
        _
      // Predicated region
      $region25: #{pyramid_feature_block.3} parent=11 // pred_check
        %p281 = pneg %p126
      $region26: #{pyramid_feature_block.3} parent=11 // pred_check_branch
        %283 = sbr.rel (%p281) target = $region28
      $region27: #{pyramid_feature_block.3} parent=11 // pred_region
        _
      $region28: #{pyramid_feature_block.3} parent=11 // pred_fallthru
        _
      // Predicated region
      $region29: #{pyramid_feature_block.3} parent=11 // pred_check
        %p284 = pneg %p147
      $region30: #{pyramid_feature_block.3} parent=11 // pred_check_branch
        %286 = sbr.rel (%p284) target = $region32
      $region31: #{pyramid_feature_block.3} parent=11 // pred_region
        _
      $region32: #{pyramid_feature_block.3} parent=11 // pred_fallthru
        _
      // Predicated region
      $region33: #{pyramid_feature_block.3} parent=11 // pred_check
        %p287 = pneg %p168
      $region34: #{pyramid_feature_block.3} parent=11 // pred_check_branch
        %289 = sbr.rel (%p287) target = $region36
      $region35: #{pyramid_feature_block.3} parent=11 // pred_region
        _
      $region36: #{pyramid_feature_block.3} parent=11 // pred_fallthru
        _
      // Predicated region
      $region37: #{pyramid_feature_block.3} parent=11 // pred_check
        %p290 = pneg %p189
      $region38: #{pyramid_feature_block.3} parent=11 // pred_check_branch
        %292 = sbr.rel (%p290) target = $region40
      $region39: #{pyramid_feature_block.3} parent=11 // pred_region
        _
      $region40: #{pyramid_feature_block.3} parent=11 // pred_fallthru
        _
      // Predicated region
      $region41: #{pyramid_feature_block.3} parent=11 // pred_check
        %p293 = pneg %p210
      $region42: #{pyramid_feature_block.3} parent=11 // pred_check_branch
        %295 = sbr.rel (%p293) target = $region44
      $region43: #{pyramid_feature_block.3} parent=11 // pred_region
        _
      $region44: #{pyramid_feature_block.3} parent=11 // pred_fallthru
        _
      // Predicated region
      $region45: #{pyramid_feature_block.3} parent=11 // pred_check
        %p296 = pneg %p231
      $region46: #{pyramid_feature_block.3} parent=11 // pred_check_branch
        %298 = sbr.rel (%p296) target = $region48
      $region47: #{pyramid_feature_block.3} parent=11 // pred_region
        _
      $region48: #{pyramid_feature_block.3} parent=11 // pred_fallthru
        _
    $region12: #{pyramid_feature_block.3} parent=5 // pred_fallthru
      _
    %p299 = scmp.lt.s32.totalorder %s16, 2
    // Predicated region
    $region49: #{pyramid_feature_block.3} parent=5 // pred_check
      %p300 = pneg %p299
    $region50: #{pyramid_feature_block.3} parent=5 // pred_check_branch
      %302 = sbr.rel (%p300) target = $region52
    $region51: #{pyramid_feature_block.3} parent=5 // pred_region
      // Predicated region
      $region53: #{pyramid_feature_block.3} parent=51 // pred_check
        %p303 = pneg %p36
      $region54: #{pyramid_feature_block.3} parent=51 // pred_check_branch
        %305 = sbr.rel (%p303) target = $region56
      $region55: #{pyramid_feature_block.3} parent=51 // pred_region
        %p306 = scmp.lt.s32.totalorder %s16, 1
        %s307 = scalar_select %p306, %s16, 1
        %s308 = smul.addr %s307, 2
        %s309 = smul.addr %s308, 8
        %s310 = scalar_lea.vmem %s0, %s309
      $region56: #{pyramid_feature_block.3} parent=51 // pred_fallthru
        _
    $region52: #{pyramid_feature_block.3} parent=5 // pred_fallthru
      _
    %p311 = scmp.le.s32.totalorder 1, %s16
    %p312 = scmp.lt.s32.totalorder %s16, 3
    %p313 = pnand %p311, %p312
    %p314 = pneg %p313
    // Predicated region
    $region57: #{pyramid_feature_block.3} parent=5 // pred_check
      _
    $region58: #{pyramid_feature_block.3} parent=5 // pred_check_branch
      %316 = sbr.rel (%p313) target = $region60
    $region59: #{pyramid_feature_block.3} parent=5 // pred_region
      %s317 = ssub.s32 %s16, 1
      %p318 = scmp.lt.s32.totalorder %s21, 1
      %s319 = scalar_select %p318, %s21, 1
      %s320 = smul.addr %s319, 2
      %s321 = smul.addr %s320, 8
      %s322 = scalar_lea.vmem %s0, %s321
      %p323 = pneg %p42
      %p324 = pneg %p39
      %p325 = pneg %p63
      %p326 = pneg %p60
      %p327 = pneg %p84
      %p328 = pneg %p81
      %p329 = pneg %p105
      %p330 = pneg %p102
      %p331 = pneg %p126
      %p332 = pneg %p123
      %p333 = pneg %p147
      %p334 = pneg %p144
      %p335 = pneg %p168
      %p336 = pneg %p165
      %p337 = pneg %p189
      %p338 = pneg %p186
      %p339 = pneg %p210
      %p340 = pneg %p207
      %p341 = pneg %p231
      %p342 = pneg %p228
      %p343 = pneg %p257
      %p344 = pneg %p254
      %p345 = scmp.lt.s32.totalorder %s21, 1
      %s346 = scalar_select %p345, %s21, 1
      %s347 = smul.addr %s346, 4
      %s348 = smul.addr %s347, 8
      %s349 = scalar_lea.vmem %s10, %s348
      %p350 = scmp.lt.s32.totalorder %s21, 1
      %s351 = scalar_select %p350, %s21, 1
      %s352 = smul.addr %s351, 2
      %s353 = smul.addr %s352, 8
      %s354 = scalar_lea.vmem %s0, %s353
      %p355 = scmp.lt.s32.totalorder %s21, 1
      %s356 = scalar_select %p355, %s21, 1
      %s357 = smul.addr %s356, 4
      %s358 = smul.addr %s357, 8
      %s359 = scalar_lea.vmem %s10, %s358
      %v360 = vld [vmem:[%s354] sm:$0xff]
      %v361 = vld [vmem:[%s354 + $0x8] sm:$0xff]
      %v362 = vld [vmem:[%s1] sm:$0xff]
      %v363 = vld [vmem:[%s1 + $0x8] sm:$0xff]
      %v364 = vld [vmem:[%s1 + $0x10] sm:$0xff]
      %v365 = vld [vmem:[%s1 + $0x18] sm:$0xff]
      %v366 = vld [vmem:[%s1 + $0x20] sm:$0xff]
      %v367 = vld [vmem:[%s1 + $0x28] sm:$0xff]
      %v368 = vld [vmem:[%s1 + $0x30] sm:$0xff]
      %v369 = vld [vmem:[%s1 + $0x38] sm:$0xff]
      %v370 = vld [vmem:[%s1 + $0x40] sm:$0xff]
      %v371 = vld [vmem:[%s1 + $0x48] sm:$0xff]
      %v372 = vld [vmem:[%s1 + $0x50] sm:$0xff]
      %v373 = vld [vmem:[%s1 + $0x58] sm:$0xff]
      %v374 = vld [vmem:[%s1 + $0x60] sm:$0xff]
      %v375 = vld [vmem:[%s1 + $0x68] sm:$0xff]
      %v376 = vld [vmem:[%s1 + $0x70] sm:$0xff]
      %v377 = vld [vmem:[%s1 + $0x78] sm:$0xff]
      %v378 = vld [vmem:[%s2] sm:$0x3]
      %v379 = vld [vmem:[%s3] sm:$0x3]
      %v380 = vld [vmem:[%s4] sm:$0xff]
      %v381 = vld [vmem:[%s4 + $0x8] sm:$0xff]
      %v382 = vld [vmem:[%s4 + $0x10] sm:$0x1]
      %v383 = vld [vmem:[%s4 + $0x18] sm:$0x1]
      %v384 = vld [vmem:[%s5] sm:$0xff]
      %v385 = vld [vmem:[%s5 + $0x8] sm:$0xff]
      %v386 = vld [vmem:[%s5 + $0x10] sm:$0x1]
      %v387 = vld [vmem:[%s5 + $0x18] sm:$0x1]
      %vm388 = vcmask 523264
      %v390 = vsel %vm388, %v360, 0
      %v393 = vsel %vm388, %v361, 0
      %395 = vmatprep.subr.mxu0 %v363
      %396 = vmatpush1.msra.mxu0 %v362
      %397 = vmatprep.subr.mxu0 %v365
      %398 = vmatpush1.msra.mxu0 %v364
      %399 = vmatprep.subr.mxu0 %v367
      %400 = vmatpush1.msra.mxu0 %v366
      %401 = vmatprep.subr.mxu0 %v369
      %402 = vmatpush1.msra.mxu0 %v368
      %403 = vmatprep.subr.mxu0 %v371
      %404 = vmatpush1.msra.mxu0 %v370
      %405 = vmatprep.subr.mxu0 %v373
      %406 = vmatpush1.msra.mxu0 %v372
      %407 = vmatprep.subr.mxu0 %v375
      %408 = vmatpush1.msra.mxu0 %v374
      %409 = vmatprep.subr.mxu0 %v377
      %410 = vmatpush1.msra.mxu0 %v376
      %411 = vmatprep.subr.mxu0 0.0
      %412 = vmatpush1.msra.mxu0 0.0
      %413 = vmatprep.subr.mxu0 0.0
      %414 = vmatpush1.msra.mxu0 0.0
      %415 = vmatprep.subr.mxu0 0.0
      %416 = vmatpush1.msra.mxu0 0.0
      %417 = vmatprep.subr.mxu0 0.0
      %418 = vmatpush1.msra.mxu0 0.0
      %419 = vmatprep.subr.mxu0 0.0
      %420 = vmatpush1.msra.mxu0 0.0
      %421 = vmatprep.subr.mxu0 0.0
      %422 = vmatpush1.msra.mxu0 0.0
      %423 = vmatprep.subr.mxu0 0.0
      %424 = vmatpush1.msra.mxu0 0.0
      %425 = vmatprep.subr.mxu0 0.0
      %426 = vmatpush1.msra.mxu0 0.0
      %427 = vmatprep.subr.mxu0 0.0
      %428 = vmatpush1.msra.mxu0 0.0
      %429 = vmatprep.subr.mxu0 0.0
      %430 = vmatpush1.msra.mxu0 0.0
      %431 = vmatprep.subr.mxu0 0.0
      %432 = vmatpush1.msra.mxu0 0.0
      %433 = vmatprep.subr.mxu0 0.0
      %434 = vmatpush1.msra.mxu0 0.0
      %435 = vmatprep.subr.mxu0 0.0
      %436 = vmatpush1.msra.mxu0 0.0
      %437 = vmatprep.subr.mxu0 0.0
      %438 = vmatpush1.msra.mxu0 0.0
      %439 = vmatprep.subr.mxu0 0.0
      %440 = vmatpush1.msra.mxu0 0.0
      %441 = vmatprep.subr.mxu0 0.0
      %442 = vmatpush1.msra.mxu0 0.0
      %443 = vmatprep.subr.mxu0 0.0
      %444 = vmatpush1.msra.mxu0 0.0
      %445 = vmatprep.subr.mxu0 0.0
      %446 = vmatpush1.msra.mxu0 0.0
      %447 = vmatprep.subr.mxu0 0.0
      %448 = vmatpush1.msra.mxu0 0.0
      %449 = vmatprep.subr.mxu0 0.0
      %450 = vmatpush1.msra.mxu0 0.0
      %451 = vmatprep.subr.mxu0 0.0
      %452 = vmatpush1.msra.mxu0 0.0
      %453 = vmatprep.subr.mxu0 0.0
      %454 = vmatpush1.msra.mxu0 0.0
      %455 = vmatprep.subr.mxu0 0.0
      %456 = vmatpush1.msra.mxu0 0.0
      %457 = vmatprep.subr.mxu0 0.0
      %458 = vmatpush1.msra.mxu0 0.0
      %459 = vmatprep.mubr.f32.mxu0 0.0
      %460 = vmatmul.mubr.f32.gmra.mrb[0].mxu0 %v390
      %v461 = vpop.f32.mrb[0].mxu0
      %v462 = vadd.f32 0.0, %v461
      %v463 = vpop.f32.mrb[0].mxu0
      %v464 = vadd.f32 0.0, %v463
      %465 = vmatprep.mubr.f32.mxu0 0.0
      %466 = vmatmul.mubr.f32.gmra.mrb[0].mxu0 %v393
      %v467 = vpop.f32.mrb[0].mxu0
      %v468 = vadd.f32 0.0, %v467
      %v469 = vpop.f32.mrb[0].mxu0
      %v470 = vadd.f32 0.0, %v469
      %471 = vdwg.mxu0
      %v473 = vlaneseq
      %v474 = vshrl.u32 %v473, 7
      %v475 = vsub.s32 0, %v474
      %v476 = vrot.slane %v378, %v475
      %v477 = vlaneseq
      %v478 = vshrl.u32 %v477, 7
      %v479 = vsub.s32 1, %v478
      %v480 = vrot.slane %v378, %v479
      %v483 = vmul.f32 %v462, %v476
      %v484 = vmul.f32 %v464, %v480
      %v485 = vmul.f32 %v468, %v476
      %v486 = vmul.f32 %v470, %v480
      %v488 = vlaneseq
      %v489 = vshrl.u32 %v488, 7
      %v490 = vsub.s32 0, %v489
      %v491 = vrot.slane %v379, %v490
      %v492 = vlaneseq
      %v493 = vshrl.u32 %v492, 7
      %v494 = vsub.s32 1, %v493
      %v495 = vrot.slane %v379, %v494
      %v498 = vadd.f32 %v483, %v491
      %v499 = vadd.f32 %v484, %v495
      %v500 = vadd.f32 %v485, %v491
      %v501 = vadd.f32 %v486, %v495
      %v502 = vsub.f32 0.0, %v498
      %v503 = vsub.f32 0.0, %v499
      %v504 = vsub.f32 0.0, %v500
      %v505 = vsub.f32 0.0, %v501
      %v506 = vmul.f32 %v502, 1.442695
      %v507 = vpow.pop %v506
      %v508 = vmul.f32 %v503, 1.442695
      %v509 = vpow.pop %v508
      %v510 = vmul.f32 %v504, 1.442695
      %v511 = vpow.pop %v510
      %v512 = vmul.f32 %v505, 1.442695
      %v513 = vpow.pop %v512
      %v514 = vadd.f32 %v507, 1.0
      %v515 = vadd.f32 %v509, 1.0
      %v516 = vadd.f32 %v511, 1.0
      %v517 = vadd.f32 %v513, 1.0
      %v518 = vrcp.pop %v514
      %v519 = vmul.f32 1.0, %v518
      %v520 = vrcp.pop %v515
      %v521 = vmul.f32 1.0, %v520
      %v522 = vrcp.pop %v516
      %v523 = vmul.f32 1.0, %v522
      %v524 = vrcp.pop %v517
      %v525 = vmul.f32 1.0, %v524
      %v526 = vmul.f32 %v498, %v519
      %v527 = vmul.f32 %v499, %v521
      %v528 = vmul.f32 %v500, %v523
      %v529 = vmul.f32 %v501, %v525
      %vm534 = vcmask 1041408
      %v535 = vrot.slane %v526, 6
      %v536 = vrot.slane %v527, 6
      %v537 = vrot.slane %v528, 6
      %v538 = vsel %vm534, %v535, %v537
      %v539 = vrot.slane %v529, 6
      %v540 = vsel %vm534, %v536, %v539
      %v547 = vsel %vm534, 0.0, %v535
      %v548 = vsel %vm534, 0.0, %v536
      %v549 = vsel %vm534, %v537, 0.0
      %v550 = vsel %vm534, %v539, 0.0
      %555 = vrot.lane.b32.xlu0 %v547, 32
      %v556 = vpop.permute.xlu0 %555
      %557 = vrot.lane.b32.xlu0 %v548, 32
      %v558 = vpop.permute.xlu0 %557
      %559 = vrot.lane.b32.xlu0 %v538, 32
      %v560 = vpop.permute.xlu0 %559
      %561 = vrot.lane.b32.xlu0 %v540, 32
      %v562 = vpop.permute.xlu0 %561
      %563 = vrot.lane.b32.xlu0 %v549, 32
      %v564 = vpop.permute.xlu0 %563
      %565 = vrot.lane.b32.xlu0 %v550, 32
      %v566 = vpop.permute.xlu0 %565
      %vm567 = vcmask 261120
      %v568 = vsel %vm567, %v556, %v558
      %v569 = vsel %vm567, %v560, %v562
      %v570 = vsel %vm567, %v564, %v566
      %v577 = vsel %vm567, 0.0, %v556
      %v578 = vsel %vm567, 0.0, %v560
      %v579 = vsel %vm567, 0.0, %v564
      %580 = vrot.lane.b32.xlu0 %v547, 16
      %v581 = vpop.permute.xlu0 %580
      %582 = vrot.lane.b32.xlu0 %v548, 16
      %v583 = vpop.permute.xlu0 %582
      %584 = vrot.lane.b32.xlu0 %v538, 16
      %v585 = vpop.permute.xlu0 %584
      %586 = vrot.lane.b32.xlu0 %v540, 16
      %v587 = vpop.permute.xlu0 %586
      %588 = vrot.lane.b32.xlu0 %v549, 16
      %v589 = vpop.permute.xlu0 %588
      %590 = vrot.lane.b32.xlu0 %v550, 16
      %v591 = vpop.permute.xlu0 %590
      %vm592 = vcmask 130048
      %v593 = vsel %vm592, %v581, %v583
      %v594 = vsel %vm592, %v585, %v587
      %v595 = vsel %vm592, %v589, %v591
      %v602 = vsel %vm592, 0.0, %v581
      %v603 = vsel %vm592, 0.0, %v585
      %v604 = vsel %vm592, 0.0, %v589
      %605 = vrot.lane.b32.xlu0 %v547, 112
      %v606 = vpop.permute.xlu0 %605
      %607 = vrot.lane.b32.xlu0 %v548, 112
      %v608 = vpop.permute.xlu0 %607
      %609 = vrot.lane.b32.xlu0 %v538, 112
      %v610 = vpop.permute.xlu0 %609
      %611 = vrot.lane.b32.xlu0 %v540, 112
      %v612 = vpop.permute.xlu0 %611
      %613 = vrot.lane.b32.xlu0 %v549, 112
      %v614 = vpop.permute.xlu0 %613
      %615 = vrot.lane.b32.xlu0 %v550, 112
      %v616 = vpop.permute.xlu0 %615
      %vm617 = vcmask 916480
      %v618 = vsel %vm617, %v606, %v608
      %v619 = vsel %vm617, %v610, %v612
      %v620 = vsel %vm617, %v614, %v616
      %v627 = vsel %vm617, %v608, 0.0
      %v628 = vsel %vm617, %v612, 0.0
      %v629 = vsel %vm617, %v616, 0.0
      %630 = vrot.lane.b32.xlu0 %v547, 96
      %v631 = vpop.permute.xlu0 %630
      %632 = vrot.lane.b32.xlu0 %v548, 96
      %v633 = vpop.permute.xlu0 %632
      %634 = vrot.lane.b32.xlu0 %v538, 96
      %v635 = vpop.permute.xlu0 %634
      %636 = vrot.lane.b32.xlu0 %v540, 96
      %v637 = vpop.permute.xlu0 %636
      %638 = vrot.lane.b32.xlu0 %v549, 96
      %v639 = vpop.permute.xlu0 %638
      %640 = vrot.lane.b32.xlu0 %v550, 96
      %v641 = vpop.permute.xlu0 %640
      %vm642 = vcmask 785408
      %v643 = vsel %vm642, %v631, %v633
      %v644 = vsel %vm642, %v635, %v637
      %v645 = vsel %vm642, %v639, %v641
      %v652 = vsel %vm642, %v633, 0.0
      %v653 = vsel %vm642, %v637, 0.0
      %v654 = vsel %vm642, %v641, 0.0
      %v655 = vlaneseq
      %v656 = vshrl.u32 %v655, 7
      %v657 = vsub.s32 0, %v656
      %v658 = vrot.slane %v380, %v657
      %v659 = vlaneseq
      %v660 = vshrl.u32 %v659, 7
      %v661 = vsub.s32 0, %v660
      %v662 = vrot.slane %v381, %v661
      %v663 = vmul.f32 %v602, %v658
      %v664 = vmul.f32 %v593, %v662
      %v665 = vmul.f32 %v603, %v658
      %v666 = vmul.f32 %v594, %v662
      %v667 = vmul.f32 %v604, %v658
      %v668 = vmul.f32 %v595, %v662
      %v669 = vlaneseq
      %v670 = vshrl.u32 %v669, 7
      %v671 = vsub.s32 1, %v670
      %v672 = vrot.slane %v380, %v671
      %v673 = vlaneseq
      %v674 = vshrl.u32 %v673, 7
      %v675 = vsub.s32 1, %v674
      %v676 = vrot.slane %v381, %v675
      %v677 = vmul.f32 %v547, %v672
      %v678 = vmul.f32 %v548, %v676
      %v679 = vmul.f32 %v538, %v672
      %v680 = vmul.f32 %v540, %v676
      %v681 = vmul.f32 %v549, %v672
      %v682 = vmul.f32 %v550, %v676
      %v683 = vadd.f32 %v663, %v677
      %v684 = vadd.f32 %v664, %v678
      %v685 = vadd.f32 %v665, %v679
      %v686 = vadd.f32 %v666, %v680
      %v687 = vadd.f32 %v667, %v681
      %v688 = vadd.f32 %v668, %v682
      %v689 = vlaneseq
      %v690 = vshrl.u32 %v689, 7
      %v691 = vsub.s32 2, %v690
      %v692 = vrot.slane %v380, %v691
      %v693 = vlaneseq
      %v694 = vshrl.u32 %v693, 7
      %v695 = vsub.s32 2, %v694
      %v696 = vrot.slane %v381, %v695
      %v697 = vmul.f32 %v618, %v692
      %v698 = vmul.f32 %v627, %v696
      %v699 = vmul.f32 %v619, %v692
      %v700 = vmul.f32 %v628, %v696
      %v701 = vmul.f32 %v620, %v692
      %v702 = vmul.f32 %v629, %v696
      %v703 = vadd.f32 %v683, %v697
      %v704 = vadd.f32 %v684, %v698
      %v705 = vadd.f32 %v685, %v699
      %v706 = vadd.f32 %v686, %v700
      %v707 = vadd.f32 %v687, %v701
      %v708 = vadd.f32 %v688, %v702
      %v709 = vlaneseq
      %v710 = vshrl.u32 %v709, 7
      %v711 = vsub.s32 3, %v710
      %v712 = vrot.slane %v380, %v711
      %v713 = vlaneseq
      %v714 = vshrl.u32 %v713, 7
      %v715 = vsub.s32 3, %v714
      %v716 = vrot.slane %v381, %v715
      %v717 = vmul.f32 %v602, %v712
      %v718 = vmul.f32 %v593, %v716
      %v719 = vmul.f32 %v603, %v712
      %v720 = vmul.f32 %v594, %v716
      %v721 = vmul.f32 %v604, %v712
      %v722 = vmul.f32 %v595, %v716
      %vm729 = vcmask 1046528
      %v730 = vrot.slane %v717, 1
      %v731 = vrot.slane %v719, 1
      %v732 = vsel %vm729, %v730, %v731
      %v733 = vrot.slane %v718, 1
      %v734 = vrot.slane %v720, 1
      %v735 = vsel %vm729, %v733, %v734
      %v736 = vrot.slane %v721, 1
      %v737 = vsel %vm729, %v731, %v736
      %v738 = vrot.slane %v722, 1
      %v739 = vsel %vm729, %v734, %v738
      %v746 = vadd.f32 %v703, %v732
      %v747 = vadd.f32 %v704, %v735
      %v748 = vadd.f32 %v705, %v737
      %v749 = vadd.f32 %v706, %v739
      %v750 = vadd.f32 %v707, %v736
      %v751 = vadd.f32 %v708, %v738
      %v752 = vlaneseq
      %v753 = vshrl.u32 %v752, 7
      %v754 = vsub.s32 4, %v753
      %v755 = vrot.slane %v380, %v754
      %v756 = vlaneseq
      %v757 = vshrl.u32 %v756, 7
      %v758 = vsub.s32 4, %v757
      %v759 = vrot.slane %v381, %v758
      %v760 = vmul.f32 %v547, %v755
      %v761 = vmul.f32 %v548, %v759
      %v762 = vmul.f32 %v538, %v755
      %v763 = vmul.f32 %v540, %v759
      %v764 = vmul.f32 %v549, %v755
      %v765 = vmul.f32 %v550, %v759
      %v772 = vrot.slane %v760, 1
      %v773 = vrot.slane %v762, 1
      %v774 = vsel %vm729, %v772, %v773
      %v775 = vrot.slane %v761, 1
      %v776 = vrot.slane %v763, 1
      %v777 = vsel %vm729, %v775, %v776
      %v778 = vrot.slane %v764, 1
      %v779 = vsel %vm729, %v773, %v778
      %v780 = vrot.slane %v765, 1
      %v781 = vsel %vm729, %v776, %v780
      %v788 = vadd.f32 %v746, %v774
      %v789 = vadd.f32 %v747, %v777
      %v790 = vadd.f32 %v748, %v779
      %v791 = vadd.f32 %v749, %v781
      %v792 = vadd.f32 %v750, %v778
      %v793 = vadd.f32 %v751, %v780
      %v794 = vlaneseq
      %v795 = vshrl.u32 %v794, 7
      %v796 = vsub.s32 5, %v795
      %v797 = vrot.slane %v380, %v796
      %v798 = vlaneseq
      %v799 = vshrl.u32 %v798, 7
      %v800 = vsub.s32 5, %v799
      %v801 = vrot.slane %v381, %v800
      %v802 = vmul.f32 %v618, %v797
      %v803 = vmul.f32 %v627, %v801
      %v804 = vmul.f32 %v619, %v797
      %v805 = vmul.f32 %v628, %v801
      %v806 = vmul.f32 %v620, %v797
      %v807 = vmul.f32 %v629, %v801
      %v814 = vrot.slane %v802, 1
      %v815 = vrot.slane %v804, 1
      %v816 = vsel %vm729, %v814, %v815
      %v817 = vrot.slane %v803, 1
      %v818 = vrot.slane %v805, 1
      %v819 = vsel %vm729, %v817, %v818
      %v820 = vrot.slane %v806, 1
      %v821 = vsel %vm729, %v815, %v820
      %v822 = vrot.slane %v807, 1
      %v823 = vsel %vm729, %v818, %v822
      %v830 = vadd.f32 %v788, %v816
      %v831 = vadd.f32 %v789, %v819
      %v832 = vadd.f32 %v790, %v821
      %v833 = vadd.f32 %v791, %v823
      %v834 = vadd.f32 %v792, %v820
      %v835 = vadd.f32 %v793, %v822
      %v836 = vlaneseq
      %v837 = vshrl.u32 %v836, 7
      %v838 = vsub.s32 6, %v837
      %v839 = vrot.slane %v380, %v838
      %v840 = vlaneseq
      %v841 = vshrl.u32 %v840, 7
      %v842 = vsub.s32 6, %v841
      %v843 = vrot.slane %v381, %v842
      %v844 = vmul.f32 %v602, %v839
      %v845 = vmul.f32 %v593, %v843
      %v846 = vmul.f32 %v603, %v839
      %v847 = vmul.f32 %v594, %v843
      %v848 = vmul.f32 %v604, %v839
      %v849 = vmul.f32 %v595, %v843
      %vm856 = vcmask 1045504
      %v857 = vrot.slane %v844, 2
      %v858 = vrot.slane %v846, 2
      %v859 = vsel %vm856, %v857, %v858
      %v860 = vrot.slane %v845, 2
      %v861 = vrot.slane %v847, 2
      %v862 = vsel %vm856, %v860, %v861
      %v863 = vrot.slane %v848, 2
      %v864 = vsel %vm856, %v858, %v863
      %v865 = vrot.slane %v849, 2
      %v866 = vsel %vm856, %v861, %v865
      %v873 = vadd.f32 %v830, %v859
      %v874 = vadd.f32 %v831, %v862
      %v875 = vadd.f32 %v832, %v864
      %v876 = vadd.f32 %v833, %v866
      %v877 = vadd.f32 %v834, %v863
      %v878 = vadd.f32 %v835, %v865
      %v879 = vlaneseq
      %v880 = vshrl.u32 %v879, 7
      %v881 = vsub.s32 7, %v880
      %v882 = vrot.slane %v380, %v881
      %v883 = vlaneseq
      %v884 = vshrl.u32 %v883, 7
      %v885 = vsub.s32 7, %v884
      %v886 = vrot.slane %v381, %v885
      %v887 = vmul.f32 %v547, %v882
      %v888 = vmul.f32 %v548, %v886
      %v889 = vmul.f32 %v538, %v882
      %v890 = vmul.f32 %v540, %v886
      %v891 = vmul.f32 %v549, %v882
      %v892 = vmul.f32 %v550, %v886
      %v899 = vrot.slane %v887, 2
      %v900 = vrot.slane %v889, 2
      %v901 = vsel %vm856, %v899, %v900
      %v902 = vrot.slane %v888, 2
      %v903 = vrot.slane %v890, 2
      %v904 = vsel %vm856, %v902, %v903
      %v905 = vrot.slane %v891, 2
      %v906 = vsel %vm856, %v900, %v905
      %v907 = vrot.slane %v892, 2
      %v908 = vsel %vm856, %v903, %v907
      %v915 = vadd.f32 %v873, %v901
      %v916 = vadd.f32 %v874, %v904
      %v917 = vadd.f32 %v875, %v906
      %v918 = vadd.f32 %v876, %v908
      %v919 = vadd.f32 %v877, %v905
      %v920 = vadd.f32 %v878, %v907
      %v921 = vlaneseq
      %v922 = vshrl.u32 %v921, 7
      %v923 = vsub.s32 0, %v922
      %v924 = vrot.slane %v382, %v923
      %v925 = vlaneseq
      %v926 = vshrl.u32 %v925, 7
      %v927 = vsub.s32 0, %v926
      %v928 = vrot.slane %v383, %v927
      %v929 = vmul.f32 %v618, %v924
      %v930 = vmul.f32 %v627, %v928
      %v931 = vmul.f32 %v619, %v924
      %v932 = vmul.f32 %v628, %v928
      %v933 = vmul.f32 %v620, %v924
      %v934 = vmul.f32 %v629, %v928
      %v941 = vrot.slane %v929, 2
      %v942 = vrot.slane %v931, 2
      %v943 = vsel %vm856, %v941, %v942
      %v944 = vrot.slane %v930, 2
      %v945 = vrot.slane %v932, 2
      %v946 = vsel %vm856, %v944, %v945
      %v947 = vrot.slane %v933, 2
      %v948 = vsel %vm856, %v942, %v947
      %v949 = vrot.slane %v934, 2
      %v950 = vsel %vm856, %v945, %v949
      %v957 = vadd.f32 %v915, %v943
      %v958 = vadd.f32 %v916, %v946
      %v959 = vadd.f32 %v917, %v948
      %v960 = vadd.f32 %v918, %v950
      %v961 = vadd.f32 %v919, %v947
      %v962 = vadd.f32 %v920, %v949
      %v963 = vlaneseq
      %v964 = vshrl.u32 %v963, 7
      %v965 = vsub.s32 0, %v964
      %v966 = vrot.slane %v384, %v965
      %v967 = vlaneseq
      %v968 = vshrl.u32 %v967, 7
      %v969 = vsub.s32 0, %v968
      %v970 = vrot.slane %v385, %v969
      %v971 = vmul.f32 %v577, %v966
      %v972 = vmul.f32 %v568, %v970
      %v973 = vmul.f32 %v578, %v966
      %v974 = vmul.f32 %v569, %v970
      %v975 = vlaneseq
      %v976 = vshrl.u32 %v975, 7
      %v977 = vsub.s32 1, %v976
      %v978 = vrot.slane %v384, %v977
      %v979 = vlaneseq
      %v980 = vshrl.u32 %v979, 7
      %v981 = vsub.s32 1, %v980
      %v982 = vrot.slane %v385, %v981
      %v983 = vmul.f32 %v547, %v978
      %v984 = vmul.f32 %v548, %v982
      %v985 = vmul.f32 %v538, %v978
      %v986 = vmul.f32 %v540, %v982
      %v987 = vadd.f32 %v971, %v983
      %v988 = vadd.f32 %v972, %v984
      %v989 = vadd.f32 %v973, %v985
      %v990 = vadd.f32 %v974, %v986
      %v991 = vlaneseq
      %v992 = vshrl.u32 %v991, 7
      %v993 = vsub.s32 2, %v992
      %v994 = vrot.slane %v384, %v993
      %v995 = vlaneseq
      %v996 = vshrl.u32 %v995, 7
      %v997 = vsub.s32 2, %v996
      %v998 = vrot.slane %v385, %v997
      %v999 = vmul.f32 %v643, %v994
      %v1000 = vmul.f32 %v652, %v998
      %v1001 = vmul.f32 %v644, %v994
      %v1002 = vmul.f32 %v653, %v998
      %v1003 = vadd.f32 %v987, %v999
      %v1004 = vadd.f32 %v988, %v1000
      %v1005 = vadd.f32 %v989, %v1001
      %v1006 = vadd.f32 %v990, %v1002
      %v1007 = vlaneseq
      %v1008 = vshrl.u32 %v1007, 7
      %v1009 = vsub.s32 3, %v1008
      %v1010 = vrot.slane %v384, %v1009
      %v1011 = vlaneseq
      %v1012 = vshrl.u32 %v1011, 7
      %v1013 = vsub.s32 3, %v1012
      %v1014 = vrot.slane %v385, %v1013
      %v1015 = vmul.f32 %v577, %v1010
      %v1016 = vmul.f32 %v568, %v1014
      %v1017 = vmul.f32 %v578, %v1010
      %v1018 = vmul.f32 %v569, %v1014
      %v1019 = vmul.f32 %v579, %v1010
      %v1020 = vmul.f32 %v570, %v1014
      %v1027 = vrot.slane %v1015, 2
      %v1028 = vrot.slane %v1017, 2
      %v1029 = vsel %vm856, %v1027, %v1028
      %v1030 = vrot.slane %v1016, 2
      %v1031 = vrot.slane %v1018, 2
      %v1032 = vsel %vm856, %v1030, %v1031
      %v1033 = vrot.slane %v1019, 2
      %v1034 = vsel %vm856, %v1028, %v1033
      %v1035 = vrot.slane %v1020, 2
      %v1036 = vsel %vm856, %v1031, %v1035
      %v1041 = vadd.f32 %v1003, %v1029
      %v1042 = vadd.f32 %v1004, %v1032
      %v1043 = vadd.f32 %v1005, %v1034
      %v1044 = vadd.f32 %v1006, %v1036
      %v1045 = vlaneseq
      %v1046 = vshrl.u32 %v1045, 7
      %v1047 = vsub.s32 4, %v1046
      %v1048 = vrot.slane %v384, %v1047
      %v1049 = vlaneseq
      %v1050 = vshrl.u32 %v1049, 7
      %v1051 = vsub.s32 4, %v1050
      %v1052 = vrot.slane %v385, %v1051
      %v1053 = vmul.f32 %v547, %v1048
      %v1054 = vmul.f32 %v548, %v1052
      %v1055 = vmul.f32 %v538, %v1048
      %v1056 = vmul.f32 %v540, %v1052
      %v1057 = vmul.f32 %v549, %v1048
      %v1058 = vmul.f32 %v550, %v1052
      %v1065 = vrot.slane %v1053, 2
      %v1066 = vrot.slane %v1055, 2
      %v1067 = vsel %vm856, %v1065, %v1066
      %v1068 = vrot.slane %v1054, 2
      %v1069 = vrot.slane %v1056, 2
      %v1070 = vsel %vm856, %v1068, %v1069
      %v1071 = vrot.slane %v1057, 2
      %v1072 = vsel %vm856, %v1066, %v1071
      %v1073 = vrot.slane %v1058, 2
      %v1074 = vsel %vm856, %v1069, %v1073
      %v1079 = vadd.f32 %v1041, %v1067
      %v1080 = vadd.f32 %v1042, %v1070
      %v1081 = vadd.f32 %v1043, %v1072
      %v1082 = vadd.f32 %v1044, %v1074
      %v1083 = vlaneseq
      %v1084 = vshrl.u32 %v1083, 7
      %v1085 = vsub.s32 5, %v1084
      %v1086 = vrot.slane %v384, %v1085
      %v1087 = vlaneseq
      %v1088 = vshrl.u32 %v1087, 7
      %v1089 = vsub.s32 5, %v1088
      %v1090 = vrot.slane %v385, %v1089
      %v1091 = vmul.f32 %v643, %v1086
      %v1092 = vmul.f32 %v652, %v1090
      %v1093 = vmul.f32 %v644, %v1086
      %v1094 = vmul.f32 %v653, %v1090
      %v1095 = vmul.f32 %v645, %v1086
      %v1096 = vmul.f32 %v654, %v1090
      %v1103 = vrot.slane %v1091, 2
      %v1104 = vrot.slane %v1093, 2
      %v1105 = vsel %vm856, %v1103, %v1104
      %v1106 = vrot.slane %v1092, 2
      %v1107 = vrot.slane %v1094, 2
      %v1108 = vsel %vm856, %v1106, %v1107
      %v1109 = vrot.slane %v1095, 2
      %v1110 = vsel %vm856, %v1104, %v1109
      %v1111 = vrot.slane %v1096, 2
      %v1112 = vsel %vm856, %v1107, %v1111
      %v1117 = vadd.f32 %v1079, %v1105
      %v1118 = vadd.f32 %v1080, %v1108
      %v1119 = vadd.f32 %v1081, %v1110
      %v1120 = vadd.f32 %v1082, %v1112
      %v1121 = vlaneseq
      %v1122 = vshrl.u32 %v1121, 7
      %v1123 = vsub.s32 6, %v1122
      %v1124 = vrot.slane %v384, %v1123
      %v1125 = vlaneseq
      %v1126 = vshrl.u32 %v1125, 7
      %v1127 = vsub.s32 6, %v1126
      %v1128 = vrot.slane %v385, %v1127
      %v1129 = vmul.f32 %v577, %v1124
      %v1130 = vmul.f32 %v568, %v1128
      %v1131 = vmul.f32 %v578, %v1124
      %v1132 = vmul.f32 %v569, %v1128
      %v1133 = vmul.f32 %v579, %v1124
      %v1134 = vmul.f32 %v570, %v1128
      %vm1141 = vcmask 1043456
      %v1142 = vrot.slane %v1129, 4
      %v1143 = vrot.slane %v1131, 4
      %v1144 = vsel %vm1141, %v1142, %v1143
      %v1145 = vrot.slane %v1130, 4
      %v1146 = vrot.slane %v1132, 4
      %v1147 = vsel %vm1141, %v1145, %v1146
      %v1148 = vrot.slane %v1133, 4
      %v1149 = vsel %vm1141, %v1143, %v1148
      %v1150 = vrot.slane %v1134, 4
      %v1151 = vsel %vm1141, %v1146, %v1150
      %v1156 = vadd.f32 %v1117, %v1144
      %v1157 = vadd.f32 %v1118, %v1147
      %v1158 = vadd.f32 %v1119, %v1149
      %v1159 = vadd.f32 %v1120, %v1151
      %v1160 = vlaneseq
      %v1161 = vshrl.u32 %v1160, 7
      %v1162 = vsub.s32 7, %v1161
      %v1163 = vrot.slane %v384, %v1162
      %v1164 = vlaneseq
      %v1165 = vshrl.u32 %v1164, 7
      %v1166 = vsub.s32 7, %v1165
      %v1167 = vrot.slane %v385, %v1166
      %v1168 = vmul.f32 %v547, %v1163
      %v1169 = vmul.f32 %v548, %v1167
      %v1170 = vmul.f32 %v538, %v1163
      %v1171 = vmul.f32 %v540, %v1167
      %v1172 = vmul.f32 %v549, %v1163
      %v1173 = vmul.f32 %v550, %v1167
      %v1180 = vrot.slane %v1168, 4
      %v1181 = vrot.slane %v1170, 4
      %v1182 = vsel %vm1141, %v1180, %v1181
      %v1183 = vrot.slane %v1169, 4
      %v1184 = vrot.slane %v1171, 4
      %v1185 = vsel %vm1141, %v1183, %v1184
      %v1186 = vrot.slane %v1172, 4
      %v1187 = vsel %vm1141, %v1181, %v1186
      %v1188 = vrot.slane %v1173, 4
      %v1189 = vsel %vm1141, %v1184, %v1188
      %v1194 = vadd.f32 %v1156, %v1182
      %v1195 = vadd.f32 %v1157, %v1185
      %v1196 = vadd.f32 %v1158, %v1187
      %v1197 = vadd.f32 %v1159, %v1189
      %v1198 = vlaneseq
      %v1199 = vshrl.u32 %v1198, 7
      %v1200 = vsub.s32 0, %v1199
      %v1201 = vrot.slane %v386, %v1200
      %v1202 = vlaneseq
      %v1203 = vshrl.u32 %v1202, 7
      %v1204 = vsub.s32 0, %v1203
      %v1205 = vrot.slane %v387, %v1204
      %v1206 = vmul.f32 %v643, %v1201
      %v1207 = vmul.f32 %v652, %v1205
      %v1208 = vmul.f32 %v644, %v1201
      %v1209 = vmul.f32 %v653, %v1205
      %v1210 = vmul.f32 %v645, %v1201
      %v1211 = vmul.f32 %v654, %v1205
      %v1218 = vrot.slane %v1206, 4
      %v1219 = vrot.slane %v1208, 4
      %v1220 = vsel %vm1141, %v1218, %v1219
      %v1221 = vrot.slane %v1207, 4
      %v1222 = vrot.slane %v1209, 4
      %v1223 = vsel %vm1141, %v1221, %v1222
      %v1224 = vrot.slane %v1210, 4
      %v1225 = vsel %vm1141, %v1219, %v1224
      %v1226 = vrot.slane %v1211, 4
      %v1227 = vsel %vm1141, %v1222, %v1226
      %v1232 = vadd.f32 %v1194, %v1220
      %v1233 = vadd.f32 %v1195, %v1223
      %v1234 = vadd.f32 %v1196, %v1225
      %v1235 = vadd.f32 %v1197, %v1227
      %v1236 = vld [vmem:[%s6] sm:$0x3]
      %v1238 = vlaneseq
      %v1239 = vshrl.u32 %v1238, 7
      %v1240 = vsub.s32 0, %v1239
      %v1241 = vrot.slane %v1236, %v1240
      %v1242 = vlaneseq
      %v1243 = vshrl.u32 %v1242, 7
      %v1244 = vsub.s32 1, %v1243
      %v1245 = vrot.slane %v1236, %v1244
      %v1248 = vmul.f32 %v957, %v1241
      %v1249 = vmul.f32 %v958, %v1245
      %v1250 = vmul.f32 %v959, %v1241
      %v1251 = vmul.f32 %v960, %v1245
      %v1252 = vmul.f32 %v961, %v1241
      %v1253 = vmul.f32 %v962, %v1245
      %v1254 = vld [vmem:[%s7] sm:$0x3]
      %v1256 = vlaneseq
      %v1257 = vshrl.u32 %v1256, 7
      %v1258 = vsub.s32 0, %v1257
      %v1259 = vrot.slane %v1254, %v1258
      %v1260 = vlaneseq
      %v1261 = vshrl.u32 %v1260, 7
      %v1262 = vsub.s32 1, %v1261
      %v1263 = vrot.slane %v1254, %v1262
      %v1266 = vadd.f32 %v1248, %v1259
      %v1267 = vadd.f32 %v1249, %v1263
      %v1268 = vadd.f32 %v1250, %v1259
      %v1269 = vadd.f32 %v1251, %v1263
      %v1270 = vadd.f32 %v1252, %v1259
      %v1271 = vadd.f32 %v1253, %v1263
      %v1272 = vsub.f32 0.0, %v1266
      %v1273 = vsub.f32 0.0, %v1267
      %v1274 = vsub.f32 0.0, %v1268
      %v1275 = vsub.f32 0.0, %v1269
      %v1276 = vsub.f32 0.0, %v1270
      %v1277 = vsub.f32 0.0, %v1271
      %v1278 = vmul.f32 %v1272, 1.442695
      %v1279 = vpow.pop %v1278
      %v1280 = vmul.f32 %v1273, 1.442695
      %v1281 = vpow.pop %v1280
      %v1282 = vmul.f32 %v1274, 1.442695
      %v1283 = vpow.pop %v1282
      %v1284 = vmul.f32 %v1275, 1.442695
      %v1285 = vpow.pop %v1284
      %v1286 = vmul.f32 %v1276, 1.442695
      %v1287 = vpow.pop %v1286
      %v1288 = vmul.f32 %v1277, 1.442695
      %v1289 = vpow.pop %v1288
      %v1290 = vadd.f32 %v1279, 1.0
      %v1291 = vadd.f32 %v1281, 1.0
      %v1292 = vadd.f32 %v1283, 1.0
      %v1293 = vadd.f32 %v1285, 1.0
      %v1294 = vadd.f32 %v1287, 1.0
      %v1295 = vadd.f32 %v1289, 1.0
      %v1296 = vrcp.pop %v1290
      %v1297 = vmul.f32 1.0, %v1296
      %v1298 = vrcp.pop %v1291
      %v1299 = vmul.f32 1.0, %v1298
      %v1300 = vrcp.pop %v1292
      %v1301 = vmul.f32 1.0, %v1300
      %v1302 = vrcp.pop %v1293
      %v1303 = vmul.f32 1.0, %v1302
      %v1304 = vrcp.pop %v1294
      %v1305 = vmul.f32 1.0, %v1304
      %v1306 = vrcp.pop %v1295
      %v1307 = vmul.f32 1.0, %v1306
      %v1308 = vmul.f32 %v1266, %v1297
      %v1309 = vmul.f32 %v1267, %v1299
      %v1310 = vmul.f32 %v1268, %v1301
      %v1311 = vmul.f32 %v1269, %v1303
      %v1312 = vmul.f32 %v1270, %v1305
      %v1313 = vmul.f32 %v1271, %v1307
      %v1314 = vld [vmem:[%s8] sm:$0x3]
      %v1316 = vlaneseq
      %v1317 = vshrl.u32 %v1316, 7
      %v1318 = vsub.s32 0, %v1317
      %v1319 = vrot.slane %v1314, %v1318
      %v1320 = vlaneseq
      %v1321 = vshrl.u32 %v1320, 7
      %v1322 = vsub.s32 1, %v1321
      %v1323 = vrot.slane %v1314, %v1322
      %v1326 = vmul.f32 %v1232, %v1319
      %v1327 = vmul.f32 %v1233, %v1323
      %v1328 = vmul.f32 %v1234, %v1319
      %v1329 = vmul.f32 %v1235, %v1323
      %v1330 = vld [vmem:[%s9] sm:$0x3]
      %v1332 = vlaneseq
      %v1333 = vshrl.u32 %v1332, 7
      %v1334 = vsub.s32 0, %v1333
      %v1335 = vrot.slane %v1330, %v1334
      %v1336 = vlaneseq
      %v1337 = vshrl.u32 %v1336, 7
      %v1338 = vsub.s32 1, %v1337
      %v1339 = vrot.slane %v1330, %v1338
      %v1342 = vadd.f32 %v1326, %v1335
      %v1343 = vadd.f32 %v1327, %v1339
      %v1344 = vadd.f32 %v1328, %v1335
      %v1345 = vadd.f32 %v1329, %v1339
      %v1346 = vsub.f32 0.0, %v1342
      %v1347 = vsub.f32 0.0, %v1343
      %v1348 = vsub.f32 0.0, %v1344
      %v1349 = vsub.f32 0.0, %v1345
      %v1350 = vmul.f32 %v1346, 1.442695
      %v1351 = vpow.pop %v1350
      %v1352 = vmul.f32 %v1347, 1.442695
      %v1353 = vpow.pop %v1352
      %v1354 = vmul.f32 %v1348, 1.442695
      %v1355 = vpow.pop %v1354
      %v1356 = vmul.f32 %v1349, 1.442695
      %v1357 = vpow.pop %v1356
      %v1358 = vadd.f32 %v1351, 1.0
      %v1359 = vadd.f32 %v1353, 1.0
      %v1360 = vadd.f32 %v1355, 1.0
      %v1361 = vadd.f32 %v1357, 1.0
      %v1362 = vrcp.pop %v1358
      %v1363 = vmul.f32 1.0, %v1362
      %v1364 = vrcp.pop %v1359
      %v1365 = vmul.f32 1.0, %v1364
      %v1366 = vrcp.pop %v1360
      %v1367 = vmul.f32 1.0, %v1366
      %v1368 = vrcp.pop %v1361
      %v1369 = vmul.f32 1.0, %v1368
      %v1370 = vmul.f32 %v1342, %v1363
      %v1371 = vmul.f32 %v1343, %v1365
      %v1372 = vmul.f32 %v1344, %v1367
      %v1373 = vmul.f32 %v1345, %v1369
      %vm1378 = vcmask 1040384
      %v1379 = vrot.slane %v1370, 7
      %v1380 = vrot.slane %v1371, 7
      %v1381 = vrot.slane %v1372, 7
      %v1382 = vsel %vm1378, %v1379, %v1381
      %v1383 = vrot.slane %v1373, 7
      %v1384 = vsel %vm1378, %v1380, %v1383
      %v1391 = vadd.f32 %v1308, %v1379
      %v1392 = vadd.f32 %v1309, %v1380
      %v1393 = vadd.f32 %v1310, %v1382
      %v1394 = vadd.f32 %v1311, %v1384
      %v1395 = vadd.f32 %v1312, %v1381
      %v1396 = vadd.f32 %v1313, %v1383
      %v1403 = vrot.slane %v1391, 1
      %v1404 = vrot.slane %v1393, 1
      %v1405 = vsel %vm729, %v1403, %v1404
      %v1406 = vrot.slane %v1392, 1
      %v1407 = vrot.slane %v1394, 1
      %v1408 = vsel %vm729, %v1406, %v1407
      %v1409 = vrot.slane %v1395, 1
      %v1410 = vsel %vm729, %v1404, %v1409
      %v1411 = vrot.slane %v1396, 1
      %v1412 = vsel %vm729, %v1407, %v1411
      %1417 = vst [vmem:[%s359] sm:$0xff] %v1405
      %1418 = vst [vmem:[%s359 + $0x8] sm:$0xff] %v1408
      %1419 = vst [vmem:[%s359 + $0x10] sm:$0xff] %v1410
      %1420 = vst [vmem:[%s359 + $0x18] sm:$0xff] %v1412
      %p1421 = scmp.lt.s32.totalorder %s21, 1
      %s1422 = scalar_select %p1421, %s21, 1
      %s1423 = smul.addr %s1422, 4
      %s1424 = smul.addr %s1423, 8
      %s1425 = scalar_lea.vmem %s10, %s1424
      // Predicated region
      $region61: #{pyramid_feature_block.3} parent=59 // pred_check
        %p1426 = pneg %p254
      $region62: #{pyramid_feature_block.3} parent=59 // pred_check_branch
        %1428 = sbr.rel (%p1426) target = $region64
      $region63: #{pyramid_feature_block.3} parent=59 // pred_region
        _
      $region64: #{pyramid_feature_block.3} parent=59 // pred_fallthru
        _
    $region60: #{pyramid_feature_block.3} parent=5 // pred_fallthru
      _
    %p1429 = scmp.le.s32.totalorder 2, %s16
    // Predicated region
    $region65: #{pyramid_feature_block.3} parent=5 // pred_check
      %p1430 = pneg %p1429
    $region66: #{pyramid_feature_block.3} parent=5 // pred_check_branch
      %1432 = sbr.rel (%p1430) target = $region68
    $region67: #{pyramid_feature_block.3} parent=5 // pred_region
      %s1433 = ssub.s32 %s16, 2
      // Predicated region
      $region69: #{pyramid_feature_block.3} parent=67 // pred_check
        %p1434 = pneg %p260
      $region70: #{pyramid_feature_block.3} parent=67 // pred_check_branch
        %1436 = sbr.rel (%p1434) target = $region72
      $region71: #{pyramid_feature_block.3} parent=67 // pred_region
        %p1437 = scmp.lt.s32.totalorder %s22, 1
        %s1438 = scalar_select %p1437, %s22, 1
        %s1439 = smul.addr %s1438, 4
        %s1440 = smul.addr %s1439, 8
        %s1441 = scalar_lea.vmem %s10, %s1440
      $region72: #{pyramid_feature_block.3} parent=67 // pred_fallthru
        _
    $region68: #{pyramid_feature_block.3} parent=5 // pred_fallthru
      _
  $region6: #{pyramid_feature_block.3} parent=0 // loop_footer
    %s20 = sadd.s32 1, %s16
  $region7: #{pyramid_feature_block.3} parent=0 // loop_footer_branch
    %15 = sbr.rel target = $region3
  $region8: #{pyramid_feature_block.3} parent=0 // loop_exit
    _

</llo_original>
